<compile_context>
chip_gen: v7x
topology: tpu7x:2x2x1
jax: 0.10.0
libtpu: 0.0.40
codegen_flags: <defaults>
</compile_context>

<pallas_src>
import functools

import jax
import jax.numpy as jnp
from jax.experimental import pallas as pl
from jax.experimental.pallas import tpu as pltpu


def _round_up(x, m):
    return (x + m - 1) // m * m


def _vmem_capacity_bytes():
    """Physical VMEM of the current chip; conservative (v7x) fallback."""
    try:
        return int(pltpu.get_tpu_info().vmem_capacity_bytes)
    except Exception:
        return 64 << 20


def _conv_bn_silu_kernel(x_ref, w_ref, bias_ref, o_ref, *,
                         TH, W, K, C1p, TC2, w_resident):
    """One grid step = one (batch, H-tile, C2-tile) output block.

    x_ref:    (TH+K-1, W+K-1, C1p)         bf16  halo'd NHWC input window
    w_ref:    (K*K*C1p, C2p | TC2)         bf16  im2col weight (BN scale folded)
    bias_ref: (1, C2p)                     f32   folded BN bias (always resident)
    o_ref:    (TH, W, TC2)                        output tile
    """
    coff = pl.multiple_of(pl.program_id(2) * TC2, TC2)   # lane-aligned C2 offset
    woff = coff if w_resident else 0

    # K*K accumulating dots: full contraction depth (C1p) per MXU push, f32
    # accumulation, no K^2-sized im2col temporary.
    acc = jnp.zeros((TH * W, TC2), jnp.float32)
    for kh in range(K):
        for kw in range(K):
            tap = kh * K + kw
            xs = x_ref[kh:kh + TH, kw:kw + W, :].reshape(TH * W, C1p)
            ws = w_ref[pl.ds(tap * C1p, C1p), pl.ds(woff, TC2)]
            acc = acc + jnp.dot(xs, ws, preferred_element_type=jnp.float32)

    y = acc + bias_ref[:, pl.ds(coff, TC2)]               # folded BN bias (f32)
    # SiLU: y * sigmoid(y), reciprocal on the EUP slot.
    y = y * pl.reciprocal(1.0 + jnp.exp(-y), approx=True)
    o_ref[...] = y.reshape(TH, W, TC2).astype(o_ref.dtype)


def conv_bn_silu(x_nchw, weight, gamma, beta, running_mean, running_var,
                 *, k=3, eps=1e-5, block_h=None, out_dtype=jnp.float32,
                 halo="element"):
    """Fused Conv2d(bias=False, stride=1, pad=k//2) + BatchNorm2d(eval) + SiLU.

    x_nchw:  (N, C1, H, W)   float32, NCHW (PyTorch convention)
    weight:  (C2, C1, K, K)  float32, PyTorch Conv2d weight layout
    returns: (N, C2, H, W)   out_dtype (default float32; pass bfloat16 to halve
                             output HBM writeback when the consumer accepts it)
    """
    N, C1, H, W = x_nchw.shape
    C2 = weight.shape[0]
    K = int(k)
    assert K % 2 == 1, "only odd kernel sizes (autopad k//2) are supported"
    pad = K // 2

    # ---------------- tiling parameters ----------------
    TC2 = 128 if C2 <= 128 else 256        # 256 fills the 256-wide MXU (v6e/v7x)
    C1p = _round_up(C1, 16)                # bf16-sublane-friendly input channels
    C2p = _round_up(C2, TC2)
    C2B = C2p // TC2
    Wp = W + 2 * pad

    budget = int(_vmem_capacity_bytes() * 0.75)          # respect physical VMEM
    out_itemsize = jnp.dtype(out_dtype).itemsize

    w_full_b = K * K * C1p * C2p * 2
    w_resident = (w_full_b <= (8 << 20)) and (2 * w_full_b <= budget // 2)

    def _need(th):
        """Double-buffered blocks + in-kernel temporaries for an H-tile of th."""
        thh = th + K - 1
        x_b = thh * Wp * C1p * 2
        w_b = K * K * C1p * (C2p if w_resident else TC2) * 2
        b_b = C2p * 4
        o_b = th * W * TC2 * out_itemsize
        tmp = 2 * th * W * C1p * 2 + 2 * th * W * TC2 * 4   # tap slice + f32 acc
        return 2 * (x_b + w_b + b_b + o_b) + tmp

    if block_h is None:
        cands = sorted({min(t, H) for t in (64, 32, 16, 8, 4, 2, 1)}, reverse=True)
        TH = cands[-1]
        for t in cands:                     # largest H-tile that fits the budget
            if _need(t) + (4 << 20) <= budget:
                TH = t
                break
    else:
        TH = max(1, min(int(block_h), H))

    HB = -(-H // TH)                        # number of H tiles
    H_t = HB * TH                           # padded output height
    THh = TH + K - 1                        # input rows per tile (with halo)
    H_pad = H_t + K - 1                     # padded input height
    vmem_limit = int(min(max(_need(TH) + (4 << 20), 16 << 20), budget))

    # ---------------- glue (plain JAX): layout, padding, BN fold ----------------
    x_nhwc = jnp.transpose(x_nchw, (0, 2, 3, 1))                        # (N,H,W,C1)
    x_pad = jnp.pad(
        x_nhwc.astype(jnp.bfloat16),
        ((0, 0), (pad, pad + (H_t - H)), (pad, pad), (0, C1p - C1)))    # (N,H_pad,Wp,C1p)

    scale = gamma / jnp.sqrt(running_var + eps)                         # (C2,)
    bias = beta - running_mean * scale                                  # (C2,)
    w_scaled = weight.astype(jnp.float32) * scale[:, None, None, None]  # fold BN scale
    w_t = jnp.transpose(w_scaled, (2, 3, 1, 0))                         # (K,K,C1,C2)
    w_t = jnp.pad(w_t, ((0, 0), (0, 0), (0, C1p - C1), (0, C2p - C2)))
    w_mat = w_t.reshape(K * K * C1p, C2p).astype(jnp.bfloat16)          # im2col layout
    bias2d = jnp.pad(bias, (0, C2p - C2)).reshape(1, C2p).astype(jnp.float32)

    # ---------------- pallas_call ----------------
    kernel = functools.partial(_conv_bn_silu_kernel, TH=TH, W=W, K=K,
                               C1p=C1p, TC2=TC2, w_resident=w_resident)

    if w_resident:   # weight DMA'd once (constant block index), sliced in-kernel
        w_spec = pl.BlockSpec((K * K * C1p, C2p), lambda n, h, c: (0, 0))
    else:            # too large to keep resident: stream TC2-wide tiles
        w_spec = pl.BlockSpec((K * K * C1p, TC2), lambda n, h, c: (0, c))
    b_spec = pl.BlockSpec((1, C2p), lambda n, h, c: (0, 0))
    out_spec = pl.BlockSpec((None, TH, W, TC2), lambda n, h, c: (n, h, 0, c))

    cost = pl.CostEstimate(
        flops=int(2 * N * H_t * W * (K * K * C1p) * C2p),
        transcendentals=int(N * H_t * W * C2p),
        bytes_accessed=int(x_pad.size * 2 + w_mat.size * 2 + bias2d.size * 4
                           + N * H_t * W * C2p * out_itemsize))
    cparams = pltpu.CompilerParams(
        dimension_semantics=("parallel", "parallel", "parallel"),
        vmem_limit_bytes=vmem_limit)
    out_shape = jax.ShapeDtypeStruct((N, H_t, W, C2p), out_dtype)
    grid = (N, HB, C2B)

    def _run(x_arg, x_spec):
        return pl.pallas_call(
            kernel, out_shape=out_shape,
            grid_spec=pltpu.PrefetchScalarGridSpec(
                num_scalar_prefetch=0, grid=grid,
                in_specs=[x_spec, w_spec, b_spec], out_specs=out_spec),
            compiler_params=cparams, cost_estimate=cost,
        )(x_arg, w_mat, bias2d)

    def _run_element():
        # Overlapping halo'd row windows expressed directly on the padded input
        # (no HBM duplication): element offset n*H_pad + h*TH, window THh rows.
        x_lin = x_pad.reshape(N * H_pad, Wp, C1p)
        x_spec = pl.BlockSpec((pl.Element(THh), Wp, C1p),
                              lambda n, h, c: (n * H_pad + h * TH, 0, 0))
        return _run(x_lin, x_spec)

    def _run_gather():
        # Fallback: materialize overlapping tiles in HBM (extra HBM pass).
        row_idx = jnp.arange(HB)[:, None] * TH + jnp.arange(THh)[None, :]
        x_tiles = x_pad[:, row_idx]                       # (N,HB,THh,Wp,C1p)
        x_spec = pl.BlockSpec((None, None, THh, Wp, C1p),
                              lambda n, h, c: (n, h, 0, 0, 0))
        return _run(x_tiles, x_spec)

    if halo == "gather":
        out_nhwc = _run_gather()
    else:
        try:
            out_nhwc = _run_element()
            jax.block_until_ready(out_nhwc)
        except Exception:
            out_nhwc = _run_gather()

    out = out_nhwc[:, :H, :, :C2]                                       # drop padding
    return jnp.transpose(out, (0, 3, 1, 2))                             # back to NCHW


if __name__ == "__main__":
    # Small, deterministic problem: Conv(c1=4, c2=8, k=3, s=1) on (2,4,16,16).
    key = jax.random.PRNGKey(0)
    k_x, k_w, k_g, k_b, k_m, k_v = jax.random.split(key, 6)

    N, C1, H, W = 2, 4, 16, 16
    C2, K = 8, 3

    x = jax.random.normal(k_x, (N, C1, H, W), dtype=jnp.float32)
    weight = jax.random.normal(k_w, (C2, C1, K, K), dtype=jnp.float32) * 0.1
    gamma = 1.0 + 0.1 * jax.random.normal(k_g, (C2,), dtype=jnp.float32)
    beta = 0.1 * jax.random.normal(k_b, (C2,), dtype=jnp.float32)
    running_mean = 0.1 * jax.random.normal(k_m, (C2,), dtype=jnp.float32)
    running_var = jnp.abs(1.0 + 0.1 * jax.random.normal(k_v, (C2,), dtype=jnp.float32))

    out = conv_bn_silu(x, weight, gamma, beta, running_mean, running_var, k=K)
    jax.block_until_ready(out)

    # Pure-JAX f32 reference (same eval-mode BN fold + SiLU).
    ref_conv = jax.lax.conv_general_dilated(
        x, weight, window_strides=(1, 1), padding=((1, 1), (1, 1)),
        dimension_numbers=("NCHW", "OIHW", "NCHW"))
    s = (gamma / jnp.sqrt(running_var + 1e-5)).reshape(1, C2, 1, 1)
    b = (beta - running_mean * gamma / jnp.sqrt(running_var + 1e-5)).reshape(1, C2, 1, 1)
    ref = ref_conv * s + b
    ref = ref * jax.nn.sigmoid(ref)

    assert out.shape == (N, C2, H, W)
    err = float(jnp.max(jnp.abs(out - ref)))
    assert err < 5e-2, f"max abs err {err}"

    # Optional bf16 output path (halves output HBM writeback).
    out_bf16 = conv_bn_silu(x, weight, gamma, beta, running_mean, running_var,
                            k=K, out_dtype=jnp.bfloat16)
    jax.block_until_ready(out_bf16)
    err_bf16 = float(jnp.max(jnp.abs(out_bf16.astype(jnp.float32) - ref)))
    assert err_bf16 < 5e-2, f"bf16-out max abs err {err_bf16}"

    print("KERNEL_OK")
</pallas_src>

<mosaic_0001>
module attributes {stable_mosaic.version = 11 : i64} {
  func.func @_conv_bn_silu_kernel(%arg0: i32, %arg1: i32, %arg2: i32, %arg3: memref<1x1x18x18x16xbf16, #tpu.memory_space<vmem>>, %arg4: memref<144x128xbf16, #tpu.memory_space<vmem>>, %arg5: memref<1x128xf32, #tpu.memory_space<vmem>>, %arg6: memref<1x16x16x128xf32, #tpu.memory_space<vmem>>) attributes {dimension_semantics = [#tpu.dimension_semantics<parallel>, #tpu.dimension_semantics<parallel>, #tpu.dimension_semantics<parallel>], iteration_bounds = array<i64: 2, 1, 1>, scalar_prefetch = 0 : i64, scratch_operands = 0 : i64, tpu.core_type = #tpu.core_type<tc>, window_params = [{transform_indices = @transform_0, window_bounds = array<i64: 1, 1, 18, 18, 16>}, {pipeline_mode = #tpu.pipeline_mode<synchronous>, transform_indices = @transform_1, window_bounds = array<i64: 144, 128>}, {pipeline_mode = #tpu.pipeline_mode<synchronous>, transform_indices = @transform_2, window_bounds = array<i64: 1, 128>}, {transform_indices = @transform_3, window_bounds = array<i64: 1, 16, 16, 128>}]} {
    %c128_i32 = arith.constant 128 : i32
    %0 = arith.muli %arg2, %c128_i32 : i32
    %1 = tpu.assume_multiple %0, 128 : i32
    %cst = arith.constant 0.000000e+00 : f32
    %2 = vector.broadcast %cst : f32 to vector<256x128xf32>
    %c0 = arith.constant 0 : index
    %c0_0 = arith.constant 0 : index
    %c0_1 = arith.constant 0 : index
    %c0_2 = arith.constant 0 : index
    %c0_3 = arith.constant 0 : index
    %3 = vector.load %arg3[%c0, %c0_0, %c0_1, %c0_2, %c0_3] : memref<1x1x18x18x16xbf16, #tpu.memory_space<vmem>>, vector<1x1x16x16x16xbf16>
    %4 = vector.shape_cast %3 : vector<1x1x16x16x16xbf16> to vector<16x16x16xbf16>
    %5 = vector.shape_cast %4 : vector<16x16x16xbf16> to vector<256x16xbf16>
    %c0_4 = arith.constant 0 : index
    %6 = arith.index_cast %1 : i32 to index
    %7 = vector.load %arg4[%c0_4, %6] : memref<144x128xbf16, #tpu.memory_space<vmem>>, vector<16x128xbf16>
    %cst_5 = arith.constant dense<0.000000e+00> : vector<256x128xf32>
    %8 = tpu.matmul %5, %7, %cst_5 {dimension_numbers = #tpu.dot_dimension_numbers<[1], [0], [0], [1], [0, 0, 1, 1], [], []>} : vector<256x16xbf16>, vector<16x128xbf16>, vector<256x128xf32> -> vector<256x128xf32>
    %9 = arith.addf %2, %8 : vector<256x128xf32>
    %c0_6 = arith.constant 0 : index
    %c0_7 = arith.constant 0 : index
    %c0_8 = arith.constant 0 : index
    %c1 = arith.constant 1 : index
    %c0_9 = arith.constant 0 : index
    %10 = vector.load %arg3[%c0_6, %c0_7, %c0_8, %c1, %c0_9] : memref<1x1x18x18x16xbf16, #tpu.memory_space<vmem>>, vector<1x1x16x16x16xbf16>
    %11 = vector.shape_cast %10 : vector<1x1x16x16x16xbf16> to vector<16x16x16xbf16>
    %12 = vector.shape_cast %11 : vector<16x16x16xbf16> to vector<256x16xbf16>
    %c16 = arith.constant 16 : index
    %13 = arith.index_cast %1 : i32 to index
    %14 = vector.load %arg4[%c16, %13] : memref<144x128xbf16, #tpu.memory_space<vmem>>, vector<16x128xbf16>
    %cst_10 = arith.constant dense<0.000000e+00> : vector<256x128xf32>
    %15 = tpu.matmul %12, %14, %cst_10 {dimension_numbers = #tpu.dot_dimension_numbers<[1], [0], [0], [1], [0, 0, 1, 1], [], []>} : vector<256x16xbf16>, vector<16x128xbf16>, vector<256x128xf32> -> vector<256x128xf32>
    %16 = arith.addf %9, %15 : vector<256x128xf32>
    %c0_11 = arith.constant 0 : index
    %c0_12 = arith.constant 0 : index
    %c0_13 = arith.constant 0 : index
    %c2 = arith.constant 2 : index
    %c0_14 = arith.constant 0 : index
    %17 = vector.load %arg3[%c0_11, %c0_12, %c0_13, %c2, %c0_14] : memref<1x1x18x18x16xbf16, #tpu.memory_space<vmem>>, vector<1x1x16x16x16xbf16>
    %18 = vector.shape_cast %17 : vector<1x1x16x16x16xbf16> to vector<16x16x16xbf16>
    %19 = vector.shape_cast %18 : vector<16x16x16xbf16> to vector<256x16xbf16>
    %c32 = arith.constant 32 : index
    %20 = arith.index_cast %1 : i32 to index
    %21 = vector.load %arg4[%c32, %20] : memref<144x128xbf16, #tpu.memory_space<vmem>>, vector<16x128xbf16>
    %cst_15 = arith.constant dense<0.000000e+00> : vector<256x128xf32>
    %22 = tpu.matmul %19, %21, %cst_15 {dimension_numbers = #tpu.dot_dimension_numbers<[1], [0], [0], [1], [0, 0, 1, 1], [], []>} : vector<256x16xbf16>, vector<16x128xbf16>, vector<256x128xf32> -> vector<256x128xf32>
    %23 = arith.addf %16, %22 : vector<256x128xf32>
    %c0_16 = arith.constant 0 : index
    %c0_17 = arith.constant 0 : index
    %c1_18 = arith.constant 1 : index
    %c0_19 = arith.constant 0 : index
    %c0_20 = arith.constant 0 : index
    %24 = vector.load %arg3[%c0_16, %c0_17, %c1_18, %c0_19, %c0_20] : memref<1x1x18x18x16xbf16, #tpu.memory_space<vmem>>, vector<1x1x16x16x16xbf16>
    %25 = vector.shape_cast %24 : vector<1x1x16x16x16xbf16> to vector<16x16x16xbf16>
    %26 = vector.shape_cast %25 : vector<16x16x16xbf16> to vector<256x16xbf16>
    %c48 = arith.constant 48 : index
    %27 = arith.index_cast %1 : i32 to index
    %28 = vector.load %arg4[%c48, %27] : memref<144x128xbf16, #tpu.memory_space<vmem>>, vector<16x128xbf16>
    %cst_21 = arith.constant dense<0.000000e+00> : vector<256x128xf32>
    %29 = tpu.matmul %26, %28, %cst_21 {dimension_numbers = #tpu.dot_dimension_numbers<[1], [0], [0], [1], [0, 0, 1, 1], [], []>} : vector<256x16xbf16>, vector<16x128xbf16>, vector<256x128xf32> -> vector<256x128xf32>
    %30 = arith.addf %23, %29 : vector<256x128xf32>
    %c0_22 = arith.constant 0 : index
    %c0_23 = arith.constant 0 : index
    %c1_24 = arith.constant 1 : index
    %c1_25 = arith.constant 1 : index
    %c0_26 = arith.constant 0 : index
    %31 = vector.load %arg3[%c0_22, %c0_23, %c1_24, %c1_25, %c0_26] : memref<1x1x18x18x16xbf16, #tpu.memory_space<vmem>>, vector<1x1x16x16x16xbf16>
    %32 = vector.shape_cast %31 : vector<1x1x16x16x16xbf16> to vector<16x16x16xbf16>
    %33 = vector.shape_cast %32 : vector<16x16x16xbf16> to vector<256x16xbf16>
    %c64 = arith.constant 64 : index
    %34 = arith.index_cast %1 : i32 to index
    %35 = vector.load %arg4[%c64, %34] : memref<144x128xbf16, #tpu.memory_space<vmem>>, vector<16x128xbf16>
    %cst_27 = arith.constant dense<0.000000e+00> : vector<256x128xf32>
    %36 = tpu.matmul %33, %35, %cst_27 {dimension_numbers = #tpu.dot_dimension_numbers<[1], [0], [0], [1], [0, 0, 1, 1], [], []>} : vector<256x16xbf16>, vector<16x128xbf16>, vector<256x128xf32> -> vector<256x128xf32>
    %37 = arith.addf %30, %36 : vector<256x128xf32>
    %c0_28 = arith.constant 0 : index
    %c0_29 = arith.constant 0 : index
    %c1_30 = arith.constant 1 : index
    %c2_31 = arith.constant 2 : index
    %c0_32 = arith.constant 0 : index
    %38 = vector.load %arg3[%c0_28, %c0_29, %c1_30, %c2_31, %c0_32] : memref<1x1x18x18x16xbf16, #tpu.memory_space<vmem>>, vector<1x1x16x16x16xbf16>
    %39 = vector.shape_cast %38 : vector<1x1x16x16x16xbf16> to vector<16x16x16xbf16>
    %40 = vector.shape_cast %39 : vector<16x16x16xbf16> to vector<256x16xbf16>
    %c80 = arith.constant 80 : index
    %41 = arith.index_cast %1 : i32 to index
    %42 = vector.load %arg4[%c80, %41] : memref<144x128xbf16, #tpu.memory_space<vmem>>, vector<16x128xbf16>
    %cst_33 = arith.constant dense<0.000000e+00> : vector<256x128xf32>
    %43 = tpu.matmul %40, %42, %cst_33 {dimension_numbers = #tpu.dot_dimension_numbers<[1], [0], [0], [1], [0, 0, 1, 1], [], []>} : vector<256x16xbf16>, vector<16x128xbf16>, vector<256x128xf32> -> vector<256x128xf32>
    %44 = arith.addf %37, %43 : vector<256x128xf32>
    %c0_34 = arith.constant 0 : index
    %c0_35 = arith.constant 0 : index
    %c2_36 = arith.constant 2 : index
    %c0_37 = arith.constant 0 : index
    %c0_38 = arith.constant 0 : index
    %45 = vector.load %arg3[%c0_34, %c0_35, %c2_36, %c0_37, %c0_38] : memref<1x1x18x18x16xbf16, #tpu.memory_space<vmem>>, vector<1x1x16x16x16xbf16>
    %46 = vector.shape_cast %45 : vector<1x1x16x16x16xbf16> to vector<16x16x16xbf16>
    %47 = vector.shape_cast %46 : vector<16x16x16xbf16> to vector<256x16xbf16>
    %c96 = arith.constant 96 : index
    %48 = arith.index_cast %1 : i32 to index
    %49 = vector.load %arg4[%c96, %48] : memref<144x128xbf16, #tpu.memory_space<vmem>>, vector<16x128xbf16>
    %cst_39 = arith.constant dense<0.000000e+00> : vector<256x128xf32>
    %50 = tpu.matmul %47, %49, %cst_39 {dimension_numbers = #tpu.dot_dimension_numbers<[1], [0], [0], [1], [0, 0, 1, 1], [], []>} : vector<256x16xbf16>, vector<16x128xbf16>, vector<256x128xf32> -> vector<256x128xf32>
    %51 = arith.addf %44, %50 : vector<256x128xf32>
    %c0_40 = arith.constant 0 : index
    %c0_41 = arith.constant 0 : index
    %c2_42 = arith.constant 2 : index
    %c1_43 = arith.constant 1 : index
    %c0_44 = arith.constant 0 : index
    %52 = vector.load %arg3[%c0_40, %c0_41, %c2_42, %c1_43, %c0_44] : memref<1x1x18x18x16xbf16, #tpu.memory_space<vmem>>, vector<1x1x16x16x16xbf16>
    %53 = vector.shape_cast %52 : vector<1x1x16x16x16xbf16> to vector<16x16x16xbf16>
    %54 = vector.shape_cast %53 : vector<16x16x16xbf16> to vector<256x16xbf16>
    %c112 = arith.constant 112 : index
    %55 = arith.index_cast %1 : i32 to index
    %56 = vector.load %arg4[%c112, %55] : memref<144x128xbf16, #tpu.memory_space<vmem>>, vector<16x128xbf16>
    %cst_45 = arith.constant dense<0.000000e+00> : vector<256x128xf32>
    %57 = tpu.matmul %54, %56, %cst_45 {dimension_numbers = #tpu.dot_dimension_numbers<[1], [0], [0], [1], [0, 0, 1, 1], [], []>} : vector<256x16xbf16>, vector<16x128xbf16>, vector<256x128xf32> -> vector<256x128xf32>
    %58 = arith.addf %51, %57 : vector<256x128xf32>
    %c0_46 = arith.constant 0 : index
    %c0_47 = arith.constant 0 : index
    %c2_48 = arith.constant 2 : index
    %c2_49 = arith.constant 2 : index
    %c0_50 = arith.constant 0 : index
    %59 = vector.load %arg3[%c0_46, %c0_47, %c2_48, %c2_49, %c0_50] : memref<1x1x18x18x16xbf16, #tpu.memory_space<vmem>>, vector<1x1x16x16x16xbf16>
    %60 = vector.shape_cast %59 : vector<1x1x16x16x16xbf16> to vector<16x16x16xbf16>
    %61 = vector.shape_cast %60 : vector<16x16x16xbf16> to vector<256x16xbf16>
    %c128 = arith.constant 128 : index
    %62 = arith.index_cast %1 : i32 to index
    %63 = vector.load %arg4[%c128, %62] : memref<144x128xbf16, #tpu.memory_space<vmem>>, vector<16x128xbf16>
    %cst_51 = arith.constant dense<0.000000e+00> : vector<256x128xf32>
    %64 = tpu.matmul %61, %63, %cst_51 {dimension_numbers = #tpu.dot_dimension_numbers<[1], [0], [0], [1], [0, 0, 1, 1], [], []>} : vector<256x16xbf16>, vector<16x128xbf16>, vector<256x128xf32> -> vector<256x128xf32>
    %65 = arith.addf %58, %64 : vector<256x128xf32>
    %c0_52 = arith.constant 0 : index
    %66 = arith.index_cast %1 : i32 to index
    %67 = vector.load %arg5[%c0_52, %66] : memref<1x128xf32, #tpu.memory_space<vmem>>, vector<1x128xf32>
    %68 = vector.broadcast %67 : vector<1x128xf32> to vector<256x128xf32>
    %69 = arith.addf %65, %68 : vector<256x128xf32>
    %cst_53 = arith.constant 0.000000e+00 : f32
    %70 = vector.broadcast %cst_53 : f32 to vector<256x128xf32>
    %71 = arith.subf %70, %69 : vector<256x128xf32>
    %72 = math.exp %71 : vector<256x128xf32>
    %cst_54 = arith.constant 1.000000e+00 : f32
    %73 = vector.broadcast %cst_54 : f32 to vector<256x128xf32>
    %74 = arith.addf %73, %72 : vector<256x128xf32>
    %75 = tpu.reciprocal %74 {approx = true} : vector<256x128xf32> -> vector<256x128xf32>
    %76 = arith.mulf %69, %75 : vector<256x128xf32>
    %77 = vector.shape_cast %76 : vector<256x128xf32> to vector<16x16x128xf32>
    %c0_55 = arith.constant 0 : index
    %c0_56 = arith.constant 0 : index
    %c0_57 = arith.constant 0 : index
    %c0_58 = arith.constant 0 : index
    %78 = vector.load %arg6[%c0_55, %c0_56, %c0_57, %c0_58] : memref<1x16x16x128xf32, #tpu.memory_space<vmem>>, vector<1x16x16x128xf32>
    %79 = vector.shape_cast %78 : vector<1x16x16x128xf32> to vector<16x16x128xf32>
    %80 = vector.shape_cast %77 : vector<16x16x128xf32> to vector<1x16x16x128xf32>
    tpu.vector_store %arg6[%c0_55, %c0_56, %c0_57, %c0_58], %80 {strides = array<i32>} : memref<1x16x16x128xf32, #tpu.memory_space<vmem>>, vector<1x16x16x128xf32>,
    return
  }
  func.func @transform_0(%arg0: i32, %arg1: i32, %arg2: i32) -> (i32, i32, i32, i32, i32) {
    %c0_i32 = arith.constant 0 : i32
    %c0_i32_0 = arith.constant 0 : i32
    %c0_i32_1 = arith.constant 0 : i32
    %c0_i32_2 = arith.constant 0 : i32
    return %arg0, %arg1, %c0_i32, %c0_i32_0, %c0_i32_1 : i32, i32, i32, i32, i32
  }
  func.func @transform_1(%arg0: i32, %arg1: i32, %arg2: i32) -> (i32, i32) {
    %c0_i32 = arith.constant 0 : i32
    %c0_i32_0 = arith.constant 0 : i32
    %c0_i32_1 = arith.constant 0 : i32
    return %c0_i32, %c0_i32_0 : i32, i32
  }
  func.func @transform_2(%arg0: i32, %arg1: i32, %arg2: i32) -> (i32, i32) {
    %c0_i32 = arith.constant 0 : i32
    %c0_i32_0 = arith.constant 0 : i32
    %c0_i32_1 = arith.constant 0 : i32
    return %c0_i32, %c0_i32_0 : i32, i32
  }
  func.func @transform_3(%arg0: i32, %arg1: i32, %arg2: i32) -> (i32, i32, i32, i32) {
    %c0_i32 = arith.constant 0 : i32
    %c0_i32_0 = arith.constant 0 : i32
    return %arg0, %arg1, %c0_i32, %arg2 : i32, i32, i32, i32
  }
}

</mosaic_0001>

<llo_original>
// kernel: tpu_custom_call.1
$region0: #{tpu_custom_call.1}
  #allocation0 [shape = 'u32[]', space=smem, size = 0x4, offset = 0x4, fixed_abs, tag = 'smem constant byte address 0x4 - core index']
  #allocation1 [shape = 'u32[144,128]{1,0:T(1,128)}', space=vmem, size = 0x12000, scoped, tag = 'internal scratch']
  %s0 = inlined_call_operand.vmem [shape: bf16[2,1,18,18,16], index: 0, kind: input, shape index: {}]
  %s1 = inlined_call_operand.vmem [shape: bf16[144,128], index: 1, kind: input, shape index: {}]
  %s2 = inlined_call_operand.vmem [shape: f32[1,128], index: 2, kind: input, shape index: {}]
  %s3 = inlined_call_operand.hbm [shape: f32[2,16,16,128], index: 3, kind: output, shape index: {}]
  %s4 = sld [smem:[#allocation0]]
  $region45: #{tpu_custom_call.1} parent=0
    _
  %s6 = ssub.s32 1, %s4
  %s7 = scalar_select 0, %s6, %s4
  $region1: #{tpu_custom_call.1} parent=0
    #allocation2 [shape = 'u8[262144]{0}', space=vmem, size = 0x40000, scoped, tag = 'output window, operand 0']
    #allocation3 [shape = 's32[2]{0}', space=sflag, size = 0x8, scoped, tag = 'scoped memory for tpu_custom_call.1']
    %8 = vsyncpa [#allocation3], 0
    %s9 = scalar_lea.sflag [#allocation3], 1
    %10 = vsyncpa %s9, 0
    loop: start=0, step=1, limit=4
    $region2: #{tpu_custom_call.1} parent=1 // loop_pre_header
      _
    $region3: #{tpu_custom_call.1} parent=1 // loop_header
      %s12 = sphi 0, %s16
      %p13 = scmp.ge.s32.totalorder %s12, 4
      %s19 = sphi 0, %s38
      %s20 = sphi 0, %s34
      %s21 = sphi 0, %s30
      %s22 = sphi 0, %s19
      %s23 = sphi 0, %s20
      %s24 = sphi 0, %s21
      %s25 = sphi 0, %s22
      %s26 = sphi 0, %s23
      %s27 = sphi 0, %s24
      %s43 = sphi 0, %s45
      %s46 = sphi 0, %s43
      %s47 = sphi 0, %s46
      %s63 = sphi 0, %s47
      %s67 = sphi 0, %s67
      %s69 = sphi 0, %s67
      %s70 = sphi 0, %s69
      %s84 = sphi 0, %s70
      %s88 = sphi 0, %s88
      %s90 = sphi 0, %s88
      %s91 = sphi 0, %s90
      %s105 = sphi 0, %s91
      %s115 = sphi 0, %s117
      %s118 = sphi 0, %s115
      %s119 = sphi 0, %s118
      %s135 = sphi 0, %s119
    $region4: #{tpu_custom_call.1} parent=1 // loop_header_branch
      %15 = sbr.rel (%p13) target = $region8
    $region5: #{tpu_custom_call.1} parent=1 // loop_body
      %s17 = ssub.s32 %s12, 1
      %s18 = ssub.s32 %s12, 2
      %s28 = sadd.s32 1, %s21
      %p29 = scmp.ge.s32.totalorder %s28, 1
      %s30 = scalar_select %p29, 0, %s28
      %s31 = sadd.s32 1, %s20
      %s32 = scalar_select %p29, %s31, %s20
      %p33 = scmp.ge.s32.totalorder %s32, 1
      %s34 = scalar_select %p33, 0, %s32
      %s35 = sadd.s32 1, %s19
      %s36 = scalar_select %p33, %s35, %s19
      %p37 = scmp.ge.s32.totalorder %s36, 2
      %s38 = scalar_select %p37, 0, %s36
      %s39 = ssub.s32 %s19, %s38
      %s40 = ssub.s32 %s20, %s34
      %s41 = sor.u32 %s39, %s40
      %p42 = scmp.eq.s32.totalorder %s41, 0
      %s44 = sadd.s32 %s43, 1
      %s45 = scalar_select %p42, %s43, %s44
      %p48 = pneg %p42
      %p49 = scmp.eq.s32.totalorder %s12, 1
      %p50 = por %p48, %p49
      %p51 = scmp.ne.s32.totalorder %s43, %s46
      %p52 = scmp.eq.s32.totalorder %s12, 0
      %p53 = por %p51, %p52
      %p54 = scmp.ne.s32.totalorder %s43, %s46
      %p55 = scmp.eq.s32.totalorder %s17, 1
      %p56 = por %p54, %p55
      %p57 = scmp.ne.s32.totalorder %s46, %s47
      %p58 = scmp.eq.s32.totalorder %s17, 0
      %p59 = por %p57, %p58
      %p60 = scmp.ne.s32.totalorder %s46, %s47
      %p61 = scmp.eq.s32.totalorder %s18, 1
      %p62 = por %p60, %p61
      %p64 = scmp.ne.s32.totalorder %s47, %s63
      %p65 = scmp.eq.s32.totalorder %s18, 0
      %p66 = por %p64, %p65
      %s68 = sadd.s32 %s67, 1
      %p71 = scmp.eq.s32.totalorder %s12, 1
      %p72 = scmp.ne.s32.totalorder %s67, %s69
      %p73 = scmp.eq.s32.totalorder %s12, 0
      %p74 = por %p72, %p73
      %p75 = scmp.ne.s32.totalorder %s67, %s69
      %p76 = scmp.eq.s32.totalorder %s17, 1
      %p77 = por %p75, %p76
      %p78 = scmp.ne.s32.totalorder %s69, %s70
      %p79 = scmp.eq.s32.totalorder %s17, 0
      %p80 = por %p78, %p79
      %p81 = scmp.ne.s32.totalorder %s69, %s70
      %p82 = scmp.eq.s32.totalorder %s18, 1
      %p83 = por %p81, %p82
      %p85 = scmp.ne.s32.totalorder %s70, %s84
      %p86 = scmp.eq.s32.totalorder %s18, 0
      %p87 = por %p85, %p86
      %s89 = sadd.s32 %s88, 1
      %p92 = scmp.eq.s32.totalorder %s12, 1
      %p93 = scmp.ne.s32.totalorder %s88, %s90
      %p94 = scmp.eq.s32.totalorder %s12, 0
      %p95 = por %p93, %p94
      %p96 = scmp.ne.s32.totalorder %s88, %s90
      %p97 = scmp.eq.s32.totalorder %s17, 1
      %p98 = por %p96, %p97
      %p99 = scmp.ne.s32.totalorder %s90, %s91
      %p100 = scmp.eq.s32.totalorder %s17, 0
      %p101 = por %p99, %p100
      %p102 = scmp.ne.s32.totalorder %s90, %s91
      %p103 = scmp.eq.s32.totalorder %s18, 1
      %p104 = por %p102, %p103
      %p106 = scmp.ne.s32.totalorder %s91, %s105
      %p107 = scmp.eq.s32.totalorder %s18, 0
      %p108 = por %p106, %p107
      %s109 = ssub.s32 %s19, %s38
      %s110 = ssub.s32 %s20, %s34
      %s111 = sor.u32 %s109, %s110
      %s112 = ssub.s32 %s21, %s30
      %s113 = sor.u32 %s111, %s112
      %p114 = scmp.eq.s32.totalorder %s113, 0
      %s116 = sadd.s32 %s115, 1
      %s117 = scalar_select %p114, %s115, %s116
      %p120 = pneg %p114
      %p121 = scmp.eq.s32.totalorder %s12, 1
      %p122 = por %p120, %p121
      %p123 = scmp.ne.s32.totalorder %s115, %s118
      %p124 = scmp.eq.s32.totalorder %s12, 0
      %p125 = por %p123, %p124
      %p126 = scmp.ne.s32.totalorder %s115, %s118
      %p127 = scmp.eq.s32.totalorder %s17, 1
      %p128 = por %p126, %p127
      %p129 = scmp.ne.s32.totalorder %s118, %s119
      %p130 = scmp.eq.s32.totalorder %s17, 0
      %p131 = por %p129, %p130
      %p132 = scmp.ne.s32.totalorder %s118, %s119
      %p133 = scmp.eq.s32.totalorder %s18, 1
      %p134 = por %p132, %p133
      %p136 = scmp.ne.s32.totalorder %s119, %s135
      %p137 = scmp.eq.s32.totalorder %s18, 0
      %p138 = por %p136, %p137
      %p139 = scmp.le.s32.totalorder 1, %s12
      %p140 = scmp.lt.s32.totalorder %s12, 3
      %p141 = pnand %p139, %p140
      %p142 = pneg %p141
      // Predicated region
      $region9: #{tpu_custom_call.1} parent=5 // pred_check
        _
      $region10: #{tpu_custom_call.1} parent=5 // pred_check_branch
        %144 = sbr.rel (%p141) target = $region12
      $region11: #{tpu_custom_call.1} parent=5 // pred_region
        %s145 = ssub.s32 %s12, 1
        // Predicated region
        $region13: #{tpu_custom_call.1} parent=11 // pred_check
          %p146 = pneg %p80
        $region14: #{tpu_custom_call.1} parent=11 // pred_check_branch
          %148 = sbr.rel (%p146) target = $region16
        $region15: #{tpu_custom_call.1} parent=11 // pred_region
          _
        $region16: #{tpu_custom_call.1} parent=11 // pred_fallthru
          _
        // Predicated region
        $region17: #{tpu_custom_call.1} parent=11 // pred_check
          %p149 = pneg %p101
        $region18: #{tpu_custom_call.1} parent=11 // pred_check_branch
          %151 = sbr.rel (%p149) target = $region20
        $region19: #{tpu_custom_call.1} parent=11 // pred_region
          _
        $region20: #{tpu_custom_call.1} parent=11 // pred_fallthru
          _
      $region12: #{tpu_custom_call.1} parent=5 // pred_fallthru
        _
      %p152 = scmp.lt.s32.totalorder %s12, 2
      // Predicated region
      $region21: #{tpu_custom_call.1} parent=5 // pred_check
        %p153 = pneg %p152
      $region22: #{tpu_custom_call.1} parent=5 // pred_check_branch
        %155 = sbr.rel (%p153) target = $region24
      $region23: #{tpu_custom_call.1} parent=5 // pred_region
        // Predicated region
        $region25: #{tpu_custom_call.1} parent=23 // pred_check
          %p156 = pneg %p53
        $region26: #{tpu_custom_call.1} parent=23 // pred_check_branch
          %158 = sbr.rel (%p156) target = $region28
        $region27: #{tpu_custom_call.1} parent=23 // pred_region
          %p159 = scmp.lt.s32.totalorder %s19, 1
          %s160 = scalar_select %p159, %s19, 1
          %p161 = scmp.lt.s32.totalorder %s20, 0
          %s162 = scalar_select %p161, %s20, 0
          %s163 = smul.addr %s162, 54
          %s164 = smul.addr %s160, 54
          %s165 = sadd.s32 %s163, %s164
          %s166 = smul.addr %s165, 4
          %s167 = scalar_lea.vmem %s0, %s166
        $region28: #{tpu_custom_call.1} parent=23 // pred_fallthru
          _
      $region24: #{tpu_custom_call.1} parent=5 // pred_fallthru
        _
      %p168 = scmp.le.s32.totalorder 1, %s12
      %p169 = scmp.lt.s32.totalorder %s12, 3
      %p170 = pnand %p168, %p169
      %p171 = pneg %p170
      // Predicated region
      $region29: #{tpu_custom_call.1} parent=5 // pred_check
        _
      $region30: #{tpu_custom_call.1} parent=5 // pred_check_branch
        %173 = sbr.rel (%p170) target = $region32
      $region31: #{tpu_custom_call.1} parent=5 // pred_region
        %s174 = ssub.s32 %s12, 1
        %p175 = scmp.lt.s32.totalorder %s22, 1
        %s176 = scalar_select %p175, %s22, 1
        %p177 = scmp.lt.s32.totalorder %s23, 0
        %s178 = scalar_select %p177, %s23, 0
        %s179 = smul.addr %s178, 54
        %s180 = smul.addr %s176, 54
        %s181 = sadd.s32 %s179, %s180
        %s182 = smul.addr %s181, 4
        %s183 = scalar_lea.vmem %s0, %s182
        %p184 = pneg %p59
        %p185 = pneg %p56
        %p186 = pneg %p80
        %p187 = pneg %p77
        %p188 = pneg %p101
        %p189 = pneg %p98
        %p190 = pneg %p131
        %p191 = pneg %p128
        %s192 = sand.u32 %s118, 1
        %s193 = scalar_lea.sflag [#allocation3], %s192
        %s194 = sand.u32 %s118, 1
        %s195 = smul.addr %s194, 256
        %s196 = scalar_lea.vmem [#allocation2], %s195
        %p197 = scmp.lt.s32.totalorder %s22, 1
        %s198 = scalar_select %p197, %s22, 1
        %p199 = scmp.lt.s32.totalorder %s23, 0
        %s200 = scalar_select %p199, %s23, 0
        %s201 = smul.addr %s200, 54
        %s202 = smul.addr %s198, 54
        %s203 = sadd.s32 %s201, %s202
        %s204 = smul.addr %s203, 4
        %s205 = scalar_lea.vmem %s0, %s204
        %s206 = smul.u32 16, %s23
        %s208 = smul.u32 %s24, 128
        %v209 = vld [vmem:[%s205] sm:$0xf]
        %v210 = vld [vmem:[%s205 + $0x4] sm:$0xf]
        %v211 = vld [vmem:[%s205 + $0xc] sm:$0xf]
        %v212 = vld [vmem:[%s205 + $0x10] sm:$0xf]
        %v213 = vld [vmem:[%s205 + $0x18] sm:$0xf]
        %v214 = vld [vmem:[%s205 + $0x1c] sm:$0xf]
        %v215 = vld [vmem:[%s205 + $0x24] sm:$0xf]
        %v216 = vld [vmem:[%s205 + $0x28] sm:$0xf]
        %v217 = vld [vmem:[%s205 + $0x30] sm:$0xf]
        %v218 = vld [vmem:[%s205 + $0x34] sm:$0xf]
        %v219 = vld [vmem:[%s205 + $0x3c] sm:$0xf]
        %v220 = vld [vmem:[%s205 + $0x40] sm:$0xf]
        %v221 = vld [vmem:[%s205 + $0x48] sm:$0xf]
        %v222 = vld [vmem:[%s205 + $0x4c] sm:$0xf]
        %v223 = vld [vmem:[%s205 + $0x54] sm:$0xf]
        %v224 = vld [vmem:[%s205 + $0x58] sm:$0xf]
        %v225 = vld [vmem:[%s205 + $0x60] sm:$0xf]
        %v226 = vld [vmem:[%s205 + $0x64] sm:$0xf]
        %v227 = vld [vmem:[%s205 + $0x6c] sm:$0xf]
        %v228 = vld [vmem:[%s205 + $0x70] sm:$0xf]
        %v229 = vld [vmem:[%s205 + $0x78] sm:$0xf]
        %v230 = vld [vmem:[%s205 + $0x7c] sm:$0xf]
        %v231 = vld [vmem:[%s205 + $0x84] sm:$0xf]
        %v232 = vld [vmem:[%s205 + $0x88] sm:$0xf]
        %v233 = vld [vmem:[%s205 + $0x90] sm:$0xf]
        %v234 = vld [vmem:[%s205 + $0x94] sm:$0xf]
        %v235 = vld [vmem:[%s205 + $0x9c] sm:$0xf]
        %v236 = vld [vmem:[%s205 + $0xa0] sm:$0xf]
        %v237 = vld [vmem:[%s205 + $0xa8] sm:$0xf]
        %v238 = vld [vmem:[%s205 + $0xac] sm:$0xf]
        %v239 = vld [vmem:[%s205 + $0xb4] sm:$0xf]
        %v240 = vld [vmem:[%s205 + $0xb8] sm:$0xf]
        %s241 = sshra.s32 %s208, 7
        %s242 = sand.u32 %s208, 127
        %s243 = smul.addr %s241, 4
        %s244 = scalar_lea.vmem %s1, %s243
        %v245 = vld [vmem:[%s244] sm:$0xf]
        %v246 = vld [vmem:[%s244 + $0x4] sm:$0xf]
        %v247 = vld [vmem:[%s205 + $0x8] sm:$0x1]
        %v248 = vld [vmem:[%s205 + $0x14] sm:$0x1]
        %v249 = vld [vmem:[%s205 + $0x20] sm:$0x1]
        %v250 = vld [vmem:[%s205 + $0x2c] sm:$0x1]
        %v251 = vld [vmem:[%s205 + $0x38] sm:$0x1]
        %v252 = vld [vmem:[%s205 + $0x44] sm:$0x1]
        %v253 = vld [vmem:[%s205 + $0x50] sm:$0x1]
        %v254 = vld [vmem:[%s205 + $0x5c] sm:$0x1]
        %v255 = vld [vmem:[%s205 + $0x68] sm:$0x1]
        %v256 = vld [vmem:[%s205 + $0x74] sm:$0x1]
        %v257 = vld [vmem:[%s205 + $0x80] sm:$0x1]
        %v258 = vld [vmem:[%s205 + $0x8c] sm:$0x1]
        %v259 = vld [vmem:[%s205 + $0x98] sm:$0x1]
        %v260 = vld [vmem:[%s205 + $0xa4] sm:$0x1]
        %v261 = vld [vmem:[%s205 + $0xb0] sm:$0x1]
        %v262 = vld [vmem:[%s205 + $0xbc] sm:$0x1]
        %vm263 = vsmask.f32 3328
        %vm264 = vsmask.f32 7440
        %vm265 = vmor %vm263, %vm264
        %v267 = vshrl.u32 %v209, 16
        %v269 = vrot.slane %v267, 4
        %v270 = vshll.u32 %v209, 16
        %v272 = vrot.slane %v270, 5
        %v273 = vor.u32 %v269, %v272
        %v274 = vrot.slane %v273, 4
        %v276 = vshll.u32 %v210, 16
        %v278 = vrot.slane %v276, 5
        %v279 = vsel %vm265, %v274, %v278
        %v280 = vshrl.u32 %v210, 16
        %v282 = vrot.slane %v280, 4
        %v283 = vor.u32 %v282, %v278
        %v284 = vrot.slane %v283, 4
        %v286 = vshll.u32 %v247, 16
        %v288 = vrot.slane %v286, 5
        %v289 = vsel %vm265, %v284, %v288
        %v291 = vshrl.u32 %v211, 16
        %v293 = vrot.slane %v291, 4
        %v294 = vshll.u32 %v211, 16
        %v296 = vrot.slane %v294, 5
        %v297 = vor.u32 %v293, %v296
        %v298 = vrot.slane %v297, 4
        %v300 = vshll.u32 %v212, 16
        %v302 = vrot.slane %v300, 5
        %v303 = vsel %vm265, %v298, %v302
        %v304 = vshrl.u32 %v212, 16
        %v306 = vrot.slane %v304, 4
        %v307 = vor.u32 %v306, %v302
        %v308 = vrot.slane %v307, 4
        %v310 = vshll.u32 %v248, 16
        %v312 = vrot.slane %v310, 5
        %v313 = vsel %vm265, %v308, %v312
        %v315 = vshrl.u32 %v213, 16
        %v317 = vrot.slane %v315, 4
        %v318 = vshll.u32 %v213, 16
        %v320 = vrot.slane %v318, 5
        %v321 = vor.u32 %v317, %v320
        %v322 = vrot.slane %v321, 4
        %v324 = vshll.u32 %v214, 16
        %v326 = vrot.slane %v324, 5
        %v327 = vsel %vm265, %v322, %v326
        %v328 = vshrl.u32 %v214, 16
        %v330 = vrot.slane %v328, 4
        %v331 = vor.u32 %v330, %v326
        %v332 = vrot.slane %v331, 4
        %v334 = vshll.u32 %v249, 16
        %v336 = vrot.slane %v334, 5
        %v337 = vsel %vm265, %v332, %v336
        %v339 = vshrl.u32 %v215, 16
        %v341 = vrot.slane %v339, 4
        %v342 = vshll.u32 %v215, 16
        %v344 = vrot.slane %v342, 5
        %v345 = vor.u32 %v341, %v344
        %v346 = vrot.slane %v345, 4
        %v348 = vshll.u32 %v216, 16
        %v350 = vrot.slane %v348, 5
        %v351 = vsel %vm265, %v346, %v350
        %v352 = vshrl.u32 %v216, 16
        %v354 = vrot.slane %v352, 4
        %v355 = vor.u32 %v354, %v350
        %v356 = vrot.slane %v355, 4
        %v358 = vshll.u32 %v250, 16
        %v360 = vrot.slane %v358, 5
        %v361 = vsel %vm265, %v356, %v360
        %v363 = vshrl.u32 %v217, 16
        %v365 = vrot.slane %v363, 4
        %v366 = vshll.u32 %v217, 16
        %v368 = vrot.slane %v366, 5
        %v369 = vor.u32 %v365, %v368
        %v370 = vrot.slane %v369, 4
        %v372 = vshll.u32 %v218, 16
        %v374 = vrot.slane %v372, 5
        %v375 = vsel %vm265, %v370, %v374
        %v376 = vshrl.u32 %v218, 16
        %v378 = vrot.slane %v376, 4
        %v379 = vor.u32 %v378, %v374
        %v380 = vrot.slane %v379, 4
        %v382 = vshll.u32 %v251, 16
        %v384 = vrot.slane %v382, 5
        %v385 = vsel %vm265, %v380, %v384
        %v387 = vshrl.u32 %v219, 16
        %v389 = vrot.slane %v387, 4
        %v390 = vshll.u32 %v219, 16
        %v392 = vrot.slane %v390, 5
        %v393 = vor.u32 %v389, %v392
        %v394 = vrot.slane %v393, 4
        %v396 = vshll.u32 %v220, 16
        %v398 = vrot.slane %v396, 5
        %v399 = vsel %vm265, %v394, %v398
        %v400 = vshrl.u32 %v220, 16
        %v402 = vrot.slane %v400, 4
        %v403 = vor.u32 %v402, %v398
        %v404 = vrot.slane %v403, 4
        %v406 = vshll.u32 %v252, 16
        %v408 = vrot.slane %v406, 5
        %v409 = vsel %vm265, %v404, %v408
        %v411 = vshrl.u32 %v221, 16
        %v413 = vrot.slane %v411, 4
        %v414 = vshll.u32 %v221, 16
        %v416 = vrot.slane %v414, 5
        %v417 = vor.u32 %v413, %v416
        %v418 = vrot.slane %v417, 4
        %v420 = vshll.u32 %v222, 16
        %v422 = vrot.slane %v420, 5
        %v423 = vsel %vm265, %v418, %v422
        %v424 = vshrl.u32 %v222, 16
        %v426 = vrot.slane %v424, 4
        %v427 = vor.u32 %v426, %v422
        %v428 = vrot.slane %v427, 4
        %v430 = vshll.u32 %v253, 16
        %v432 = vrot.slane %v430, 5
        %v433 = vsel %vm265, %v428, %v432
        %v435 = vshrl.u32 %v223, 16
        %v437 = vrot.slane %v435, 4
        %v438 = vshll.u32 %v223, 16
        %v440 = vrot.slane %v438, 5
        %v441 = vor.u32 %v437, %v440
        %v442 = vrot.slane %v441, 4
        %v444 = vshll.u32 %v224, 16
        %v446 = vrot.slane %v444, 5
        %v447 = vsel %vm265, %v442, %v446
        %v448 = vshrl.u32 %v224, 16
        %v450 = vrot.slane %v448, 4
        %v451 = vor.u32 %v450, %v446
        %v452 = vrot.slane %v451, 4
        %v454 = vshll.u32 %v254, 16
        %v456 = vrot.slane %v454, 5
        %v457 = vsel %vm265, %v452, %v456
        %v459 = vshrl.u32 %v225, 16
        %v461 = vrot.slane %v459, 4
        %v462 = vshll.u32 %v225, 16
        %v464 = vrot.slane %v462, 5
        %v465 = vor.u32 %v461, %v464
        %v466 = vrot.slane %v465, 4
        %v468 = vshll.u32 %v226, 16
        %v470 = vrot.slane %v468, 5
        %v471 = vsel %vm265, %v466, %v470
        %v472 = vshrl.u32 %v226, 16
        %v474 = vrot.slane %v472, 4
        %v475 = vor.u32 %v474, %v470
        %v476 = vrot.slane %v475, 4
        %v478 = vshll.u32 %v255, 16
        %v480 = vrot.slane %v478, 5
        %v481 = vsel %vm265, %v476, %v480
        %v483 = vshrl.u32 %v227, 16
        %v485 = vrot.slane %v483, 4
        %v486 = vshll.u32 %v227, 16
        %v488 = vrot.slane %v486, 5
        %v489 = vor.u32 %v485, %v488
        %v490 = vrot.slane %v489, 4
        %v492 = vshll.u32 %v228, 16
        %v494 = vrot.slane %v492, 5
        %v495 = vsel %vm265, %v490, %v494
        %v496 = vshrl.u32 %v228, 16
        %v498 = vrot.slane %v496, 4
        %v499 = vor.u32 %v498, %v494
        %v500 = vrot.slane %v499, 4
        %v502 = vshll.u32 %v256, 16
        %v504 = vrot.slane %v502, 5
        %v505 = vsel %vm265, %v500, %v504
        %v507 = vshrl.u32 %v229, 16
        %v509 = vrot.slane %v507, 4
        %v510 = vshll.u32 %v229, 16
        %v512 = vrot.slane %v510, 5
        %v513 = vor.u32 %v509, %v512
        %v514 = vrot.slane %v513, 4
        %v516 = vshll.u32 %v230, 16
        %v518 = vrot.slane %v516, 5
        %v519 = vsel %vm265, %v514, %v518
        %v520 = vshrl.u32 %v230, 16
        %v522 = vrot.slane %v520, 4
        %v523 = vor.u32 %v522, %v518
        %v524 = vrot.slane %v523, 4
        %v526 = vshll.u32 %v257, 16
        %v528 = vrot.slane %v526, 5
        %v529 = vsel %vm265, %v524, %v528
        %v531 = vshrl.u32 %v231, 16
        %v533 = vrot.slane %v531, 4
        %v534 = vshll.u32 %v231, 16
        %v536 = vrot.slane %v534, 5
        %v537 = vor.u32 %v533, %v536
        %v538 = vrot.slane %v537, 4
        %v540 = vshll.u32 %v232, 16
        %v542 = vrot.slane %v540, 5
        %v543 = vsel %vm265, %v538, %v542
        %v544 = vshrl.u32 %v232, 16
        %v546 = vrot.slane %v544, 4
        %v547 = vor.u32 %v546, %v542
        %v548 = vrot.slane %v547, 4
        %v550 = vshll.u32 %v258, 16
        %v552 = vrot.slane %v550, 5
        %v553 = vsel %vm265, %v548, %v552
        %v555 = vshrl.u32 %v233, 16
        %v557 = vrot.slane %v555, 4
        %v558 = vshll.u32 %v233, 16
        %v560 = vrot.slane %v558, 5
        %v561 = vor.u32 %v557, %v560
        %v562 = vrot.slane %v561, 4
        %v564 = vshll.u32 %v234, 16
        %v566 = vrot.slane %v564, 5
        %v567 = vsel %vm265, %v562, %v566
        %v568 = vshrl.u32 %v234, 16
        %v570 = vrot.slane %v568, 4
        %v571 = vor.u32 %v570, %v566
        %v572 = vrot.slane %v571, 4
        %v574 = vshll.u32 %v259, 16
        %v576 = vrot.slane %v574, 5
        %v577 = vsel %vm265, %v572, %v576
        %v579 = vshrl.u32 %v235, 16
        %v581 = vrot.slane %v579, 4
        %v582 = vshll.u32 %v235, 16
        %v584 = vrot.slane %v582, 5
        %v585 = vor.u32 %v581, %v584
        %v586 = vrot.slane %v585, 4
        %v588 = vshll.u32 %v236, 16
        %v590 = vrot.slane %v588, 5
        %v591 = vsel %vm265, %v586, %v590
        %v592 = vshrl.u32 %v236, 16
        %v594 = vrot.slane %v592, 4
        %v595 = vor.u32 %v594, %v590
        %v596 = vrot.slane %v595, 4
        %v598 = vshll.u32 %v260, 16
        %v600 = vrot.slane %v598, 5
        %v601 = vsel %vm265, %v596, %v600
        %v603 = vshrl.u32 %v237, 16
        %v605 = vrot.slane %v603, 4
        %v606 = vshll.u32 %v237, 16
        %v608 = vrot.slane %v606, 5
        %v609 = vor.u32 %v605, %v608
        %v610 = vrot.slane %v609, 4
        %v612 = vshll.u32 %v238, 16
        %v614 = vrot.slane %v612, 5
        %v615 = vsel %vm265, %v610, %v614
        %v616 = vshrl.u32 %v238, 16
        %v618 = vrot.slane %v616, 4
        %v619 = vor.u32 %v618, %v614
        %v620 = vrot.slane %v619, 4
        %v622 = vshll.u32 %v261, 16
        %v624 = vrot.slane %v622, 5
        %v625 = vsel %vm265, %v620, %v624
        %v627 = vshrl.u32 %v239, 16
        %v629 = vrot.slane %v627, 4
        %v630 = vshll.u32 %v239, 16
        %v632 = vrot.slane %v630, 5
        %v633 = vor.u32 %v629, %v632
        %v634 = vrot.slane %v633, 4
        %v636 = vshll.u32 %v240, 16
        %v638 = vrot.slane %v636, 5
        %v639 = vsel %vm265, %v634, %v638
        %v640 = vshrl.u32 %v240, 16
        %v642 = vrot.slane %v640, 4
        %v643 = vor.u32 %v642, %v638
        %v644 = vrot.slane %v643, 4
        %v646 = vshll.u32 %v262, 16
        %v648 = vrot.slane %v646, 5
        %v649 = vsel %vm265, %v644, %v648
        %v650 = vld [vmem:[%s244 + $0x8] sm:$0xf]
        %v651 = vld [vmem:[%s244 + $0xc] sm:$0xf]
        %v652 = vunpack.c.l.b16 %v279
        %v653 = vunpack.c.l.b16 %v289
        %v654 = vunpack.c.l.b16 %v303
        %v655 = vunpack.c.l.b16 %v313
        %v656 = vunpack.c.l.b16 %v327
        %v657 = vunpack.c.l.b16 %v337
        %v658 = vunpack.c.l.b16 %v351
        %v659 = vunpack.c.l.b16 %v361
        %v660 = vunpack.c.l.b16 %v375
        %v661 = vunpack.c.l.b16 %v385
        %v662 = vunpack.c.l.b16 %v399
        %v663 = vunpack.c.l.b16 %v409
        %v664 = vunpack.c.l.b16 %v423
        %v665 = vunpack.c.l.b16 %v433
        %v666 = vunpack.c.l.b16 %v447
        %v667 = vunpack.c.l.b16 %v457
        %v668 = vunpack.c.l.b16 %v471
        %v669 = vunpack.c.l.b16 %v481
        %v670 = vunpack.c.l.b16 %v495
        %v671 = vunpack.c.l.b16 %v505
        %v672 = vunpack.c.l.b16 %v519
        %v673 = vunpack.c.l.b16 %v529
        %v674 = vunpack.c.l.b16 %v543
        %v675 = vunpack.c.l.b16 %v553
        %v676 = vunpack.c.l.b16 %v567
        %v677 = vunpack.c.l.b16 %v577
        %v678 = vunpack.c.l.b16 %v591
        %v679 = vunpack.c.l.b16 %v601
        %v680 = vunpack.c.l.b16 %v615
        %v681 = vunpack.c.l.b16 %v625
        %v682 = vunpack.c.l.b16 %v639
        %v683 = vunpack.c.l.b16 %v649
        %v684 = vpack.c.b16 %v653, %v652
        %v685 = vpack.c.b16 %v655, %v654
        %v686 = vpack.c.b16 %v657, %v656
        %v687 = vpack.c.b16 %v659, %v658
        %v688 = vpack.c.b16 %v661, %v660
        %v689 = vpack.c.b16 %v663, %v662
        %v690 = vpack.c.b16 %v665, %v664
        %v691 = vpack.c.b16 %v667, %v666
        %v692 = vpack.c.b16 %v669, %v668
        %v693 = vpack.c.b16 %v671, %v670
        %v694 = vpack.c.b16 %v673, %v672
        %v695 = vpack.c.b16 %v675, %v674
        %v696 = vpack.c.b16 %v677, %v676
        %v697 = vpack.c.b16 %v679, %v678
        %v698 = vpack.c.b16 %v681, %v680
        %v699 = vpack.c.b16 %v683, %v682
        %v702 = vunpack.c.l.b16 %v650
        %v703 = vunpack.c.l.b16 %v651
        %v704 = vpack.c.b16 %v703, %v702
        %vm706 = vcmask 130048
        %v708 = vsel %vm706, %v684, 0
        %v711 = vsel %vm706, %v685, 0
        %v714 = vsel %vm706, %v686, 0
        %v717 = vsel %vm706, %v687, 0
        %v720 = vsel %vm706, %v688, 0
        %v723 = vsel %vm706, %v689, 0
        %v726 = vsel %vm706, %v690, 0
        %v729 = vsel %vm706, %v691, 0
        %v732 = vsel %vm706, %v692, 0
        %v735 = vsel %vm706, %v693, 0
        %v738 = vsel %vm706, %v694, 0
        %v741 = vsel %vm706, %v695, 0
        %v744 = vsel %vm706, %v696, 0
        %v747 = vsel %vm706, %v697, 0
        %v750 = vsel %vm706, %v698, 0
        %v753 = vsel %vm706, %v699, 0
        %755 = vmatprep.subr.bf16.mxu0 0
        %756 = vmatpush1.bf16.msra.mxu0 %v704
        %757 = vmatprep.subr.bf16.mxu0 0
        %758 = vmatpush1.bf16.msra.mxu0 0
        %759 = vmatprep.subr.bf16.mxu0 0
        %760 = vmatpush1.bf16.msra.mxu0 0
        %761 = vmatprep.subr.bf16.mxu0 0
        %762 = vmatpush1.bf16.msra.mxu0 0
        %763 = vmatprep.subr.bf16.mxu0 0
        %764 = vmatpush1.bf16.msra.mxu0 0
        %765 = vmatprep.subr.bf16.mxu0 0
        %766 = vmatpush1.bf16.msra.mxu0 0
        %767 = vmatprep.subr.bf16.mxu0 0
        %768 = vmatpush1.bf16.msra.mxu0 0
        %769 = vmatprep.subr.bf16.mxu0 0
        %770 = vmatpush1.bf16.msra.mxu0 0
        %771 = vmatprep.subr.bf16.mxu0 0
        %772 = vmatpush1.bf16.msra.mxu0 0
        %773 = vmatprep.subr.bf16.mxu0 0
        %774 = vmatpush1.bf16.msra.mxu0 0
        %775 = vmatprep.subr.bf16.mxu0 0
        %776 = vmatpush1.bf16.msra.mxu0 0
        %777 = vmatprep.subr.bf16.mxu0 0
        %778 = vmatpush1.bf16.msra.mxu0 0
        %779 = vmatprep.subr.bf16.mxu0 0
        %780 = vmatpush1.bf16.msra.mxu0 0
        %781 = vmatprep.subr.bf16.mxu0 0
        %782 = vmatpush1.bf16.msra.mxu0 0
        %783 = vmatprep.subr.bf16.mxu0 0
        %784 = vmatpush1.bf16.msra.mxu0 0
        %785 = vmatprep.subr.bf16.mxu0 0
        %786 = vmatpush1.bf16.msra.mxu0 0
        %787 = vmatprep.mubr.bf16.mxu0 0
        %788 = vmatmul.mubr.bf16.gmra.mrb[0].mxu0 %v708
        %v789 = vpop.f32.mrb[0].mxu0
        %v790 = vadd.f32 0.0, %v789
        %v791 = vpop.f32.mrb[0].mxu0
        %v792 = vpop.f32.mrb[0].mxu0
        %v793 = vadd.f32 0.0, %v792
        %v794 = vpop.f32.mrb[0].mxu0
        %795 = vmatprep.mubr.bf16.mxu0 0
        %796 = vmatmul.mubr.bf16.gmra.mrb[0].mxu0 %v711
        %v797 = vpop.f32.mrb[0].mxu0
        %v798 = vadd.f32 0.0, %v797
        %v799 = vpop.f32.mrb[0].mxu0
        %v800 = vpop.f32.mrb[0].mxu0
        %v801 = vadd.f32 0.0, %v800
        %v802 = vpop.f32.mrb[0].mxu0
        %803 = vmatprep.mubr.bf16.mxu0 0
        %804 = vmatmul.mubr.bf16.gmra.mrb[0].mxu0 %v714
        %v805 = vpop.f32.mrb[0].mxu0
        %v806 = vadd.f32 0.0, %v805
        %v807 = vpop.f32.mrb[0].mxu0
        %v808 = vpop.f32.mrb[0].mxu0
        %v809 = vadd.f32 0.0, %v808
        %v810 = vpop.f32.mrb[0].mxu0
        %811 = vmatprep.mubr.bf16.mxu0 0
        %812 = vmatmul.mubr.bf16.gmra.mrb[0].mxu0 %v717
        %v813 = vpop.f32.mrb[0].mxu0
        %v814 = vadd.f32 0.0, %v813
        %v815 = vpop.f32.mrb[0].mxu0
        %v816 = vpop.f32.mrb[0].mxu0
        %v817 = vadd.f32 0.0, %v816
        %v818 = vpop.f32.mrb[0].mxu0
        %819 = vmatprep.mubr.bf16.mxu0 0
        %820 = vmatmul.mubr.bf16.gmra.mrb[0].mxu0 %v720
        %v821 = vpop.f32.mrb[0].mxu0
        %v822 = vadd.f32 0.0, %v821
        %v823 = vpop.f32.mrb[0].mxu0
        %v824 = vpop.f32.mrb[0].mxu0
        %v825 = vadd.f32 0.0, %v824
        %v826 = vpop.f32.mrb[0].mxu0
        %827 = vmatprep.mubr.bf16.mxu0 0
        %828 = vmatmul.mubr.bf16.gmra.mrb[0].mxu0 %v723
        %v829 = vpop.f32.mrb[0].mxu0
        %v830 = vadd.f32 0.0, %v829
        %v831 = vpop.f32.mrb[0].mxu0
        %v832 = vpop.f32.mrb[0].mxu0
        %v833 = vadd.f32 0.0, %v832
        %v834 = vpop.f32.mrb[0].mxu0
        %835 = vmatprep.mubr.bf16.mxu0 0
        %836 = vmatmul.mubr.bf16.gmra.mrb[0].mxu0 %v726
        %v837 = vpop.f32.mrb[0].mxu0
        %v838 = vadd.f32 0.0, %v837
        %v839 = vpop.f32.mrb[0].mxu0
        %v840 = vpop.f32.mrb[0].mxu0
        %v841 = vadd.f32 0.0, %v840
        %v842 = vpop.f32.mrb[0].mxu0
        %843 = vmatprep.mubr.bf16.mxu0 0
        %844 = vmatmul.mubr.bf16.gmra.mrb[0].mxu0 %v729
        %v845 = vpop.f32.mrb[0].mxu0
        %v846 = vadd.f32 0.0, %v845
        %v847 = vpop.f32.mrb[0].mxu0
        %v848 = vpop.f32.mrb[0].mxu0
        %v849 = vadd.f32 0.0, %v848
        %v850 = vpop.f32.mrb[0].mxu0
        %851 = vmatprep.mubr.bf16.mxu0 0
        %852 = vmatmul.mubr.bf16.gmra.mrb[0].mxu0 %v732
        %v853 = vpop.f32.mrb[0].mxu0
        %v854 = vadd.f32 0.0, %v853
        %v855 = vpop.f32.mrb[0].mxu0
        %v856 = vpop.f32.mrb[0].mxu0
        %v857 = vadd.f32 0.0, %v856
        %v858 = vpop.f32.mrb[0].mxu0
        %859 = vmatprep.mubr.bf16.mxu0 0
        %860 = vmatmul.mubr.bf16.gmra.mrb[0].mxu0 %v735
        %v861 = vpop.f32.mrb[0].mxu0
        %v862 = vadd.f32 0.0, %v861
        %v863 = vpop.f32.mrb[0].mxu0
        %v864 = vpop.f32.mrb[0].mxu0
        %v865 = vadd.f32 0.0, %v864
        %v866 = vpop.f32.mrb[0].mxu0
        %867 = vmatprep.mubr.bf16.mxu0 0
        %868 = vmatmul.mubr.bf16.gmra.mrb[0].mxu0 %v738
        %v869 = vpop.f32.mrb[0].mxu0
        %v870 = vadd.f32 0.0, %v869
        %v871 = vpop.f32.mrb[0].mxu0
        %v872 = vpop.f32.mrb[0].mxu0
        %v873 = vadd.f32 0.0, %v872
        %v874 = vpop.f32.mrb[0].mxu0
        %875 = vmatprep.mubr.bf16.mxu0 0
        %876 = vmatmul.mubr.bf16.gmra.mrb[0].mxu0 %v741
        %v877 = vpop.f32.mrb[0].mxu0
        %v878 = vadd.f32 0.0, %v877
        %v879 = vpop.f32.mrb[0].mxu0
        %v880 = vpop.f32.mrb[0].mxu0
        %v881 = vadd.f32 0.0, %v880
        %v882 = vpop.f32.mrb[0].mxu0
        %883 = vmatprep.mubr.bf16.mxu0 0
        %884 = vmatmul.mubr.bf16.gmra.mrb[0].mxu0 %v744
        %v885 = vpop.f32.mrb[0].mxu0
        %v886 = vadd.f32 0.0, %v885
        %v887 = vpop.f32.mrb[0].mxu0
        %v888 = vpop.f32.mrb[0].mxu0
        %v889 = vadd.f32 0.0, %v888
        %v890 = vpop.f32.mrb[0].mxu0
        %891 = vmatprep.mubr.bf16.mxu0 0
        %892 = vmatmul.mubr.bf16.gmra.mrb[0].mxu0 %v747
        %v893 = vpop.f32.mrb[0].mxu0
        %v894 = vadd.f32 0.0, %v893
        %v895 = vpop.f32.mrb[0].mxu0
        %v896 = vpop.f32.mrb[0].mxu0
        %v897 = vadd.f32 0.0, %v896
        %v898 = vpop.f32.mrb[0].mxu0
        %899 = vmatprep.mubr.bf16.mxu0 0
        %900 = vmatmul.mubr.bf16.gmra.mrb[0].mxu0 %v750
        %v901 = vpop.f32.mrb[0].mxu0
        %v902 = vadd.f32 0.0, %v901
        %v903 = vpop.f32.mrb[0].mxu0
        %v904 = vpop.f32.mrb[0].mxu0
        %v905 = vadd.f32 0.0, %v904
        %v906 = vpop.f32.mrb[0].mxu0
        %907 = vmatprep.mubr.bf16.mxu0 0
        %908 = vmatmul.mubr.bf16.gmra.mrb[0].mxu0 %v753
        %v909 = vpop.f32.mrb[0].mxu0
        %v910 = vadd.f32 0.0, %v909
        %v911 = vpop.f32.mrb[0].mxu0
        %v912 = vpop.f32.mrb[0].mxu0
        %v913 = vadd.f32 0.0, %v912
        %v914 = vpop.f32.mrb[0].mxu0
        %915 = vdwg.mxu0
        %v948 = vunpack.c.l.b16 %v209
        %v949 = vunpack.c.l.b16 %v210
        %v950 = vunpack.c.l.b16 %v211
        %v951 = vunpack.c.l.b16 %v212
        %v952 = vunpack.c.l.b16 %v213
        %v953 = vunpack.c.l.b16 %v214
        %v954 = vunpack.c.l.b16 %v215
        %v955 = vunpack.c.l.b16 %v216
        %v956 = vunpack.c.l.b16 %v217
        %v957 = vunpack.c.l.b16 %v218
        %v958 = vunpack.c.l.b16 %v219
        %v959 = vunpack.c.l.b16 %v220
        %v960 = vunpack.c.l.b16 %v221
        %v961 = vunpack.c.l.b16 %v222
        %v962 = vunpack.c.l.b16 %v223
        %v963 = vunpack.c.l.b16 %v224
        %v964 = vunpack.c.l.b16 %v225
        %v965 = vunpack.c.l.b16 %v226
        %v966 = vunpack.c.l.b16 %v227
        %v967 = vunpack.c.l.b16 %v228
        %v968 = vunpack.c.l.b16 %v229
        %v969 = vunpack.c.l.b16 %v230
        %v970 = vunpack.c.l.b16 %v231
        %v971 = vunpack.c.l.b16 %v232
        %v972 = vunpack.c.l.b16 %v233
        %v973 = vunpack.c.l.b16 %v234
        %v974 = vunpack.c.l.b16 %v235
        %v975 = vunpack.c.l.b16 %v236
        %v976 = vunpack.c.l.b16 %v237
        %v977 = vunpack.c.l.b16 %v238
        %v978 = vunpack.c.l.b16 %v239
        %v979 = vunpack.c.l.b16 %v240
        %v980 = vpack.c.b16 %v949, %v948
        %v981 = vpack.c.b16 %v951, %v950
        %v982 = vpack.c.b16 %v953, %v952
        %v983 = vpack.c.b16 %v955, %v954
        %v984 = vpack.c.b16 %v957, %v956
        %v985 = vpack.c.b16 %v959, %v958
        %v986 = vpack.c.b16 %v961, %v960
        %v987 = vpack.c.b16 %v963, %v962
        %v988 = vpack.c.b16 %v965, %v964
        %v989 = vpack.c.b16 %v967, %v966
        %v990 = vpack.c.b16 %v969, %v968
        %v991 = vpack.c.b16 %v971, %v970
        %v992 = vpack.c.b16 %v973, %v972
        %v993 = vpack.c.b16 %v975, %v974
        %v994 = vpack.c.b16 %v977, %v976
        %v995 = vpack.c.b16 %v979, %v978
        %v998 = vunpack.c.l.b16 %v245
        %v999 = vunpack.c.l.b16 %v246
        %v1000 = vpack.c.b16 %v999, %v998
        %v1003 = vsel %vm706, %v980, 0
        %v1006 = vsel %vm706, %v981, 0
        %v1009 = vsel %vm706, %v982, 0
        %v1012 = vsel %vm706, %v983, 0
        %v1015 = vsel %vm706, %v984, 0
        %v1018 = vsel %vm706, %v985, 0
        %v1021 = vsel %vm706, %v986, 0
        %v1024 = vsel %vm706, %v987, 0
        %v1027 = vsel %vm706, %v988, 0
        %v1030 = vsel %vm706, %v989, 0
        %v1033 = vsel %vm706, %v990, 0
        %v1036 = vsel %vm706, %v991, 0
        %v1039 = vsel %vm706, %v992, 0
        %v1042 = vsel %vm706, %v993, 0
        %v1045 = vsel %vm706, %v994, 0
        %v1048 = vsel %vm706, %v995, 0
        %1050 = vmatprep.subr.bf16.mxu0 0
        %1051 = vmatpush1.bf16.msra.mxu0 %v1000
        %1052 = vmatprep.subr.bf16.mxu0 0
        %1053 = vmatpush1.bf16.msra.mxu0 0
        %1054 = vmatprep.subr.bf16.mxu0 0
        %1055 = vmatpush1.bf16.msra.mxu0 0
        %1056 = vmatprep.subr.bf16.mxu0 0
        %1057 = vmatpush1.bf16.msra.mxu0 0
        %1058 = vmatprep.subr.bf16.mxu0 0
        %1059 = vmatpush1.bf16.msra.mxu0 0
        %1060 = vmatprep.subr.bf16.mxu0 0
        %1061 = vmatpush1.bf16.msra.mxu0 0
        %1062 = vmatprep.subr.bf16.mxu0 0
        %1063 = vmatpush1.bf16.msra.mxu0 0
        %1064 = vmatprep.subr.bf16.mxu0 0
        %1065 = vmatpush1.bf16.msra.mxu0 0
        %1066 = vmatprep.subr.bf16.mxu0 0
        %1067 = vmatpush1.bf16.msra.mxu0 0
        %1068 = vmatprep.subr.bf16.mxu0 0
        %1069 = vmatpush1.bf16.msra.mxu0 0
        %1070 = vmatprep.subr.bf16.mxu0 0
        %1071 = vmatpush1.bf16.msra.mxu0 0
        %1072 = vmatprep.subr.bf16.mxu0 0
        %1073 = vmatpush1.bf16.msra.mxu0 0
        %1074 = vmatprep.subr.bf16.mxu0 0
        %1075 = vmatpush1.bf16.msra.mxu0 0
        %1076 = vmatprep.subr.bf16.mxu0 0
        %1077 = vmatpush1.bf16.msra.mxu0 0
        %1078 = vmatprep.subr.bf16.mxu0 0
        %1079 = vmatpush1.bf16.msra.mxu0 0
        %1080 = vmatprep.subr.bf16.mxu0 0
        %1081 = vmatpush1.bf16.msra.mxu0 0
        %1082 = vmatprep.mubr.bf16.mxu0 0
        %1083 = vmatmul.mubr.bf16.gmra.mrb[0].mxu0 %v1003
        %v1084 = vpop.f32.mrb[0].mxu0
        %v1085 = vadd.f32 %v790, %v1084
        %v1086 = vpop.f32.mrb[0].mxu0
        %v1087 = vpop.f32.mrb[0].mxu0
        %v1088 = vadd.f32 %v793, %v1087
        %v1089 = vpop.f32.mrb[0].mxu0
        %1090 = vmatprep.mubr.bf16.mxu0 0
        %1091 = vmatmul.mubr.bf16.gmra.mrb[0].mxu0 %v1006
        %v1092 = vpop.f32.mrb[0].mxu0
        %v1093 = vadd.f32 %v798, %v1092
        %v1094 = vpop.f32.mrb[0].mxu0
        %v1095 = vpop.f32.mrb[0].mxu0
        %v1096 = vadd.f32 %v801, %v1095
        %v1097 = vpop.f32.mrb[0].mxu0
        %1098 = vmatprep.mubr.bf16.mxu0 0
        %1099 = vmatmul.mubr.bf16.gmra.mrb[0].mxu0 %v1009
        %v1100 = vpop.f32.mrb[0].mxu0
        %v1101 = vadd.f32 %v806, %v1100
        %v1102 = vpop.f32.mrb[0].mxu0
        %v1103 = vpop.f32.mrb[0].mxu0
        %v1104 = vadd.f32 %v809, %v1103
        %v1105 = vpop.f32.mrb[0].mxu0
        %1106 = vmatprep.mubr.bf16.mxu0 0
        %1107 = vmatmul.mubr.bf16.gmra.mrb[0].mxu0 %v1012
        %v1108 = vpop.f32.mrb[0].mxu0
        %v1109 = vadd.f32 %v814, %v1108
        %v1110 = vpop.f32.mrb[0].mxu0
        %v1111 = vpop.f32.mrb[0].mxu0
        %v1112 = vadd.f32 %v817, %v1111
        %v1113 = vpop.f32.mrb[0].mxu0
        %1114 = vmatprep.mubr.bf16.mxu0 0
        %1115 = vmatmul.mubr.bf16.gmra.mrb[0].mxu0 %v1015
        %v1116 = vpop.f32.mrb[0].mxu0
        %v1117 = vadd.f32 %v822, %v1116
        %v1118 = vpop.f32.mrb[0].mxu0
        %v1119 = vpop.f32.mrb[0].mxu0
        %v1120 = vadd.f32 %v825, %v1119
        %v1121 = vpop.f32.mrb[0].mxu0
        %1122 = vmatprep.mubr.bf16.mxu0 0
        %1123 = vmatmul.mubr.bf16.gmra.mrb[0].mxu0 %v1018
        %v1124 = vpop.f32.mrb[0].mxu0
        %v1125 = vadd.f32 %v830, %v1124
        %v1126 = vpop.f32.mrb[0].mxu0
        %v1127 = vpop.f32.mrb[0].mxu0
        %v1128 = vadd.f32 %v833, %v1127
        %v1129 = vpop.f32.mrb[0].mxu0
        %1130 = vmatprep.mubr.bf16.mxu0 0
        %1131 = vmatmul.mubr.bf16.gmra.mrb[0].mxu0 %v1021
        %v1132 = vpop.f32.mrb[0].mxu0
        %v1133 = vadd.f32 %v838, %v1132
        %v1134 = vpop.f32.mrb[0].mxu0
        %v1135 = vpop.f32.mrb[0].mxu0
        %v1136 = vadd.f32 %v841, %v1135
        %v1137 = vpop.f32.mrb[0].mxu0
        %1138 = vmatprep.mubr.bf16.mxu0 0
        %1139 = vmatmul.mubr.bf16.gmra.mrb[0].mxu0 %v1024
        %v1140 = vpop.f32.mrb[0].mxu0
        %v1141 = vadd.f32 %v846, %v1140
        %v1142 = vpop.f32.mrb[0].mxu0
        %v1143 = vpop.f32.mrb[0].mxu0
        %v1144 = vadd.f32 %v849, %v1143
        %v1145 = vpop.f32.mrb[0].mxu0
        %1146 = vmatprep.mubr.bf16.mxu0 0
        %1147 = vmatmul.mubr.bf16.gmra.mrb[0].mxu0 %v1027
        %v1148 = vpop.f32.mrb[0].mxu0
        %v1149 = vadd.f32 %v854, %v1148
        %v1150 = vpop.f32.mrb[0].mxu0
        %v1151 = vpop.f32.mrb[0].mxu0
        %v1152 = vadd.f32 %v857, %v1151
        %v1153 = vpop.f32.mrb[0].mxu0
        %1154 = vmatprep.mubr.bf16.mxu0 0
        %1155 = vmatmul.mubr.bf16.gmra.mrb[0].mxu0 %v1030
        %v1156 = vpop.f32.mrb[0].mxu0
        %v1157 = vadd.f32 %v862, %v1156
        %v1158 = vpop.f32.mrb[0].mxu0
        %v1159 = vpop.f32.mrb[0].mxu0
        %v1160 = vadd.f32 %v865, %v1159
        %v1161 = vpop.f32.mrb[0].mxu0
        %1162 = vmatprep.mubr.bf16.mxu0 0
        %1163 = vmatmul.mubr.bf16.gmra.mrb[0].mxu0 %v1033
        %v1164 = vpop.f32.mrb[0].mxu0
        %v1165 = vadd.f32 %v870, %v1164
        %v1166 = vpop.f32.mrb[0].mxu0
        %v1167 = vpop.f32.mrb[0].mxu0
        %v1168 = vadd.f32 %v873, %v1167
        %v1169 = vpop.f32.mrb[0].mxu0
        %1170 = vmatprep.mubr.bf16.mxu0 0
        %1171 = vmatmul.mubr.bf16.gmra.mrb[0].mxu0 %v1036
        %v1172 = vpop.f32.mrb[0].mxu0
        %v1173 = vadd.f32 %v878, %v1172
        %v1174 = vpop.f32.mrb[0].mxu0
        %v1175 = vpop.f32.mrb[0].mxu0
        %v1176 = vadd.f32 %v881, %v1175
        %v1177 = vpop.f32.mrb[0].mxu0
        %1178 = vmatprep.mubr.bf16.mxu0 0
        %1179 = vmatmul.mubr.bf16.gmra.mrb[0].mxu0 %v1039
        %v1180 = vpop.f32.mrb[0].mxu0
        %v1181 = vadd.f32 %v886, %v1180
        %v1182 = vpop.f32.mrb[0].mxu0
        %v1183 = vpop.f32.mrb[0].mxu0
        %v1184 = vadd.f32 %v889, %v1183
        %v1185 = vpop.f32.mrb[0].mxu0
        %1186 = vmatprep.mubr.bf16.mxu0 0
        %1187 = vmatmul.mubr.bf16.gmra.mrb[0].mxu0 %v1042
        %v1188 = vpop.f32.mrb[0].mxu0
        %v1189 = vadd.f32 %v894, %v1188
        %v1190 = vpop.f32.mrb[0].mxu0
        %v1191 = vpop.f32.mrb[0].mxu0
        %v1192 = vadd.f32 %v897, %v1191
        %v1193 = vpop.f32.mrb[0].mxu0
        %1194 = vmatprep.mubr.bf16.mxu0 0
        %1195 = vmatmul.mubr.bf16.gmra.mrb[0].mxu0 %v1045
        %v1196 = vpop.f32.mrb[0].mxu0
        %v1197 = vadd.f32 %v902, %v1196
        %v1198 = vpop.f32.mrb[0].mxu0
        %v1199 = vpop.f32.mrb[0].mxu0
        %v1200 = vadd.f32 %v905, %v1199
        %v1201 = vpop.f32.mrb[0].mxu0
        %1202 = vmatprep.mubr.bf16.mxu0 0
        %1203 = vmatmul.mubr.bf16.gmra.mrb[0].mxu0 %v1048
        %v1204 = vpop.f32.mrb[0].mxu0
        %v1205 = vadd.f32 %v910, %v1204
        %v1206 = vpop.f32.mrb[0].mxu0
        %v1207 = vpop.f32.mrb[0].mxu0
        %v1208 = vadd.f32 %v913, %v1207
        %v1209 = vpop.f32.mrb[0].mxu0
        %1210 = vdwg.mxu0
        %v1211 = vld [vmem:[%s205] sm:$0xe]
        %v1212 = vld [vmem:[%s205 + $0xc] sm:$0xe]
        %v1213 = vld [vmem:[%s205 + $0x18] sm:$0xe]
        %v1214 = vld [vmem:[%s205 + $0x24] sm:$0xe]
        %v1215 = vld [vmem:[%s205 + $0x30] sm:$0xe]
        %v1216 = vld [vmem:[%s205 + $0x3c] sm:$0xe]
        %v1217 = vld [vmem:[%s205 + $0x48] sm:$0xe]
        %v1218 = vld [vmem:[%s205 + $0x54] sm:$0xe]
        %v1219 = vld [vmem:[%s205 + $0x60] sm:$0xe]
        %v1220 = vld [vmem:[%s205 + $0x6c] sm:$0xe]
        %v1221 = vld [vmem:[%s205 + $0x78] sm:$0xe]
        %v1222 = vld [vmem:[%s205 + $0x84] sm:$0xe]
        %v1223 = vld [vmem:[%s205 + $0x90] sm:$0xe]
        %v1224 = vld [vmem:[%s205 + $0x9c] sm:$0xe]
        %v1225 = vld [vmem:[%s205 + $0xa8] sm:$0xe]
        %v1226 = vld [vmem:[%s205 + $0xb4] sm:$0xe]
        %vm1259 = vcmask 1042432
        %vm1260 = vcmask 1046532
        %vm1261 = vmor %vm1259, %vm1260
        %v1262 = vrot.slane %v1211, 5
        %v1263 = vrot.slane %v1262, 4
        %v1264 = vrot.slane %v210, 5
        %v1265 = vsel %vm1261, %v1263, %v1264
        %v1266 = vrot.slane %v1264, 4
        %v1267 = vrot.slane %v247, 5
        %v1268 = vsel %vm1261, %v1266, %v1267
        %v1269 = vrot.slane %v1212, 5
        %v1270 = vrot.slane %v1269, 4
        %v1271 = vrot.slane %v212, 5
        %v1272 = vsel %vm1261, %v1270, %v1271
        %v1273 = vrot.slane %v1271, 4
        %v1274 = vrot.slane %v248, 5
        %v1275 = vsel %vm1261, %v1273, %v1274
        %v1276 = vrot.slane %v1213, 5
        %v1277 = vrot.slane %v1276, 4
        %v1278 = vrot.slane %v214, 5
        %v1279 = vsel %vm1261, %v1277, %v1278
        %v1280 = vrot.slane %v1278, 4
        %v1281 = vrot.slane %v249, 5
        %v1282 = vsel %vm1261, %v1280, %v1281
        %v1283 = vrot.slane %v1214, 5
        %v1284 = vrot.slane %v1283, 4
        %v1285 = vrot.slane %v216, 5
        %v1286 = vsel %vm1261, %v1284, %v1285
        %v1287 = vrot.slane %v1285, 4
        %v1288 = vrot.slane %v250, 5
        %v1289 = vsel %vm1261, %v1287, %v1288
        %v1290 = vrot.slane %v1215, 5
        %v1291 = vrot.slane %v1290, 4
        %v1292 = vrot.slane %v218, 5
        %v1293 = vsel %vm1261, %v1291, %v1292
        %v1294 = vrot.slane %v1292, 4
        %v1295 = vrot.slane %v251, 5
        %v1296 = vsel %vm1261, %v1294, %v1295
        %v1297 = vrot.slane %v1216, 5
        %v1298 = vrot.slane %v1297, 4
        %v1299 = vrot.slane %v220, 5
        %v1300 = vsel %vm1261, %v1298, %v1299
        %v1301 = vrot.slane %v1299, 4
        %v1302 = vrot.slane %v252, 5
        %v1303 = vsel %vm1261, %v1301, %v1302
        %v1304 = vrot.slane %v1217, 5
        %v1305 = vrot.slane %v1304, 4
        %v1306 = vrot.slane %v222, 5
        %v1307 = vsel %vm1261, %v1305, %v1306
        %v1308 = vrot.slane %v1306, 4
        %v1309 = vrot.slane %v253, 5
        %v1310 = vsel %vm1261, %v1308, %v1309
        %v1311 = vrot.slane %v1218, 5
        %v1312 = vrot.slane %v1311, 4
        %v1313 = vrot.slane %v224, 5
        %v1314 = vsel %vm1261, %v1312, %v1313
        %v1315 = vrot.slane %v1313, 4
        %v1316 = vrot.slane %v254, 5
        %v1317 = vsel %vm1261, %v1315, %v1316
        %v1318 = vrot.slane %v1219, 5
        %v1319 = vrot.slane %v1318, 4
        %v1320 = vrot.slane %v226, 5
        %v1321 = vsel %vm1261, %v1319, %v1320
        %v1322 = vrot.slane %v1320, 4
        %v1323 = vrot.slane %v255, 5
        %v1324 = vsel %vm1261, %v1322, %v1323
        %v1325 = vrot.slane %v1220, 5
        %v1326 = vrot.slane %v1325, 4
        %v1327 = vrot.slane %v228, 5
        %v1328 = vsel %vm1261, %v1326, %v1327
        %v1329 = vrot.slane %v1327, 4
        %v1330 = vrot.slane %v256, 5
        %v1331 = vsel %vm1261, %v1329, %v1330
        %v1332 = vrot.slane %v1221, 5
        %v1333 = vrot.slane %v1332, 4
        %v1334 = vrot.slane %v230, 5
        %v1335 = vsel %vm1261, %v1333, %v1334
        %v1336 = vrot.slane %v1334, 4
        %v1337 = vrot.slane %v257, 5
        %v1338 = vsel %vm1261, %v1336, %v1337
        %v1339 = vrot.slane %v1222, 5
        %v1340 = vrot.slane %v1339, 4
        %v1341 = vrot.slane %v232, 5
        %v1342 = vsel %vm1261, %v1340, %v1341
        %v1343 = vrot.slane %v1341, 4
        %v1344 = vrot.slane %v258, 5
        %v1345 = vsel %vm1261, %v1343, %v1344
        %v1346 = vrot.slane %v1223, 5
        %v1347 = vrot.slane %v1346, 4
        %v1348 = vrot.slane %v234, 5
        %v1349 = vsel %vm1261, %v1347, %v1348
        %v1350 = vrot.slane %v1348, 4
        %v1351 = vrot.slane %v259, 5
        %v1352 = vsel %vm1261, %v1350, %v1351
        %v1353 = vrot.slane %v1224, 5
        %v1354 = vrot.slane %v1353, 4
        %v1355 = vrot.slane %v236, 5
        %v1356 = vsel %vm1261, %v1354, %v1355
        %v1357 = vrot.slane %v1355, 4
        %v1358 = vrot.slane %v260, 5
        %v1359 = vsel %vm1261, %v1357, %v1358
        %v1360 = vrot.slane %v1225, 5
        %v1361 = vrot.slane %v1360, 4
        %v1362 = vrot.slane %v238, 5
        %v1363 = vsel %vm1261, %v1361, %v1362
        %v1364 = vrot.slane %v1362, 4
        %v1365 = vrot.slane %v261, 5
        %v1366 = vsel %vm1261, %v1364, %v1365
        %v1367 = vrot.slane %v1226, 5
        %v1368 = vrot.slane %v1367, 4
        %v1369 = vrot.slane %v240, 5
        %v1370 = vsel %vm1261, %v1368, %v1369
        %v1371 = vrot.slane %v1369, 4
        %v1372 = vrot.slane %v262, 5
        %v1373 = vsel %vm1261, %v1371, %v1372
        %v1374 = vld [vmem:[%s244 + $0x10] sm:$0xf]
        %v1375 = vld [vmem:[%s244 + $0x14] sm:$0xf]
        %v1376 = vunpack.c.l.b16 %v1265
        %v1377 = vunpack.c.l.b16 %v1268
        %v1378 = vunpack.c.l.b16 %v1272
        %v1379 = vunpack.c.l.b16 %v1275
        %v1380 = vunpack.c.l.b16 %v1279
        %v1381 = vunpack.c.l.b16 %v1282
        %v1382 = vunpack.c.l.b16 %v1286
        %v1383 = vunpack.c.l.b16 %v1289
        %v1384 = vunpack.c.l.b16 %v1293
        %v1385 = vunpack.c.l.b16 %v1296
        %v1386 = vunpack.c.l.b16 %v1300
        %v1387 = vunpack.c.l.b16 %v1303
        %v1388 = vunpack.c.l.b16 %v1307
        %v1389 = vunpack.c.l.b16 %v1310
        %v1390 = vunpack.c.l.b16 %v1314
        %v1391 = vunpack.c.l.b16 %v1317
        %v1392 = vunpack.c.l.b16 %v1321
        %v1393 = vunpack.c.l.b16 %v1324
        %v1394 = vunpack.c.l.b16 %v1328
        %v1395 = vunpack.c.l.b16 %v1331
        %v1396 = vunpack.c.l.b16 %v1335
        %v1397 = vunpack.c.l.b16 %v1338
        %v1398 = vunpack.c.l.b16 %v1342
        %v1399 = vunpack.c.l.b16 %v1345
        %v1400 = vunpack.c.l.b16 %v1349
        %v1401 = vunpack.c.l.b16 %v1352
        %v1402 = vunpack.c.l.b16 %v1356
        %v1403 = vunpack.c.l.b16 %v1359
        %v1404 = vunpack.c.l.b16 %v1363
        %v1405 = vunpack.c.l.b16 %v1366
        %v1406 = vunpack.c.l.b16 %v1370
        %v1407 = vunpack.c.l.b16 %v1373
        %v1408 = vpack.c.b16 %v1377, %v1376
        %v1409 = vpack.c.b16 %v1379, %v1378
        %v1410 = vpack.c.b16 %v1381, %v1380
        %v1411 = vpack.c.b16 %v1383, %v1382
        %v1412 = vpack.c.b16 %v1385, %v1384
        %v1413 = vpack.c.b16 %v1387, %v1386
        %v1414 = vpack.c.b16 %v1389, %v1388
        %v1415 = vpack.c.b16 %v1391, %v1390
        %v1416 = vpack.c.b16 %v1393, %v1392
        %v1417 = vpack.c.b16 %v1395, %v1394
        %v1418 = vpack.c.b16 %v1397, %v1396
        %v1419 = vpack.c.b16 %v1399, %v1398
        %v1420 = vpack.c.b16 %v1401, %v1400
        %v1421 = vpack.c.b16 %v1403, %v1402
        %v1422 = vpack.c.b16 %v1405, %v1404
        %v1423 = vpack.c.b16 %v1407, %v1406
        %v1426 = vunpack.c.l.b16 %v1374
        %v1427 = vunpack.c.l.b16 %v1375
        %v1428 = vpack.c.b16 %v1427, %v1426
        %v1431 = vsel %vm706, %v1408, 0
        %v1434 = vsel %vm706, %v1409, 0
        %v1437 = vsel %vm706, %v1410, 0
        %v1440 = vsel %vm706, %v1411, 0
        %v1443 = vsel %vm706, %v1412, 0
        %v1446 = vsel %vm706, %v1413, 0
        %v1449 = vsel %vm706, %v1414, 0
        %v1452 = vsel %vm706, %v1415, 0
        %v1455 = vsel %vm706, %v1416, 0
        %v1458 = vsel %vm706, %v1417, 0
        %v1461 = vsel %vm706, %v1418, 0
        %v1464 = vsel %vm706, %v1419, 0
        %v1467 = vsel %vm706, %v1420, 0
        %v1470 = vsel %vm706, %v1421, 0
        %v1473 = vsel %vm706, %v1422, 0
        %v1476 = vsel %vm706, %v1423, 0
        %1478 = vmatprep.subr.bf16.mxu0 0
        %1479 = vmatpush1.bf16.msra.mxu0 %v1428
        %1480 = vmatprep.subr.bf16.mxu0 0
        %1481 = vmatpush1.bf16.msra.mxu0 0
        %1482 = vmatprep.subr.bf16.mxu0 0
        %1483 = vmatpush1.bf16.msra.mxu0 0
        %1484 = vmatprep.subr.bf16.mxu0 0
        %1485 = vmatpush1.bf16.msra.mxu0 0
        %1486 = vmatprep.subr.bf16.mxu0 0
        %1487 = vmatpush1.bf16.msra.mxu0 0
        %1488 = vmatprep.subr.bf16.mxu0 0
        %1489 = vmatpush1.bf16.msra.mxu0 0
        %1490 = vmatprep.subr.bf16.mxu0 0
        %1491 = vmatpush1.bf16.msra.mxu0 0
        %1492 = vmatprep.subr.bf16.mxu0 0
        %1493 = vmatpush1.bf16.msra.mxu0 0
        %1494 = vmatprep.subr.bf16.mxu0 0
        %1495 = vmatpush1.bf16.msra.mxu0 0
        %1496 = vmatprep.subr.bf16.mxu0 0
        %1497 = vmatpush1.bf16.msra.mxu0 0
        %1498 = vmatprep.subr.bf16.mxu0 0
        %1499 = vmatpush1.bf16.msra.mxu0 0
        %1500 = vmatprep.subr.bf16.mxu0 0
        %1501 = vmatpush1.bf16.msra.mxu0 0
        %1502 = vmatprep.subr.bf16.mxu0 0
        %1503 = vmatpush1.bf16.msra.mxu0 0
        %1504 = vmatprep.subr.bf16.mxu0 0
        %1505 = vmatpush1.bf16.msra.mxu0 0
        %1506 = vmatprep.subr.bf16.mxu0 0
        %1507 = vmatpush1.bf16.msra.mxu0 0
        %1508 = vmatprep.subr.bf16.mxu0 0
        %1509 = vmatpush1.bf16.msra.mxu0 0
        %1510 = vmatprep.mubr.bf16.mxu0 0
        %1511 = vmatmul.mubr.bf16.gmra.mrb[0].mxu0 %v1431
        %v1512 = vpop.f32.mrb[0].mxu0
        %v1513 = vadd.f32 0.0, %v1512
        %v1514 = vpop.f32.mrb[0].mxu0
        %v1515 = vpop.f32.mrb[0].mxu0
        %v1516 = vadd.f32 0.0, %v1515
        %v1517 = vpop.f32.mrb[0].mxu0
        %1518 = vmatprep.mubr.bf16.mxu0 0
        %1519 = vmatmul.mubr.bf16.gmra.mrb[0].mxu0 %v1434
        %v1520 = vpop.f32.mrb[0].mxu0
        %v1521 = vadd.f32 0.0, %v1520
        %v1522 = vpop.f32.mrb[0].mxu0
        %v1523 = vpop.f32.mrb[0].mxu0
        %v1524 = vadd.f32 0.0, %v1523
        %v1525 = vpop.f32.mrb[0].mxu0
        %1526 = vmatprep.mubr.bf16.mxu0 0
        %1527 = vmatmul.mubr.bf16.gmra.mrb[0].mxu0 %v1437
        %v1528 = vpop.f32.mrb[0].mxu0
        %v1529 = vadd.f32 0.0, %v1528
        %v1530 = vpop.f32.mrb[0].mxu0
        %v1531 = vpop.f32.mrb[0].mxu0
        %v1532 = vadd.f32 0.0, %v1531
        %v1533 = vpop.f32.mrb[0].mxu0
        %1534 = vmatprep.mubr.bf16.mxu0 0
        %1535 = vmatmul.mubr.bf16.gmra.mrb[0].mxu0 %v1440
        %v1536 = vpop.f32.mrb[0].mxu0
        %v1537 = vadd.f32 0.0, %v1536
        %v1538 = vpop.f32.mrb[0].mxu0
        %v1539 = vpop.f32.mrb[0].mxu0
        %v1540 = vadd.f32 0.0, %v1539
        %v1541 = vpop.f32.mrb[0].mxu0
        %1542 = vmatprep.mubr.bf16.mxu0 0
        %1543 = vmatmul.mubr.bf16.gmra.mrb[0].mxu0 %v1443
        %v1544 = vpop.f32.mrb[0].mxu0
        %v1545 = vadd.f32 0.0, %v1544
        %v1546 = vpop.f32.mrb[0].mxu0
        %v1547 = vpop.f32.mrb[0].mxu0
        %v1548 = vadd.f32 0.0, %v1547
        %v1549 = vpop.f32.mrb[0].mxu0
        %1550 = vmatprep.mubr.bf16.mxu0 0
        %1551 = vmatmul.mubr.bf16.gmra.mrb[0].mxu0 %v1446
        %v1552 = vpop.f32.mrb[0].mxu0
        %v1553 = vadd.f32 0.0, %v1552
        %v1554 = vpop.f32.mrb[0].mxu0
        %v1555 = vpop.f32.mrb[0].mxu0
        %v1556 = vadd.f32 0.0, %v1555
        %v1557 = vpop.f32.mrb[0].mxu0
        %1558 = vmatprep.mubr.bf16.mxu0 0
        %1559 = vmatmul.mubr.bf16.gmra.mrb[0].mxu0 %v1449
        %v1560 = vpop.f32.mrb[0].mxu0
        %v1561 = vadd.f32 0.0, %v1560
        %v1562 = vpop.f32.mrb[0].mxu0
        %v1563 = vpop.f32.mrb[0].mxu0
        %v1564 = vadd.f32 0.0, %v1563
        %v1565 = vpop.f32.mrb[0].mxu0
        %1566 = vmatprep.mubr.bf16.mxu0 0
        %1567 = vmatmul.mubr.bf16.gmra.mrb[0].mxu0 %v1452
        %v1568 = vpop.f32.mrb[0].mxu0
        %v1569 = vadd.f32 0.0, %v1568
        %v1570 = vpop.f32.mrb[0].mxu0
        %v1571 = vpop.f32.mrb[0].mxu0
        %v1572 = vadd.f32 0.0, %v1571
        %v1573 = vpop.f32.mrb[0].mxu0
        %1574 = vmatprep.mubr.bf16.mxu0 0
        %1575 = vmatmul.mubr.bf16.gmra.mrb[0].mxu0 %v1455
        %v1576 = vpop.f32.mrb[0].mxu0
        %v1577 = vadd.f32 0.0, %v1576
        %v1578 = vpop.f32.mrb[0].mxu0
        %v1579 = vpop.f32.mrb[0].mxu0
        %v1580 = vadd.f32 0.0, %v1579
        %v1581 = vpop.f32.mrb[0].mxu0
        %1582 = vmatprep.mubr.bf16.mxu0 0
        %1583 = vmatmul.mubr.bf16.gmra.mrb[0].mxu0 %v1458
        %v1584 = vpop.f32.mrb[0].mxu0
        %v1585 = vadd.f32 0.0, %v1584
        %v1586 = vpop.f32.mrb[0].mxu0
        %v1587 = vpop.f32.mrb[0].mxu0
        %v1588 = vadd.f32 0.0, %v1587
        %v1589 = vpop.f32.mrb[0].mxu0
        %1590 = vmatprep.mubr.bf16.mxu0 0
        %1591 = vmatmul.mubr.bf16.gmra.mrb[0].mxu0 %v1461
        %v1592 = vpop.f32.mrb[0].mxu0
        %v1593 = vadd.f32 0.0, %v1592
        %v1594 = vpop.f32.mrb[0].mxu0
        %v1595 = vpop.f32.mrb[0].mxu0
        %v1596 = vadd.f32 0.0, %v1595
        %v1597 = vpop.f32.mrb[0].mxu0
        %1598 = vmatprep.mubr.bf16.mxu0 0
        %1599 = vmatmul.mubr.bf16.gmra.mrb[0].mxu0 %v1464
        %v1600 = vpop.f32.mrb[0].mxu0
        %v1601 = vadd.f32 0.0, %v1600
        %v1602 = vpop.f32.mrb[0].mxu0
        %v1603 = vpop.f32.mrb[0].mxu0
        %v1604 = vadd.f32 0.0, %v1603
        %v1605 = vpop.f32.mrb[0].mxu0
        %1606 = vmatprep.mubr.bf16.mxu0 0
        %1607 = vmatmul.mubr.bf16.gmra.mrb[0].mxu0 %v1467
        %v1608 = vpop.f32.mrb[0].mxu0
        %v1609 = vadd.f32 0.0, %v1608
        %v1610 = vpop.f32.mrb[0].mxu0
        %v1611 = vpop.f32.mrb[0].mxu0
        %v1612 = vadd.f32 0.0, %v1611
        %v1613 = vpop.f32.mrb[0].mxu0
        %1614 = vmatprep.mubr.bf16.mxu0 0
        %1615 = vmatmul.mubr.bf16.gmra.mrb[0].mxu0 %v1470
        %v1616 = vpop.f32.mrb[0].mxu0
        %v1617 = vadd.f32 0.0, %v1616
        %v1618 = vpop.f32.mrb[0].mxu0
        %v1619 = vpop.f32.mrb[0].mxu0
        %v1620 = vadd.f32 0.0, %v1619
        %v1621 = vpop.f32.mrb[0].mxu0
        %1622 = vmatprep.mubr.bf16.mxu0 0
        %1623 = vmatmul.mubr.bf16.gmra.mrb[0].mxu0 %v1473
        %v1624 = vpop.f32.mrb[0].mxu0
        %v1625 = vadd.f32 0.0, %v1624
        %v1626 = vpop.f32.mrb[0].mxu0
        %v1627 = vpop.f32.mrb[0].mxu0
        %v1628 = vadd.f32 0.0, %v1627
        %v1629 = vpop.f32.mrb[0].mxu0
        %1630 = vmatprep.mubr.bf16.mxu0 0
        %1631 = vmatmul.mubr.bf16.gmra.mrb[0].mxu0 %v1476
        %v1632 = vpop.f32.mrb[0].mxu0
        %v1633 = vadd.f32 0.0, %v1632
        %v1634 = vpop.f32.mrb[0].mxu0
        %v1635 = vpop.f32.mrb[0].mxu0
        %v1636 = vadd.f32 0.0, %v1635
        %v1637 = vpop.f32.mrb[0].mxu0
        %1638 = vdwg.mxu0
        %v1639 = vadd.f32 %v1085, %v1513
        %v1640 = vadd.f32 %v1088, %v1516
        %v1641 = vadd.f32 %v1093, %v1521
        %v1642 = vadd.f32 %v1096, %v1524
        %v1643 = vadd.f32 %v1101, %v1529
        %v1644 = vadd.f32 %v1104, %v1532
        %v1645 = vadd.f32 %v1109, %v1537
        %v1646 = vadd.f32 %v1112, %v1540
        %v1647 = vadd.f32 %v1117, %v1545
        %v1648 = vadd.f32 %v1120, %v1548
        %v1649 = vadd.f32 %v1125, %v1553
        %v1650 = vadd.f32 %v1128, %v1556
        %v1651 = vadd.f32 %v1133, %v1561
        %v1652 = vadd.f32 %v1136, %v1564
        %v1653 = vadd.f32 %v1141, %v1569
        %v1654 = vadd.f32 %v1144, %v1572
        %v1655 = vadd.f32 %v1149, %v1577
        %v1656 = vadd.f32 %v1152, %v1580
        %v1657 = vadd.f32 %v1157, %v1585
        %v1658 = vadd.f32 %v1160, %v1588
        %v1659 = vadd.f32 %v1165, %v1593
        %v1660 = vadd.f32 %v1168, %v1596
        %v1661 = vadd.f32 %v1173, %v1601
        %v1662 = vadd.f32 %v1176, %v1604
        %v1663 = vadd.f32 %v1181, %v1609
        %v1664 = vadd.f32 %v1184, %v1612
        %v1665 = vadd.f32 %v1189, %v1617
        %v1666 = vadd.f32 %v1192, %v1620
        %v1667 = vadd.f32 %v1197, %v1625
        %v1668 = vadd.f32 %v1200, %v1628
        %v1669 = vadd.f32 %v1205, %v1633
        %v1670 = vadd.f32 %v1208, %v1636
        %s1671 = scalar_lea.vmem %s205, 12
        %v1672 = vld [vmem:[%s1671] sm:$0xf]
        %v1673 = vld [vmem:[%s1671 + $0x4] sm:$0xf]
        %v1674 = vld [vmem:[%s1671 + $0xc] sm:$0xf]
        %v1675 = vld [vmem:[%s1671 + $0x10] sm:$0xf]
        %v1676 = vld [vmem:[%s1671 + $0x18] sm:$0xf]
        %v1677 = vld [vmem:[%s1671 + $0x1c] sm:$0xf]
        %v1678 = vld [vmem:[%s1671 + $0x24] sm:$0xf]
        %v1679 = vld [vmem:[%s1671 + $0x28] sm:$0xf]
        %v1680 = vld [vmem:[%s1671 + $0x30] sm:$0xf]
        %v1681 = vld [vmem:[%s1671 + $0x34] sm:$0xf]
        %v1682 = vld [vmem:[%s1671 + $0x3c] sm:$0xf]
        %v1683 = vld [vmem:[%s1671 + $0x40] sm:$0xf]
        %v1684 = vld [vmem:[%s1671 + $0x48] sm:$0xf]
        %v1685 = vld [vmem:[%s1671 + $0x4c] sm:$0xf]
        %v1686 = vld [vmem:[%s1671 + $0x54] sm:$0xf]
        %v1687 = vld [vmem:[%s1671 + $0x58] sm:$0xf]
        %v1688 = vld [vmem:[%s1671 + $0x60] sm:$0xf]
        %v1689 = vld [vmem:[%s1671 + $0x64] sm:$0xf]
        %v1690 = vld [vmem:[%s1671 + $0x6c] sm:$0xf]
        %v1691 = vld [vmem:[%s1671 + $0x70] sm:$0xf]
        %v1692 = vld [vmem:[%s1671 + $0x78] sm:$0xf]
        %v1693 = vld [vmem:[%s1671 + $0x7c] sm:$0xf]
        %v1694 = vld [vmem:[%s1671 + $0x84] sm:$0xf]
        %v1695 = vld [vmem:[%s1671 + $0x88] sm:$0xf]
        %v1696 = vld [vmem:[%s1671 + $0x90] sm:$0xf]
        %v1697 = vld [vmem:[%s1671 + $0x94] sm:$0xf]
        %v1698 = vld [vmem:[%s1671 + $0x9c] sm:$0xf]
        %v1699 = vld [vmem:[%s1671 + $0xa0] sm:$0xf]
        %v1700 = vld [vmem:[%s1671 + $0xa8] sm:$0xf]
        %v1701 = vld [vmem:[%s1671 + $0xac] sm:$0xf]
        %v1702 = vld [vmem:[%s1671 + $0xb4] sm:$0xf]
        %v1703 = vld [vmem:[%s1671 + $0xb8] sm:$0xf]
        %v1704 = vld [vmem:[%s244 + $0x18] sm:$0xf]
        %v1705 = vld [vmem:[%s244 + $0x1c] sm:$0xf]
        %v1738 = vunpack.c.l.b16 %v1672
        %v1739 = vunpack.c.l.b16 %v1673
        %v1740 = vunpack.c.l.b16 %v1674
        %v1741 = vunpack.c.l.b16 %v1675
        %v1742 = vunpack.c.l.b16 %v1676
        %v1743 = vunpack.c.l.b16 %v1677
        %v1744 = vunpack.c.l.b16 %v1678
        %v1745 = vunpack.c.l.b16 %v1679
        %v1746 = vunpack.c.l.b16 %v1680
        %v1747 = vunpack.c.l.b16 %v1681
        %v1748 = vunpack.c.l.b16 %v1682
        %v1749 = vunpack.c.l.b16 %v1683
        %v1750 = vunpack.c.l.b16 %v1684
        %v1751 = vunpack.c.l.b16 %v1685
        %v1752 = vunpack.c.l.b16 %v1686
        %v1753 = vunpack.c.l.b16 %v1687
        %v1754 = vunpack.c.l.b16 %v1688
        %v1755 = vunpack.c.l.b16 %v1689
        %v1756 = vunpack.c.l.b16 %v1690
        %v1757 = vunpack.c.l.b16 %v1691
        %v1758 = vunpack.c.l.b16 %v1692
        %v1759 = vunpack.c.l.b16 %v1693
        %v1760 = vunpack.c.l.b16 %v1694
        %v1761 = vunpack.c.l.b16 %v1695
        %v1762 = vunpack.c.l.b16 %v1696
        %v1763 = vunpack.c.l.b16 %v1697
        %v1764 = vunpack.c.l.b16 %v1698
        %v1765 = vunpack.c.l.b16 %v1699
        %v1766 = vunpack.c.l.b16 %v1700
        %v1767 = vunpack.c.l.b16 %v1701
        %v1768 = vunpack.c.l.b16 %v1702
        %v1769 = vunpack.c.l.b16 %v1703
        %v1770 = vpack.c.b16 %v1739, %v1738
        %v1771 = vpack.c.b16 %v1741, %v1740
        %v1772 = vpack.c.b16 %v1743, %v1742
        %v1773 = vpack.c.b16 %v1745, %v1744
        %v1774 = vpack.c.b16 %v1747, %v1746
        %v1775 = vpack.c.b16 %v1749, %v1748
        %v1776 = vpack.c.b16 %v1751, %v1750
        %v1777 = vpack.c.b16 %v1753, %v1752
        %v1778 = vpack.c.b16 %v1755, %v1754
        %v1779 = vpack.c.b16 %v1757, %v1756
        %v1780 = vpack.c.b16 %v1759, %v1758
        %v1781 = vpack.c.b16 %v1761, %v1760
        %v1782 = vpack.c.b16 %v1763, %v1762
        %v1783 = vpack.c.b16 %v1765, %v1764
        %v1784 = vpack.c.b16 %v1767, %v1766
        %v1785 = vpack.c.b16 %v1769, %v1768
        %v1788 = vunpack.c.l.b16 %v1704
        %v1789 = vunpack.c.l.b16 %v1705
        %v1790 = vpack.c.b16 %v1789, %v1788
        %v1793 = vsel %vm706, %v1770, 0
        %v1796 = vsel %vm706, %v1771, 0
        %v1799 = vsel %vm706, %v1772, 0
        %v1802 = vsel %vm706, %v1773, 0
        %v1805 = vsel %vm706, %v1774, 0
        %v1808 = vsel %vm706, %v1775, 0
        %v1811 = vsel %vm706, %v1776, 0
        %v1814 = vsel %vm706, %v1777, 0
        %v1817 = vsel %vm706, %v1778, 0
        %v1820 = vsel %vm706, %v1779, 0
        %v1823 = vsel %vm706, %v1780, 0
        %v1826 = vsel %vm706, %v1781, 0
        %v1829 = vsel %vm706, %v1782, 0
        %v1832 = vsel %vm706, %v1783, 0
        %v1835 = vsel %vm706, %v1784, 0
        %v1838 = vsel %vm706, %v1785, 0
        %1840 = vmatprep.subr.bf16.mxu0 0
        %1841 = vmatpush1.bf16.msra.mxu0 %v1790
        %1842 = vmatprep.subr.bf16.mxu0 0
        %1843 = vmatpush1.bf16.msra.mxu0 0
        %1844 = vmatprep.subr.bf16.mxu0 0
        %1845 = vmatpush1.bf16.msra.mxu0 0
        %1846 = vmatprep.subr.bf16.mxu0 0
        %1847 = vmatpush1.bf16.msra.mxu0 0
        %1848 = vmatprep.subr.bf16.mxu0 0
        %1849 = vmatpush1.bf16.msra.mxu0 0
        %1850 = vmatprep.subr.bf16.mxu0 0
        %1851 = vmatpush1.bf16.msra.mxu0 0
        %1852 = vmatprep.subr.bf16.mxu0 0
        %1853 = vmatpush1.bf16.msra.mxu0 0
        %1854 = vmatprep.subr.bf16.mxu0 0
        %1855 = vmatpush1.bf16.msra.mxu0 0
        %1856 = vmatprep.subr.bf16.mxu0 0
        %1857 = vmatpush1.bf16.msra.mxu0 0
        %1858 = vmatprep.subr.bf16.mxu0 0
        %1859 = vmatpush1.bf16.msra.mxu0 0
        %1860 = vmatprep.subr.bf16.mxu0 0
        %1861 = vmatpush1.bf16.msra.mxu0 0
        %1862 = vmatprep.subr.bf16.mxu0 0
        %1863 = vmatpush1.bf16.msra.mxu0 0
        %1864 = vmatprep.subr.bf16.mxu0 0
        %1865 = vmatpush1.bf16.msra.mxu0 0
        %1866 = vmatprep.subr.bf16.mxu0 0
        %1867 = vmatpush1.bf16.msra.mxu0 0
        %1868 = vmatprep.subr.bf16.mxu0 0
        %1869 = vmatpush1.bf16.msra.mxu0 0
        %1870 = vmatprep.subr.bf16.mxu0 0
        %1871 = vmatpush1.bf16.msra.mxu0 0
        %1872 = vmatprep.mubr.bf16.mxu0 0
        %1873 = vmatmul.mubr.bf16.gmra.mrb[0].mxu0 %v1793
        %v1874 = vpop.f32.mrb[0].mxu0
        %v1875 = vadd.f32 0.0, %v1874
        %v1876 = vpop.f32.mrb[0].mxu0
        %v1877 = vpop.f32.mrb[0].mxu0
        %v1878 = vadd.f32 0.0, %v1877
        %v1879 = vpop.f32.mrb[0].mxu0
        %1880 = vmatprep.mubr.bf16.mxu0 0
        %1881 = vmatmul.mubr.bf16.gmra.mrb[0].mxu0 %v1796
        %v1882 = vpop.f32.mrb[0].mxu0
        %v1883 = vadd.f32 0.0, %v1882
        %v1884 = vpop.f32.mrb[0].mxu0
        %v1885 = vpop.f32.mrb[0].mxu0
        %v1886 = vadd.f32 0.0, %v1885
        %v1887 = vpop.f32.mrb[0].mxu0
        %1888 = vmatprep.mubr.bf16.mxu0 0
        %1889 = vmatmul.mubr.bf16.gmra.mrb[0].mxu0 %v1799
        %v1890 = vpop.f32.mrb[0].mxu0
        %v1891 = vadd.f32 0.0, %v1890
        %v1892 = vpop.f32.mrb[0].mxu0
        %v1893 = vpop.f32.mrb[0].mxu0
        %v1894 = vadd.f32 0.0, %v1893
        %v1895 = vpop.f32.mrb[0].mxu0
        %1896 = vmatprep.mubr.bf16.mxu0 0
        %1897 = vmatmul.mubr.bf16.gmra.mrb[0].mxu0 %v1802
        %v1898 = vpop.f32.mrb[0].mxu0
        %v1899 = vadd.f32 0.0, %v1898
        %v1900 = vpop.f32.mrb[0].mxu0
        %v1901 = vpop.f32.mrb[0].mxu0
        %v1902 = vadd.f32 0.0, %v1901
        %v1903 = vpop.f32.mrb[0].mxu0
        %1904 = vmatprep.mubr.bf16.mxu0 0
        %1905 = vmatmul.mubr.bf16.gmra.mrb[0].mxu0 %v1805
        %v1906 = vpop.f32.mrb[0].mxu0
        %v1907 = vadd.f32 0.0, %v1906
        %v1908 = vpop.f32.mrb[0].mxu0
        %v1909 = vpop.f32.mrb[0].mxu0
        %v1910 = vadd.f32 0.0, %v1909
        %v1911 = vpop.f32.mrb[0].mxu0
        %1912 = vmatprep.mubr.bf16.mxu0 0
        %1913 = vmatmul.mubr.bf16.gmra.mrb[0].mxu0 %v1808
        %v1914 = vpop.f32.mrb[0].mxu0
        %v1915 = vadd.f32 0.0, %v1914
        %v1916 = vpop.f32.mrb[0].mxu0
        %v1917 = vpop.f32.mrb[0].mxu0
        %v1918 = vadd.f32 0.0, %v1917
        %v1919 = vpop.f32.mrb[0].mxu0
        %1920 = vmatprep.mubr.bf16.mxu0 0
        %1921 = vmatmul.mubr.bf16.gmra.mrb[0].mxu0 %v1811
        %v1922 = vpop.f32.mrb[0].mxu0
        %v1923 = vadd.f32 0.0, %v1922
        %v1924 = vpop.f32.mrb[0].mxu0
        %v1925 = vpop.f32.mrb[0].mxu0
        %v1926 = vadd.f32 0.0, %v1925
        %v1927 = vpop.f32.mrb[0].mxu0
        %1928 = vmatprep.mubr.bf16.mxu0 0
        %1929 = vmatmul.mubr.bf16.gmra.mrb[0].mxu0 %v1814
        %v1930 = vpop.f32.mrb[0].mxu0
        %v1931 = vadd.f32 0.0, %v1930
        %v1932 = vpop.f32.mrb[0].mxu0
        %v1933 = vpop.f32.mrb[0].mxu0
        %v1934 = vadd.f32 0.0, %v1933
        %v1935 = vpop.f32.mrb[0].mxu0
        %1936 = vmatprep.mubr.bf16.mxu0 0
        %1937 = vmatmul.mubr.bf16.gmra.mrb[0].mxu0 %v1817
        %v1938 = vpop.f32.mrb[0].mxu0
        %v1939 = vadd.f32 0.0, %v1938
        %v1940 = vpop.f32.mrb[0].mxu0
        %v1941 = vpop.f32.mrb[0].mxu0
        %v1942 = vadd.f32 0.0, %v1941
        %v1943 = vpop.f32.mrb[0].mxu0
        %1944 = vmatprep.mubr.bf16.mxu0 0
        %1945 = vmatmul.mubr.bf16.gmra.mrb[0].mxu0 %v1820
        %v1946 = vpop.f32.mrb[0].mxu0
        %v1947 = vadd.f32 0.0, %v1946
        %v1948 = vpop.f32.mrb[0].mxu0
        %v1949 = vpop.f32.mrb[0].mxu0
        %v1950 = vadd.f32 0.0, %v1949
        %v1951 = vpop.f32.mrb[0].mxu0
        %1952 = vmatprep.mubr.bf16.mxu0 0
        %1953 = vmatmul.mubr.bf16.gmra.mrb[0].mxu0 %v1823
        %v1954 = vpop.f32.mrb[0].mxu0
        %v1955 = vadd.f32 0.0, %v1954
        %v1956 = vpop.f32.mrb[0].mxu0
        %v1957 = vpop.f32.mrb[0].mxu0
        %v1958 = vadd.f32 0.0, %v1957
        %v1959 = vpop.f32.mrb[0].mxu0
        %1960 = vmatprep.mubr.bf16.mxu0 0
        %1961 = vmatmul.mubr.bf16.gmra.mrb[0].mxu0 %v1826
        %v1962 = vpop.f32.mrb[0].mxu0
        %v1963 = vadd.f32 0.0, %v1962
        %v1964 = vpop.f32.mrb[0].mxu0
        %v1965 = vpop.f32.mrb[0].mxu0
        %v1966 = vadd.f32 0.0, %v1965
        %v1967 = vpop.f32.mrb[0].mxu0
        %1968 = vmatprep.mubr.bf16.mxu0 0
        %1969 = vmatmul.mubr.bf16.gmra.mrb[0].mxu0 %v1829
        %v1970 = vpop.f32.mrb[0].mxu0
        %v1971 = vadd.f32 0.0, %v1970
        %v1972 = vpop.f32.mrb[0].mxu0
        %v1973 = vpop.f32.mrb[0].mxu0
        %v1974 = vadd.f32 0.0, %v1973
        %v1975 = vpop.f32.mrb[0].mxu0
        %1976 = vmatprep.mubr.bf16.mxu0 0
        %1977 = vmatmul.mubr.bf16.gmra.mrb[0].mxu0 %v1832
        %v1978 = vpop.f32.mrb[0].mxu0
        %v1979 = vadd.f32 0.0, %v1978
        %v1980 = vpop.f32.mrb[0].mxu0
        %v1981 = vpop.f32.mrb[0].mxu0
        %v1982 = vadd.f32 0.0, %v1981
        %v1983 = vpop.f32.mrb[0].mxu0
        %1984 = vmatprep.mubr.bf16.mxu0 0
        %1985 = vmatmul.mubr.bf16.gmra.mrb[0].mxu0 %v1835
        %v1986 = vpop.f32.mrb[0].mxu0
        %v1987 = vadd.f32 0.0, %v1986
        %v1988 = vpop.f32.mrb[0].mxu0
        %v1989 = vpop.f32.mrb[0].mxu0
        %v1990 = vadd.f32 0.0, %v1989
        %v1991 = vpop.f32.mrb[0].mxu0
        %1992 = vmatprep.mubr.bf16.mxu0 0
        %1993 = vmatmul.mubr.bf16.gmra.mrb[0].mxu0 %v1838
        %v1994 = vpop.f32.mrb[0].mxu0
        %v1995 = vadd.f32 0.0, %v1994
        %v1996 = vpop.f32.mrb[0].mxu0
        %v1997 = vpop.f32.mrb[0].mxu0
        %v1998 = vadd.f32 0.0, %v1997
        %v1999 = vpop.f32.mrb[0].mxu0
        %2000 = vdwg.mxu0
        %v2001 = vadd.f32 %v1639, %v1875
        %v2002 = vadd.f32 %v1640, %v1878
        %v2003 = vadd.f32 %v1641, %v1883
        %v2004 = vadd.f32 %v1642, %v1886
        %v2005 = vadd.f32 %v1643, %v1891
        %v2006 = vadd.f32 %v1644, %v1894
        %v2007 = vadd.f32 %v1645, %v1899
        %v2008 = vadd.f32 %v1646, %v1902
        %v2009 = vadd.f32 %v1647, %v1907
        %v2010 = vadd.f32 %v1648, %v1910
        %v2011 = vadd.f32 %v1649, %v1915
        %v2012 = vadd.f32 %v1650, %v1918
        %v2013 = vadd.f32 %v1651, %v1923
        %v2014 = vadd.f32 %v1652, %v1926
        %v2015 = vadd.f32 %v1653, %v1931
        %v2016 = vadd.f32 %v1654, %v1934
        %v2017 = vadd.f32 %v1655, %v1939
        %v2018 = vadd.f32 %v1656, %v1942
        %v2019 = vadd.f32 %v1657, %v1947
        %v2020 = vadd.f32 %v1658, %v1950
        %v2021 = vadd.f32 %v1659, %v1955
        %v2022 = vadd.f32 %v1660, %v1958
        %v2023 = vadd.f32 %v1661, %v1963
        %v2024 = vadd.f32 %v1662, %v1966
        %v2025 = vadd.f32 %v1663, %v1971
        %v2026 = vadd.f32 %v1664, %v1974
        %v2027 = vadd.f32 %v1665, %v1979
        %v2028 = vadd.f32 %v1666, %v1982
        %v2029 = vadd.f32 %v1667, %v1987
        %v2030 = vadd.f32 %v1668, %v1990
        %v2031 = vadd.f32 %v1669, %v1995
        %v2032 = vadd.f32 %v1670, %v1998
        %v2033 = vld [vmem:[%s1671] sm:$0xf]
        %v2034 = vld [vmem:[%s1671 + $0x4] sm:$0xf]
        %v2035 = vld [vmem:[%s1671 + $0x8] sm:$0x1]
        %v2036 = vld [vmem:[%s1671 + $0xc] sm:$0xf]
        %v2037 = vld [vmem:[%s1671 + $0x10] sm:$0xf]
        %v2038 = vld [vmem:[%s1671 + $0x14] sm:$0x1]
        %v2039 = vld [vmem:[%s1671 + $0x18] sm:$0xf]
        %v2040 = vld [vmem:[%s1671 + $0x1c] sm:$0xf]
        %v2041 = vld [vmem:[%s1671 + $0x20] sm:$0x1]
        %v2042 = vld [vmem:[%s1671 + $0x24] sm:$0xf]
        %v2043 = vld [vmem:[%s1671 + $0x28] sm:$0xf]
        %v2044 = vld [vmem:[%s1671 + $0x2c] sm:$0x1]
        %v2045 = vld [vmem:[%s1671 + $0x30] sm:$0xf]
        %v2046 = vld [vmem:[%s1671 + $0x34] sm:$0xf]
        %v2047 = vld [vmem:[%s1671 + $0x38] sm:$0x1]
        %v2048 = vld [vmem:[%s1671 + $0x3c] sm:$0xf]
        %v2049 = vld [vmem:[%s1671 + $0x40] sm:$0xf]
        %v2050 = vld [vmem:[%s1671 + $0x44] sm:$0x1]
        %v2051 = vld [vmem:[%s1671 + $0x48] sm:$0xf]
        %v2052 = vld [vmem:[%s1671 + $0x4c] sm:$0xf]
        %v2053 = vld [vmem:[%s1671 + $0x50] sm:$0x1]
        %v2054 = vld [vmem:[%s1671 + $0x54] sm:$0xf]
        %v2055 = vld [vmem:[%s1671 + $0x58] sm:$0xf]
        %v2056 = vld [vmem:[%s1671 + $0x5c] sm:$0x1]
        %v2057 = vld [vmem:[%s1671 + $0x60] sm:$0xf]
        %v2058 = vld [vmem:[%s1671 + $0x64] sm:$0xf]
        %v2059 = vld [vmem:[%s1671 + $0x68] sm:$0x1]
        %v2060 = vld [vmem:[%s1671 + $0x6c] sm:$0xf]
        %v2061 = vld [vmem:[%s1671 + $0x70] sm:$0xf]
        %v2062 = vld [vmem:[%s1671 + $0x74] sm:$0x1]
        %v2063 = vld [vmem:[%s1671 + $0x78] sm:$0xf]
        %v2064 = vld [vmem:[%s1671 + $0x7c] sm:$0xf]
        %v2065 = vld [vmem:[%s1671 + $0x80] sm:$0x1]
        %v2066 = vld [vmem:[%s1671 + $0x84] sm:$0xf]
        %v2067 = vld [vmem:[%s1671 + $0x88] sm:$0xf]
        %v2068 = vld [vmem:[%s1671 + $0x8c] sm:$0x1]
        %v2069 = vld [vmem:[%s1671 + $0x90] sm:$0xf]
        %v2070 = vld [vmem:[%s1671 + $0x94] sm:$0xf]
        %v2071 = vld [vmem:[%s1671 + $0x98] sm:$0x1]
        %v2072 = vld [vmem:[%s1671 + $0x9c] sm:$0xf]
        %v2073 = vld [vmem:[%s1671 + $0xa0] sm:$0xf]
        %v2074 = vld [vmem:[%s1671 + $0xa4] sm:$0x1]
        %v2075 = vld [vmem:[%s1671 + $0xa8] sm:$0xf]
        %v2076 = vld [vmem:[%s1671 + $0xac] sm:$0xf]
        %v2077 = vld [vmem:[%s1671 + $0xb0] sm:$0x1]
        %v2078 = vld [vmem:[%s1671 + $0xb4] sm:$0xf]
        %v2079 = vld [vmem:[%s1671 + $0xb8] sm:$0xf]
        %v2080 = vld [vmem:[%s1671 + $0xbc] sm:$0x1]
        %v2082 = vshrl.u32 %v2033, 16
        %v2084 = vrot.slane %v2082, 4
        %v2085 = vshll.u32 %v2033, 16
        %v2087 = vrot.slane %v2085, 5
        %v2088 = vor.u32 %v2084, %v2087
        %v2089 = vrot.slane %v2088, 4
        %v2091 = vshll.u32 %v2034, 16
        %v2093 = vrot.slane %v2091, 5
        %v2094 = vsel %vm265, %v2089, %v2093
        %v2095 = vshrl.u32 %v2034, 16
        %v2097 = vrot.slane %v2095, 4
        %v2098 = vor.u32 %v2097, %v2093
        %v2099 = vrot.slane %v2098, 4
        %v2101 = vshll.u32 %v2035, 16
        %v2103 = vrot.slane %v2101, 5
        %v2104 = vsel %vm265, %v2099, %v2103
        %v2106 = vshrl.u32 %v2036, 16
        %v2108 = vrot.slane %v2106, 4
        %v2109 = vshll.u32 %v2036, 16
        %v2111 = vrot.slane %v2109, 5
        %v2112 = vor.u32 %v2108, %v2111
        %v2113 = vrot.slane %v2112, 4
        %v2115 = vshll.u32 %v2037, 16
        %v2117 = vrot.slane %v2115, 5
        %v2118 = vsel %vm265, %v2113, %v2117
        %v2119 = vshrl.u32 %v2037, 16
        %v2121 = vrot.slane %v2119, 4
        %v2122 = vor.u32 %v2121, %v2117
        %v2123 = vrot.slane %v2122, 4
        %v2125 = vshll.u32 %v2038, 16
        %v2127 = vrot.slane %v2125, 5
        %v2128 = vsel %vm265, %v2123, %v2127
        %v2130 = vshrl.u32 %v2039, 16
        %v2132 = vrot.slane %v2130, 4
        %v2133 = vshll.u32 %v2039, 16
        %v2135 = vrot.slane %v2133, 5
        %v2136 = vor.u32 %v2132, %v2135
        %v2137 = vrot.slane %v2136, 4
        %v2139 = vshll.u32 %v2040, 16
        %v2141 = vrot.slane %v2139, 5
        %v2142 = vsel %vm265, %v2137, %v2141
        %v2143 = vshrl.u32 %v2040, 16
        %v2145 = vrot.slane %v2143, 4
        %v2146 = vor.u32 %v2145, %v2141
        %v2147 = vrot.slane %v2146, 4
        %v2149 = vshll.u32 %v2041, 16
        %v2151 = vrot.slane %v2149, 5
        %v2152 = vsel %vm265, %v2147, %v2151
        %v2154 = vshrl.u32 %v2042, 16
        %v2156 = vrot.slane %v2154, 4
        %v2157 = vshll.u32 %v2042, 16
        %v2159 = vrot.slane %v2157, 5
        %v2160 = vor.u32 %v2156, %v2159
        %v2161 = vrot.slane %v2160, 4
        %v2163 = vshll.u32 %v2043, 16
        %v2165 = vrot.slane %v2163, 5
        %v2166 = vsel %vm265, %v2161, %v2165
        %v2167 = vshrl.u32 %v2043, 16
        %v2169 = vrot.slane %v2167, 4
        %v2170 = vor.u32 %v2169, %v2165
        %v2171 = vrot.slane %v2170, 4
        %v2173 = vshll.u32 %v2044, 16
        %v2175 = vrot.slane %v2173, 5
        %v2176 = vsel %vm265, %v2171, %v2175
        %v2178 = vshrl.u32 %v2045, 16
        %v2180 = vrot.slane %v2178, 4
        %v2181 = vshll.u32 %v2045, 16
        %v2183 = vrot.slane %v2181, 5
        %v2184 = vor.u32 %v2180, %v2183
        %v2185 = vrot.slane %v2184, 4
        %v2187 = vshll.u32 %v2046, 16
        %v2189 = vrot.slane %v2187, 5
        %v2190 = vsel %vm265, %v2185, %v2189
        %v2191 = vshrl.u32 %v2046, 16
        %v2193 = vrot.slane %v2191, 4
        %v2194 = vor.u32 %v2193, %v2189
        %v2195 = vrot.slane %v2194, 4
        %v2197 = vshll.u32 %v2047, 16
        %v2199 = vrot.slane %v2197, 5
        %v2200 = vsel %vm265, %v2195, %v2199
        %v2202 = vshrl.u32 %v2048, 16
        %v2204 = vrot.slane %v2202, 4
        %v2205 = vshll.u32 %v2048, 16
        %v2207 = vrot.slane %v2205, 5
        %v2208 = vor.u32 %v2204, %v2207
        %v2209 = vrot.slane %v2208, 4
        %v2211 = vshll.u32 %v2049, 16
        %v2213 = vrot.slane %v2211, 5
        %v2214 = vsel %vm265, %v2209, %v2213
        %v2215 = vshrl.u32 %v2049, 16
        %v2217 = vrot.slane %v2215, 4
        %v2218 = vor.u32 %v2217, %v2213
        %v2219 = vrot.slane %v2218, 4
        %v2221 = vshll.u32 %v2050, 16
        %v2223 = vrot.slane %v2221, 5
        %v2224 = vsel %vm265, %v2219, %v2223
        %v2226 = vshrl.u32 %v2051, 16
        %v2228 = vrot.slane %v2226, 4
        %v2229 = vshll.u32 %v2051, 16
        %v2231 = vrot.slane %v2229, 5
        %v2232 = vor.u32 %v2228, %v2231
        %v2233 = vrot.slane %v2232, 4
        %v2235 = vshll.u32 %v2052, 16
        %v2237 = vrot.slane %v2235, 5
        %v2238 = vsel %vm265, %v2233, %v2237
        %v2239 = vshrl.u32 %v2052, 16
        %v2241 = vrot.slane %v2239, 4
        %v2242 = vor.u32 %v2241, %v2237
        %v2243 = vrot.slane %v2242, 4
        %v2245 = vshll.u32 %v2053, 16
        %v2247 = vrot.slane %v2245, 5
        %v2248 = vsel %vm265, %v2243, %v2247
        %v2250 = vshrl.u32 %v2054, 16
        %v2252 = vrot.slane %v2250, 4
        %v2253 = vshll.u32 %v2054, 16
        %v2255 = vrot.slane %v2253, 5
        %v2256 = vor.u32 %v2252, %v2255
        %v2257 = vrot.slane %v2256, 4
        %v2259 = vshll.u32 %v2055, 16
        %v2261 = vrot.slane %v2259, 5
        %v2262 = vsel %vm265, %v2257, %v2261
        %v2263 = vshrl.u32 %v2055, 16
        %v2265 = vrot.slane %v2263, 4
        %v2266 = vor.u32 %v2265, %v2261
        %v2267 = vrot.slane %v2266, 4
        %v2269 = vshll.u32 %v2056, 16
        %v2271 = vrot.slane %v2269, 5
        %v2272 = vsel %vm265, %v2267, %v2271
        %v2274 = vshrl.u32 %v2057, 16
        %v2276 = vrot.slane %v2274, 4
        %v2277 = vshll.u32 %v2057, 16
        %v2279 = vrot.slane %v2277, 5
        %v2280 = vor.u32 %v2276, %v2279
        %v2281 = vrot.slane %v2280, 4
        %v2283 = vshll.u32 %v2058, 16
        %v2285 = vrot.slane %v2283, 5
        %v2286 = vsel %vm265, %v2281, %v2285
        %v2287 = vshrl.u32 %v2058, 16
        %v2289 = vrot.slane %v2287, 4
        %v2290 = vor.u32 %v2289, %v2285
        %v2291 = vrot.slane %v2290, 4
        %v2293 = vshll.u32 %v2059, 16
        %v2295 = vrot.slane %v2293, 5
        %v2296 = vsel %vm265, %v2291, %v2295
        %v2298 = vshrl.u32 %v2060, 16
        %v2300 = vrot.slane %v2298, 4
        %v2301 = vshll.u32 %v2060, 16
        %v2303 = vrot.slane %v2301, 5
        %v2304 = vor.u32 %v2300, %v2303
        %v2305 = vrot.slane %v2304, 4
        %v2307 = vshll.u32 %v2061, 16
        %v2309 = vrot.slane %v2307, 5
        %v2310 = vsel %vm265, %v2305, %v2309
        %v2311 = vshrl.u32 %v2061, 16
        %v2313 = vrot.slane %v2311, 4
        %v2314 = vor.u32 %v2313, %v2309
        %v2315 = vrot.slane %v2314, 4
        %v2317 = vshll.u32 %v2062, 16
        %v2319 = vrot.slane %v2317, 5
        %v2320 = vsel %vm265, %v2315, %v2319
        %v2322 = vshrl.u32 %v2063, 16
        %v2324 = vrot.slane %v2322, 4
        %v2325 = vshll.u32 %v2063, 16
        %v2327 = vrot.slane %v2325, 5
        %v2328 = vor.u32 %v2324, %v2327
        %v2329 = vrot.slane %v2328, 4
        %v2331 = vshll.u32 %v2064, 16
        %v2333 = vrot.slane %v2331, 5
        %v2334 = vsel %vm265, %v2329, %v2333
        %v2335 = vshrl.u32 %v2064, 16
        %v2337 = vrot.slane %v2335, 4
        %v2338 = vor.u32 %v2337, %v2333
        %v2339 = vrot.slane %v2338, 4
        %v2341 = vshll.u32 %v2065, 16
        %v2343 = vrot.slane %v2341, 5
        %v2344 = vsel %vm265, %v2339, %v2343
        %v2346 = vshrl.u32 %v2066, 16
        %v2348 = vrot.slane %v2346, 4
        %v2349 = vshll.u32 %v2066, 16
        %v2351 = vrot.slane %v2349, 5
        %v2352 = vor.u32 %v2348, %v2351
        %v2353 = vrot.slane %v2352, 4
        %v2355 = vshll.u32 %v2067, 16
        %v2357 = vrot.slane %v2355, 5
        %v2358 = vsel %vm265, %v2353, %v2357
        %v2359 = vshrl.u32 %v2067, 16
        %v2361 = vrot.slane %v2359, 4
        %v2362 = vor.u32 %v2361, %v2357
        %v2363 = vrot.slane %v2362, 4
        %v2365 = vshll.u32 %v2068, 16
        %v2367 = vrot.slane %v2365, 5
        %v2368 = vsel %vm265, %v2363, %v2367
        %v2370 = vshrl.u32 %v2069, 16
        %v2372 = vrot.slane %v2370, 4
        %v2373 = vshll.u32 %v2069, 16
        %v2375 = vrot.slane %v2373, 5
        %v2376 = vor.u32 %v2372, %v2375
        %v2377 = vrot.slane %v2376, 4
        %v2379 = vshll.u32 %v2070, 16
        %v2381 = vrot.slane %v2379, 5
        %v2382 = vsel %vm265, %v2377, %v2381
        %v2383 = vshrl.u32 %v2070, 16
        %v2385 = vrot.slane %v2383, 4
        %v2386 = vor.u32 %v2385, %v2381
        %v2387 = vrot.slane %v2386, 4
        %v2389 = vshll.u32 %v2071, 16
        %v2391 = vrot.slane %v2389, 5
        %v2392 = vsel %vm265, %v2387, %v2391
        %v2394 = vshrl.u32 %v2072, 16
        %v2396 = vrot.slane %v2394, 4
        %v2397 = vshll.u32 %v2072, 16
        %v2399 = vrot.slane %v2397, 5
        %v2400 = vor.u32 %v2396, %v2399
        %v2401 = vrot.slane %v2400, 4
        %v2403 = vshll.u32 %v2073, 16
        %v2405 = vrot.slane %v2403, 5
        %v2406 = vsel %vm265, %v2401, %v2405
        %v2407 = vshrl.u32 %v2073, 16
        %v2409 = vrot.slane %v2407, 4
        %v2410 = vor.u32 %v2409, %v2405
        %v2411 = vrot.slane %v2410, 4
        %v2413 = vshll.u32 %v2074, 16
        %v2415 = vrot.slane %v2413, 5
        %v2416 = vsel %vm265, %v2411, %v2415
        %v2418 = vshrl.u32 %v2075, 16
        %v2420 = vrot.slane %v2418, 4
        %v2421 = vshll.u32 %v2075, 16
        %v2423 = vrot.slane %v2421, 5
        %v2424 = vor.u32 %v2420, %v2423
        %v2425 = vrot.slane %v2424, 4
        %v2427 = vshll.u32 %v2076, 16
        %v2429 = vrot.slane %v2427, 5
        %v2430 = vsel %vm265, %v2425, %v2429
        %v2431 = vshrl.u32 %v2076, 16
        %v2433 = vrot.slane %v2431, 4
        %v2434 = vor.u32 %v2433, %v2429
        %v2435 = vrot.slane %v2434, 4
        %v2437 = vshll.u32 %v2077, 16
        %v2439 = vrot.slane %v2437, 5
        %v2440 = vsel %vm265, %v2435, %v2439
        %v2442 = vshrl.u32 %v2078, 16
        %v2444 = vrot.slane %v2442, 4
        %v2445 = vshll.u32 %v2078, 16
        %v2447 = vrot.slane %v2445, 5
        %v2448 = vor.u32 %v2444, %v2447
        %v2449 = vrot.slane %v2448, 4
        %v2451 = vshll.u32 %v2079, 16
        %v2453 = vrot.slane %v2451, 5
        %v2454 = vsel %vm265, %v2449, %v2453
        %v2455 = vshrl.u32 %v2079, 16
        %v2457 = vrot.slane %v2455, 4
        %v2458 = vor.u32 %v2457, %v2453
        %v2459 = vrot.slane %v2458, 4
        %v2461 = vshll.u32 %v2080, 16
        %v2463 = vrot.slane %v2461, 5
        %v2464 = vsel %vm265, %v2459, %v2463
        %v2465 = vld [vmem:[%s244 + $0x20] sm:$0xf]
        %v2466 = vld [vmem:[%s244 + $0x24] sm:$0xf]
        %v2467 = vunpack.c.l.b16 %v2094
        %v2468 = vunpack.c.l.b16 %v2104
        %v2469 = vunpack.c.l.b16 %v2118
        %v2470 = vunpack.c.l.b16 %v2128
        %v2471 = vunpack.c.l.b16 %v2142
        %v2472 = vunpack.c.l.b16 %v2152
        %v2473 = vunpack.c.l.b16 %v2166
        %v2474 = vunpack.c.l.b16 %v2176
        %v2475 = vunpack.c.l.b16 %v2190
        %v2476 = vunpack.c.l.b16 %v2200
        %v2477 = vunpack.c.l.b16 %v2214
        %v2478 = vunpack.c.l.b16 %v2224
        %v2479 = vunpack.c.l.b16 %v2238
        %v2480 = vunpack.c.l.b16 %v2248
        %v2481 = vunpack.c.l.b16 %v2262
        %v2482 = vunpack.c.l.b16 %v2272
        %v2483 = vunpack.c.l.b16 %v2286
        %v2484 = vunpack.c.l.b16 %v2296
        %v2485 = vunpack.c.l.b16 %v2310
        %v2486 = vunpack.c.l.b16 %v2320
        %v2487 = vunpack.c.l.b16 %v2334
        %v2488 = vunpack.c.l.b16 %v2344
        %v2489 = vunpack.c.l.b16 %v2358
        %v2490 = vunpack.c.l.b16 %v2368
        %v2491 = vunpack.c.l.b16 %v2382
        %v2492 = vunpack.c.l.b16 %v2392
        %v2493 = vunpack.c.l.b16 %v2406
        %v2494 = vunpack.c.l.b16 %v2416
        %v2495 = vunpack.c.l.b16 %v2430
        %v2496 = vunpack.c.l.b16 %v2440
        %v2497 = vunpack.c.l.b16 %v2454
        %v2498 = vunpack.c.l.b16 %v2464
        %v2499 = vpack.c.b16 %v2468, %v2467
        %v2500 = vpack.c.b16 %v2470, %v2469
        %v2501 = vpack.c.b16 %v2472, %v2471
        %v2502 = vpack.c.b16 %v2474, %v2473
        %v2503 = vpack.c.b16 %v2476, %v2475
        %v2504 = vpack.c.b16 %v2478, %v2477
        %v2505 = vpack.c.b16 %v2480, %v2479
        %v2506 = vpack.c.b16 %v2482, %v2481
        %v2507 = vpack.c.b16 %v2484, %v2483
        %v2508 = vpack.c.b16 %v2486, %v2485
        %v2509 = vpack.c.b16 %v2488, %v2487
        %v2510 = vpack.c.b16 %v2490, %v2489
        %v2511 = vpack.c.b16 %v2492, %v2491
        %v2512 = vpack.c.b16 %v2494, %v2493
        %v2513 = vpack.c.b16 %v2496, %v2495
        %v2514 = vpack.c.b16 %v2498, %v2497
        %v2517 = vunpack.c.l.b16 %v2465
        %v2518 = vunpack.c.l.b16 %v2466
        %v2519 = vpack.c.b16 %v2518, %v2517
        %v2522 = vsel %vm706, %v2499, 0
        %v2525 = vsel %vm706, %v2500, 0
        %v2528 = vsel %vm706, %v2501, 0
        %v2531 = vsel %vm706, %v2502, 0
        %v2534 = vsel %vm706, %v2503, 0
        %v2537 = vsel %vm706, %v2504, 0
        %v2540 = vsel %vm706, %v2505, 0
        %v2543 = vsel %vm706, %v2506, 0
        %v2546 = vsel %vm706, %v2507, 0
        %v2549 = vsel %vm706, %v2508, 0
        %v2552 = vsel %vm706, %v2509, 0
        %v2555 = vsel %vm706, %v2510, 0
        %v2558 = vsel %vm706, %v2511, 0
        %v2561 = vsel %vm706, %v2512, 0
        %v2564 = vsel %vm706, %v2513, 0
        %v2567 = vsel %vm706, %v2514, 0
        %2569 = vmatprep.subr.bf16.mxu0 0
        %2570 = vmatpush1.bf16.msra.mxu0 %v2519
        %2571 = vmatprep.subr.bf16.mxu0 0
        %2572 = vmatpush1.bf16.msra.mxu0 0
        %2573 = vmatprep.subr.bf16.mxu0 0
        %2574 = vmatpush1.bf16.msra.mxu0 0
        %2575 = vmatprep.subr.bf16.mxu0 0
        %2576 = vmatpush1.bf16.msra.mxu0 0
        %2577 = vmatprep.subr.bf16.mxu0 0
        %2578 = vmatpush1.bf16.msra.mxu0 0
        %2579 = vmatprep.subr.bf16.mxu0 0
        %2580 = vmatpush1.bf16.msra.mxu0 0
        %2581 = vmatprep.subr.bf16.mxu0 0
        %2582 = vmatpush1.bf16.msra.mxu0 0
        %2583 = vmatprep.subr.bf16.mxu0 0
        %2584 = vmatpush1.bf16.msra.mxu0 0
        %2585 = vmatprep.subr.bf16.mxu0 0
        %2586 = vmatpush1.bf16.msra.mxu0 0
        %2587 = vmatprep.subr.bf16.mxu0 0
        %2588 = vmatpush1.bf16.msra.mxu0 0
        %2589 = vmatprep.subr.bf16.mxu0 0
        %2590 = vmatpush1.bf16.msra.mxu0 0
        %2591 = vmatprep.subr.bf16.mxu0 0
        %2592 = vmatpush1.bf16.msra.mxu0 0
        %2593 = vmatprep.subr.bf16.mxu0 0
        %2594 = vmatpush1.bf16.msra.mxu0 0
        %2595 = vmatprep.subr.bf16.mxu0 0
        %2596 = vmatpush1.bf16.msra.mxu0 0
        %2597 = vmatprep.subr.bf16.mxu0 0
        %2598 = vmatpush1.bf16.msra.mxu0 0
        %2599 = vmatprep.subr.bf16.mxu0 0
        %2600 = vmatpush1.bf16.msra.mxu0 0
        %2601 = vmatprep.mubr.bf16.mxu0 0
        %2602 = vmatmul.mubr.bf16.gmra.mrb[0].mxu0 %v2522
        %v2603 = vpop.f32.mrb[0].mxu0
        %v2604 = vadd.f32 0.0, %v2603
        %v2605 = vpop.f32.mrb[0].mxu0
        %v2606 = vpop.f32.mrb[0].mxu0
        %v2607 = vadd.f32 0.0, %v2606
        %v2608 = vpop.f32.mrb[0].mxu0
        %2609 = vmatprep.mubr.bf16.mxu0 0
        %2610 = vmatmul.mubr.bf16.gmra.mrb[0].mxu0 %v2525
        %v2611 = vpop.f32.mrb[0].mxu0
        %v2612 = vadd.f32 0.0, %v2611
        %v2613 = vpop.f32.mrb[0].mxu0
        %v2614 = vpop.f32.mrb[0].mxu0
        %v2615 = vadd.f32 0.0, %v2614
        %v2616 = vpop.f32.mrb[0].mxu0
        %2617 = vmatprep.mubr.bf16.mxu0 0
        %2618 = vmatmul.mubr.bf16.gmra.mrb[0].mxu0 %v2528
        %v2619 = vpop.f32.mrb[0].mxu0
        %v2620 = vadd.f32 0.0, %v2619
        %v2621 = vpop.f32.mrb[0].mxu0
        %v2622 = vpop.f32.mrb[0].mxu0
        %v2623 = vadd.f32 0.0, %v2622
        %v2624 = vpop.f32.mrb[0].mxu0
        %2625 = vmatprep.mubr.bf16.mxu0 0
        %2626 = vmatmul.mubr.bf16.gmra.mrb[0].mxu0 %v2531
        %v2627 = vpop.f32.mrb[0].mxu0
        %v2628 = vadd.f32 0.0, %v2627
        %v2629 = vpop.f32.mrb[0].mxu0
        %v2630 = vpop.f32.mrb[0].mxu0
        %v2631 = vadd.f32 0.0, %v2630
        %v2632 = vpop.f32.mrb[0].mxu0
        %2633 = vmatprep.mubr.bf16.mxu0 0
        %2634 = vmatmul.mubr.bf16.gmra.mrb[0].mxu0 %v2534
        %v2635 = vpop.f32.mrb[0].mxu0
        %v2636 = vadd.f32 0.0, %v2635
        %v2637 = vpop.f32.mrb[0].mxu0
        %v2638 = vpop.f32.mrb[0].mxu0
        %v2639 = vadd.f32 0.0, %v2638
        %v2640 = vpop.f32.mrb[0].mxu0
        %2641 = vmatprep.mubr.bf16.mxu0 0
        %2642 = vmatmul.mubr.bf16.gmra.mrb[0].mxu0 %v2537
        %v2643 = vpop.f32.mrb[0].mxu0
        %v2644 = vadd.f32 0.0, %v2643
        %v2645 = vpop.f32.mrb[0].mxu0
        %v2646 = vpop.f32.mrb[0].mxu0
        %v2647 = vadd.f32 0.0, %v2646
        %v2648 = vpop.f32.mrb[0].mxu0
        %2649 = vmatprep.mubr.bf16.mxu0 0
        %2650 = vmatmul.mubr.bf16.gmra.mrb[0].mxu0 %v2540
        %v2651 = vpop.f32.mrb[0].mxu0
        %v2652 = vadd.f32 0.0, %v2651
        %v2653 = vpop.f32.mrb[0].mxu0
        %v2654 = vpop.f32.mrb[0].mxu0
        %v2655 = vadd.f32 0.0, %v2654
        %v2656 = vpop.f32.mrb[0].mxu0
        %2657 = vmatprep.mubr.bf16.mxu0 0
        %2658 = vmatmul.mubr.bf16.gmra.mrb[0].mxu0 %v2543
        %v2659 = vpop.f32.mrb[0].mxu0
        %v2660 = vadd.f32 0.0, %v2659
        %v2661 = vpop.f32.mrb[0].mxu0
        %v2662 = vpop.f32.mrb[0].mxu0
        %v2663 = vadd.f32 0.0, %v2662
        %v2664 = vpop.f32.mrb[0].mxu0
        %2665 = vmatprep.mubr.bf16.mxu0 0
        %2666 = vmatmul.mubr.bf16.gmra.mrb[0].mxu0 %v2546
        %v2667 = vpop.f32.mrb[0].mxu0
        %v2668 = vadd.f32 0.0, %v2667
        %v2669 = vpop.f32.mrb[0].mxu0
        %v2670 = vpop.f32.mrb[0].mxu0
        %v2671 = vadd.f32 0.0, %v2670
        %v2672 = vpop.f32.mrb[0].mxu0
        %2673 = vmatprep.mubr.bf16.mxu0 0
        %2674 = vmatmul.mubr.bf16.gmra.mrb[0].mxu0 %v2549
        %v2675 = vpop.f32.mrb[0].mxu0
        %v2676 = vadd.f32 0.0, %v2675
        %v2677 = vpop.f32.mrb[0].mxu0
        %v2678 = vpop.f32.mrb[0].mxu0
        %v2679 = vadd.f32 0.0, %v2678
        %v2680 = vpop.f32.mrb[0].mxu0
        %2681 = vmatprep.mubr.bf16.mxu0 0
        %2682 = vmatmul.mubr.bf16.gmra.mrb[0].mxu0 %v2552
        %v2683 = vpop.f32.mrb[0].mxu0
        %v2684 = vadd.f32 0.0, %v2683
        %v2685 = vpop.f32.mrb[0].mxu0
        %v2686 = vpop.f32.mrb[0].mxu0
        %v2687 = vadd.f32 0.0, %v2686
        %v2688 = vpop.f32.mrb[0].mxu0
        %2689 = vmatprep.mubr.bf16.mxu0 0
        %2690 = vmatmul.mubr.bf16.gmra.mrb[0].mxu0 %v2555
        %v2691 = vpop.f32.mrb[0].mxu0
        %v2692 = vadd.f32 0.0, %v2691
        %v2693 = vpop.f32.mrb[0].mxu0
        %v2694 = vpop.f32.mrb[0].mxu0
        %v2695 = vadd.f32 0.0, %v2694
        %v2696 = vpop.f32.mrb[0].mxu0
        %2697 = vmatprep.mubr.bf16.mxu0 0
        %2698 = vmatmul.mubr.bf16.gmra.mrb[0].mxu0 %v2558
        %v2699 = vpop.f32.mrb[0].mxu0
        %v2700 = vadd.f32 0.0, %v2699
        %v2701 = vpop.f32.mrb[0].mxu0
        %v2702 = vpop.f32.mrb[0].mxu0
        %v2703 = vadd.f32 0.0, %v2702
        %v2704 = vpop.f32.mrb[0].mxu0
        %2705 = vmatprep.mubr.bf16.mxu0 0
        %2706 = vmatmul.mubr.bf16.gmra.mrb[0].mxu0 %v2561
        %v2707 = vpop.f32.mrb[0].mxu0
        %v2708 = vadd.f32 0.0, %v2707
        %v2709 = vpop.f32.mrb[0].mxu0
        %v2710 = vpop.f32.mrb[0].mxu0
        %v2711 = vadd.f32 0.0, %v2710
        %v2712 = vpop.f32.mrb[0].mxu0
        %2713 = vmatprep.mubr.bf16.mxu0 0
        %2714 = vmatmul.mubr.bf16.gmra.mrb[0].mxu0 %v2564
        %v2715 = vpop.f32.mrb[0].mxu0
        %v2716 = vadd.f32 0.0, %v2715
        %v2717 = vpop.f32.mrb[0].mxu0
        %v2718 = vpop.f32.mrb[0].mxu0
        %v2719 = vadd.f32 0.0, %v2718
        %v2720 = vpop.f32.mrb[0].mxu0
        %2721 = vmatprep.mubr.bf16.mxu0 0
        %2722 = vmatmul.mubr.bf16.gmra.mrb[0].mxu0 %v2567
        %v2723 = vpop.f32.mrb[0].mxu0
        %v2724 = vadd.f32 0.0, %v2723
        %v2725 = vpop.f32.mrb[0].mxu0
        %v2726 = vpop.f32.mrb[0].mxu0
        %v2727 = vadd.f32 0.0, %v2726
        %v2728 = vpop.f32.mrb[0].mxu0
        %2729 = vdwg.mxu0
        %v2730 = vadd.f32 %v2001, %v2604
        %v2731 = vadd.f32 %v2002, %v2607
        %v2732 = vadd.f32 %v2003, %v2612
        %v2733 = vadd.f32 %v2004, %v2615
        %v2734 = vadd.f32 %v2005, %v2620
        %v2735 = vadd.f32 %v2006, %v2623
        %v2736 = vadd.f32 %v2007, %v2628
        %v2737 = vadd.f32 %v2008, %v2631
        %v2738 = vadd.f32 %v2009, %v2636
        %v2739 = vadd.f32 %v2010, %v2639
        %v2740 = vadd.f32 %v2011, %v2644
        %v2741 = vadd.f32 %v2012, %v2647
        %v2742 = vadd.f32 %v2013, %v2652
        %v2743 = vadd.f32 %v2014, %v2655
        %v2744 = vadd.f32 %v2015, %v2660
        %v2745 = vadd.f32 %v2016, %v2663
        %v2746 = vadd.f32 %v2017, %v2668
        %v2747 = vadd.f32 %v2018, %v2671
        %v2748 = vadd.f32 %v2019, %v2676
        %v2749 = vadd.f32 %v2020, %v2679
        %v2750 = vadd.f32 %v2021, %v2684
        %v2751 = vadd.f32 %v2022, %v2687
        %v2752 = vadd.f32 %v2023, %v2692
        %v2753 = vadd.f32 %v2024, %v2695
        %v2754 = vadd.f32 %v2025, %v2700
        %v2755 = vadd.f32 %v2026, %v2703
        %v2756 = vadd.f32 %v2027, %v2708
        %v2757 = vadd.f32 %v2028, %v2711
        %v2758 = vadd.f32 %v2029, %v2716
        %v2759 = vadd.f32 %v2030, %v2719
        %v2760 = vadd.f32 %v2031, %v2724
        %v2761 = vadd.f32 %v2032, %v2727
        %v2762 = vld [vmem:[%s1671] sm:$0xe]
        %v2763 = vld [vmem:[%s1671 + $0xc] sm:$0xe]
        %v2764 = vld [vmem:[%s1671 + $0x18] sm:$0xe]
        %v2765 = vld [vmem:[%s1671 + $0x24] sm:$0xe]
        %v2766 = vld [vmem:[%s1671 + $0x30] sm:$0xe]
        %v2767 = vld [vmem:[%s1671 + $0x3c] sm:$0xe]
        %v2768 = vld [vmem:[%s1671 + $0x48] sm:$0xe]
        %v2769 = vld [vmem:[%s1671 + $0x54] sm:$0xe]
        %v2770 = vld [vmem:[%s1671 + $0x60] sm:$0xe]
        %v2771 = vld [vmem:[%s1671 + $0x6c] sm:$0xe]
        %v2772 = vld [vmem:[%s1671 + $0x78] sm:$0xe]
        %v2773 = vld [vmem:[%s1671 + $0x84] sm:$0xe]
        %v2774 = vld [vmem:[%s1671 + $0x90] sm:$0xe]
        %v2775 = vld [vmem:[%s1671 + $0x9c] sm:$0xe]
        %v2776 = vld [vmem:[%s1671 + $0xa8] sm:$0xe]
        %v2777 = vld [vmem:[%s1671 + $0xb4] sm:$0xe]
        %v2826 = vrot.slane %v2762, 5
        %v2827 = vrot.slane %v2826, 4
        %v2828 = vrot.slane %v2034, 5
        %v2829 = vsel %vm1261, %v2827, %v2828
        %v2830 = vrot.slane %v2828, 4
        %v2831 = vrot.slane %v2035, 5
        %v2832 = vsel %vm1261, %v2830, %v2831
        %v2833 = vrot.slane %v2763, 5
        %v2834 = vrot.slane %v2833, 4
        %v2835 = vrot.slane %v2037, 5
        %v2836 = vsel %vm1261, %v2834, %v2835
        %v2837 = vrot.slane %v2835, 4
        %v2838 = vrot.slane %v2038, 5
        %v2839 = vsel %vm1261, %v2837, %v2838
        %v2840 = vrot.slane %v2764, 5
        %v2841 = vrot.slane %v2840, 4
        %v2842 = vrot.slane %v2040, 5
        %v2843 = vsel %vm1261, %v2841, %v2842
        %v2844 = vrot.slane %v2842, 4
        %v2845 = vrot.slane %v2041, 5
        %v2846 = vsel %vm1261, %v2844, %v2845
        %v2847 = vrot.slane %v2765, 5
        %v2848 = vrot.slane %v2847, 4
        %v2849 = vrot.slane %v2043, 5
        %v2850 = vsel %vm1261, %v2848, %v2849
        %v2851 = vrot.slane %v2849, 4
        %v2852 = vrot.slane %v2044, 5
        %v2853 = vsel %vm1261, %v2851, %v2852
        %v2854 = vrot.slane %v2766, 5
        %v2855 = vrot.slane %v2854, 4
        %v2856 = vrot.slane %v2046, 5
        %v2857 = vsel %vm1261, %v2855, %v2856
        %v2858 = vrot.slane %v2856, 4
        %v2859 = vrot.slane %v2047, 5
        %v2860 = vsel %vm1261, %v2858, %v2859
        %v2861 = vrot.slane %v2767, 5
        %v2862 = vrot.slane %v2861, 4
        %v2863 = vrot.slane %v2049, 5
        %v2864 = vsel %vm1261, %v2862, %v2863
        %v2865 = vrot.slane %v2863, 4
        %v2866 = vrot.slane %v2050, 5
        %v2867 = vsel %vm1261, %v2865, %v2866
        %v2868 = vrot.slane %v2768, 5
        %v2869 = vrot.slane %v2868, 4
        %v2870 = vrot.slane %v2052, 5
        %v2871 = vsel %vm1261, %v2869, %v2870
        %v2872 = vrot.slane %v2870, 4
        %v2873 = vrot.slane %v2053, 5
        %v2874 = vsel %vm1261, %v2872, %v2873
        %v2875 = vrot.slane %v2769, 5
        %v2876 = vrot.slane %v2875, 4
        %v2877 = vrot.slane %v2055, 5
        %v2878 = vsel %vm1261, %v2876, %v2877
        %v2879 = vrot.slane %v2877, 4
        %v2880 = vrot.slane %v2056, 5
        %v2881 = vsel %vm1261, %v2879, %v2880
        %v2882 = vrot.slane %v2770, 5
        %v2883 = vrot.slane %v2882, 4
        %v2884 = vrot.slane %v2058, 5
        %v2885 = vsel %vm1261, %v2883, %v2884
        %v2886 = vrot.slane %v2884, 4
        %v2887 = vrot.slane %v2059, 5
        %v2888 = vsel %vm1261, %v2886, %v2887
        %v2889 = vrot.slane %v2771, 5
        %v2890 = vrot.slane %v2889, 4
        %v2891 = vrot.slane %v2061, 5
        %v2892 = vsel %vm1261, %v2890, %v2891
        %v2893 = vrot.slane %v2891, 4
        %v2894 = vrot.slane %v2062, 5
        %v2895 = vsel %vm1261, %v2893, %v2894
        %v2896 = vrot.slane %v2772, 5
        %v2897 = vrot.slane %v2896, 4
        %v2898 = vrot.slane %v2064, 5
        %v2899 = vsel %vm1261, %v2897, %v2898
        %v2900 = vrot.slane %v2898, 4
        %v2901 = vrot.slane %v2065, 5
        %v2902 = vsel %vm1261, %v2900, %v2901
        %v2903 = vrot.slane %v2773, 5
        %v2904 = vrot.slane %v2903, 4
        %v2905 = vrot.slane %v2067, 5
        %v2906 = vsel %vm1261, %v2904, %v2905
        %v2907 = vrot.slane %v2905, 4
        %v2908 = vrot.slane %v2068, 5
        %v2909 = vsel %vm1261, %v2907, %v2908
        %v2910 = vrot.slane %v2774, 5
        %v2911 = vrot.slane %v2910, 4
        %v2912 = vrot.slane %v2070, 5
        %v2913 = vsel %vm1261, %v2911, %v2912
        %v2914 = vrot.slane %v2912, 4
        %v2915 = vrot.slane %v2071, 5
        %v2916 = vsel %vm1261, %v2914, %v2915
        %v2917 = vrot.slane %v2775, 5
        %v2918 = vrot.slane %v2917, 4
        %v2919 = vrot.slane %v2073, 5
        %v2920 = vsel %vm1261, %v2918, %v2919
        %v2921 = vrot.slane %v2919, 4
        %v2922 = vrot.slane %v2074, 5
        %v2923 = vsel %vm1261, %v2921, %v2922
        %v2924 = vrot.slane %v2776, 5
        %v2925 = vrot.slane %v2924, 4
        %v2926 = vrot.slane %v2076, 5
        %v2927 = vsel %vm1261, %v2925, %v2926
        %v2928 = vrot.slane %v2926, 4
        %v2929 = vrot.slane %v2077, 5
        %v2930 = vsel %vm1261, %v2928, %v2929
        %v2931 = vrot.slane %v2777, 5
        %v2932 = vrot.slane %v2931, 4
        %v2933 = vrot.slane %v2079, 5
        %v2934 = vsel %vm1261, %v2932, %v2933
        %v2935 = vrot.slane %v2933, 4
        %v2936 = vrot.slane %v2080, 5
        %v2937 = vsel %vm1261, %v2935, %v2936
        %v2938 = vld [vmem:[%s244 + $0x28] sm:$0xf]
        %v2939 = vld [vmem:[%s244 + $0x2c] sm:$0xf]
        %v2940 = vunpack.c.l.b16 %v2829
        %v2941 = vunpack.c.l.b16 %v2832
        %v2942 = vunpack.c.l.b16 %v2836
        %v2943 = vunpack.c.l.b16 %v2839
        %v2944 = vunpack.c.l.b16 %v2843
        %v2945 = vunpack.c.l.b16 %v2846
        %v2946 = vunpack.c.l.b16 %v2850
        %v2947 = vunpack.c.l.b16 %v2853
        %v2948 = vunpack.c.l.b16 %v2857
        %v2949 = vunpack.c.l.b16 %v2860
        %v2950 = vunpack.c.l.b16 %v2864
        %v2951 = vunpack.c.l.b16 %v2867
        %v2952 = vunpack.c.l.b16 %v2871
        %v2953 = vunpack.c.l.b16 %v2874
        %v2954 = vunpack.c.l.b16 %v2878
        %v2955 = vunpack.c.l.b16 %v2881
        %v2956 = vunpack.c.l.b16 %v2885
        %v2957 = vunpack.c.l.b16 %v2888
        %v2958 = vunpack.c.l.b16 %v2892
        %v2959 = vunpack.c.l.b16 %v2895
        %v2960 = vunpack.c.l.b16 %v2899
        %v2961 = vunpack.c.l.b16 %v2902
        %v2962 = vunpack.c.l.b16 %v2906
        %v2963 = vunpack.c.l.b16 %v2909
        %v2964 = vunpack.c.l.b16 %v2913
        %v2965 = vunpack.c.l.b16 %v2916
        %v2966 = vunpack.c.l.b16 %v2920
        %v2967 = vunpack.c.l.b16 %v2923
        %v2968 = vunpack.c.l.b16 %v2927
        %v2969 = vunpack.c.l.b16 %v2930
        %v2970 = vunpack.c.l.b16 %v2934
        %v2971 = vunpack.c.l.b16 %v2937
        %v2972 = vpack.c.b16 %v2941, %v2940
        %v2973 = vpack.c.b16 %v2943, %v2942
        %v2974 = vpack.c.b16 %v2945, %v2944
        %v2975 = vpack.c.b16 %v2947, %v2946
        %v2976 = vpack.c.b16 %v2949, %v2948
        %v2977 = vpack.c.b16 %v2951, %v2950
        %v2978 = vpack.c.b16 %v2953, %v2952
        %v2979 = vpack.c.b16 %v2955, %v2954
        %v2980 = vpack.c.b16 %v2957, %v2956
        %v2981 = vpack.c.b16 %v2959, %v2958
        %v2982 = vpack.c.b16 %v2961, %v2960
        %v2983 = vpack.c.b16 %v2963, %v2962
        %v2984 = vpack.c.b16 %v2965, %v2964
        %v2985 = vpack.c.b16 %v2967, %v2966
        %v2986 = vpack.c.b16 %v2969, %v2968
        %v2987 = vpack.c.b16 %v2971, %v2970
        %v2990 = vunpack.c.l.b16 %v2938
        %v2991 = vunpack.c.l.b16 %v2939
        %v2992 = vpack.c.b16 %v2991, %v2990
        %v2995 = vsel %vm706, %v2972, 0
        %v2998 = vsel %vm706, %v2973, 0
        %v3001 = vsel %vm706, %v2974, 0
        %v3004 = vsel %vm706, %v2975, 0
        %v3007 = vsel %vm706, %v2976, 0
        %v3010 = vsel %vm706, %v2977, 0
        %v3013 = vsel %vm706, %v2978, 0
        %v3016 = vsel %vm706, %v2979, 0
        %v3019 = vsel %vm706, %v2980, 0
        %v3022 = vsel %vm706, %v2981, 0
        %v3025 = vsel %vm706, %v2982, 0
        %v3028 = vsel %vm706, %v2983, 0
        %v3031 = vsel %vm706, %v2984, 0
        %v3034 = vsel %vm706, %v2985, 0
        %v3037 = vsel %vm706, %v2986, 0
        %v3040 = vsel %vm706, %v2987, 0
        %3042 = vmatprep.subr.bf16.mxu0 0
        %3043 = vmatpush1.bf16.msra.mxu0 %v2992
        %3044 = vmatprep.subr.bf16.mxu0 0
        %3045 = vmatpush1.bf16.msra.mxu0 0
        %3046 = vmatprep.subr.bf16.mxu0 0
        %3047 = vmatpush1.bf16.msra.mxu0 0
        %3048 = vmatprep.subr.bf16.mxu0 0
        %3049 = vmatpush1.bf16.msra.mxu0 0
        %3050 = vmatprep.subr.bf16.mxu0 0
        %3051 = vmatpush1.bf16.msra.mxu0 0
        %3052 = vmatprep.subr.bf16.mxu0 0
        %3053 = vmatpush1.bf16.msra.mxu0 0
        %3054 = vmatprep.subr.bf16.mxu0 0
        %3055 = vmatpush1.bf16.msra.mxu0 0
        %3056 = vmatprep.subr.bf16.mxu0 0
        %3057 = vmatpush1.bf16.msra.mxu0 0
        %3058 = vmatprep.subr.bf16.mxu0 0
        %3059 = vmatpush1.bf16.msra.mxu0 0
        %3060 = vmatprep.subr.bf16.mxu0 0
        %3061 = vmatpush1.bf16.msra.mxu0 0
        %3062 = vmatprep.subr.bf16.mxu0 0
        %3063 = vmatpush1.bf16.msra.mxu0 0
        %3064 = vmatprep.subr.bf16.mxu0 0
        %3065 = vmatpush1.bf16.msra.mxu0 0
        %3066 = vmatprep.subr.bf16.mxu0 0
        %3067 = vmatpush1.bf16.msra.mxu0 0
        %3068 = vmatprep.subr.bf16.mxu0 0
        %3069 = vmatpush1.bf16.msra.mxu0 0
        %3070 = vmatprep.subr.bf16.mxu0 0
        %3071 = vmatpush1.bf16.msra.mxu0 0
        %3072 = vmatprep.subr.bf16.mxu0 0
        %3073 = vmatpush1.bf16.msra.mxu0 0
        %3074 = vmatprep.mubr.bf16.mxu0 0
        %3075 = vmatmul.mubr.bf16.gmra.mrb[0].mxu0 %v2995
        %v3076 = vpop.f32.mrb[0].mxu0
        %v3077 = vadd.f32 0.0, %v3076
        %v3078 = vpop.f32.mrb[0].mxu0
        %v3079 = vpop.f32.mrb[0].mxu0
        %v3080 = vadd.f32 0.0, %v3079
        %v3081 = vpop.f32.mrb[0].mxu0
        %3082 = vmatprep.mubr.bf16.mxu0 0
        %3083 = vmatmul.mubr.bf16.gmra.mrb[0].mxu0 %v2998
        %v3084 = vpop.f32.mrb[0].mxu0
        %v3085 = vadd.f32 0.0, %v3084
        %v3086 = vpop.f32.mrb[0].mxu0
        %v3087 = vpop.f32.mrb[0].mxu0
        %v3088 = vadd.f32 0.0, %v3087
        %v3089 = vpop.f32.mrb[0].mxu0
        %3090 = vmatprep.mubr.bf16.mxu0 0
        %3091 = vmatmul.mubr.bf16.gmra.mrb[0].mxu0 %v3001
        %v3092 = vpop.f32.mrb[0].mxu0
        %v3093 = vadd.f32 0.0, %v3092
        %v3094 = vpop.f32.mrb[0].mxu0
        %v3095 = vpop.f32.mrb[0].mxu0
        %v3096 = vadd.f32 0.0, %v3095
        %v3097 = vpop.f32.mrb[0].mxu0
        %3098 = vmatprep.mubr.bf16.mxu0 0
        %3099 = vmatmul.mubr.bf16.gmra.mrb[0].mxu0 %v3004
        %v3100 = vpop.f32.mrb[0].mxu0
        %v3101 = vadd.f32 0.0, %v3100
        %v3102 = vpop.f32.mrb[0].mxu0
        %v3103 = vpop.f32.mrb[0].mxu0
        %v3104 = vadd.f32 0.0, %v3103
        %v3105 = vpop.f32.mrb[0].mxu0
        %3106 = vmatprep.mubr.bf16.mxu0 0
        %3107 = vmatmul.mubr.bf16.gmra.mrb[0].mxu0 %v3007
        %v3108 = vpop.f32.mrb[0].mxu0
        %v3109 = vadd.f32 0.0, %v3108
        %v3110 = vpop.f32.mrb[0].mxu0
        %v3111 = vpop.f32.mrb[0].mxu0
        %v3112 = vadd.f32 0.0, %v3111
        %v3113 = vpop.f32.mrb[0].mxu0
        %3114 = vmatprep.mubr.bf16.mxu0 0
        %3115 = vmatmul.mubr.bf16.gmra.mrb[0].mxu0 %v3010
        %v3116 = vpop.f32.mrb[0].mxu0
        %v3117 = vadd.f32 0.0, %v3116
        %v3118 = vpop.f32.mrb[0].mxu0
        %v3119 = vpop.f32.mrb[0].mxu0
        %v3120 = vadd.f32 0.0, %v3119
        %v3121 = vpop.f32.mrb[0].mxu0
        %3122 = vmatprep.mubr.bf16.mxu0 0
        %3123 = vmatmul.mubr.bf16.gmra.mrb[0].mxu0 %v3013
        %v3124 = vpop.f32.mrb[0].mxu0
        %v3125 = vadd.f32 0.0, %v3124
        %v3126 = vpop.f32.mrb[0].mxu0
        %v3127 = vpop.f32.mrb[0].mxu0
        %v3128 = vadd.f32 0.0, %v3127
        %v3129 = vpop.f32.mrb[0].mxu0
        %3130 = vmatprep.mubr.bf16.mxu0 0
        %3131 = vmatmul.mubr.bf16.gmra.mrb[0].mxu0 %v3016
        %v3132 = vpop.f32.mrb[0].mxu0
        %v3133 = vadd.f32 0.0, %v3132
        %v3134 = vpop.f32.mrb[0].mxu0
        %v3135 = vpop.f32.mrb[0].mxu0
        %v3136 = vadd.f32 0.0, %v3135
        %v3137 = vpop.f32.mrb[0].mxu0
        %3138 = vmatprep.mubr.bf16.mxu0 0
        %3139 = vmatmul.mubr.bf16.gmra.mrb[0].mxu0 %v3019
        %v3140 = vpop.f32.mrb[0].mxu0
        %v3141 = vadd.f32 0.0, %v3140
        %v3142 = vpop.f32.mrb[0].mxu0
        %v3143 = vpop.f32.mrb[0].mxu0
        %v3144 = vadd.f32 0.0, %v3143
        %v3145 = vpop.f32.mrb[0].mxu0
        %3146 = vmatprep.mubr.bf16.mxu0 0
        %3147 = vmatmul.mubr.bf16.gmra.mrb[0].mxu0 %v3022
        %v3148 = vpop.f32.mrb[0].mxu0
        %v3149 = vadd.f32 0.0, %v3148
        %v3150 = vpop.f32.mrb[0].mxu0
        %v3151 = vpop.f32.mrb[0].mxu0
        %v3152 = vadd.f32 0.0, %v3151
        %v3153 = vpop.f32.mrb[0].mxu0
        %3154 = vmatprep.mubr.bf16.mxu0 0
        %3155 = vmatmul.mubr.bf16.gmra.mrb[0].mxu0 %v3025
        %v3156 = vpop.f32.mrb[0].mxu0
        %v3157 = vadd.f32 0.0, %v3156
        %v3158 = vpop.f32.mrb[0].mxu0
        %v3159 = vpop.f32.mrb[0].mxu0
        %v3160 = vadd.f32 0.0, %v3159
        %v3161 = vpop.f32.mrb[0].mxu0
        %3162 = vmatprep.mubr.bf16.mxu0 0
        %3163 = vmatmul.mubr.bf16.gmra.mrb[0].mxu0 %v3028
        %v3164 = vpop.f32.mrb[0].mxu0
        %v3165 = vadd.f32 0.0, %v3164
        %v3166 = vpop.f32.mrb[0].mxu0
        %v3167 = vpop.f32.mrb[0].mxu0
        %v3168 = vadd.f32 0.0, %v3167
        %v3169 = vpop.f32.mrb[0].mxu0
        %3170 = vmatprep.mubr.bf16.mxu0 0
        %3171 = vmatmul.mubr.bf16.gmra.mrb[0].mxu0 %v3031
        %v3172 = vpop.f32.mrb[0].mxu0
        %v3173 = vadd.f32 0.0, %v3172
        %v3174 = vpop.f32.mrb[0].mxu0
        %v3175 = vpop.f32.mrb[0].mxu0
        %v3176 = vadd.f32 0.0, %v3175
        %v3177 = vpop.f32.mrb[0].mxu0
        %3178 = vmatprep.mubr.bf16.mxu0 0
        %3179 = vmatmul.mubr.bf16.gmra.mrb[0].mxu0 %v3034
        %v3180 = vpop.f32.mrb[0].mxu0
        %v3181 = vadd.f32 0.0, %v3180
        %v3182 = vpop.f32.mrb[0].mxu0
        %v3183 = vpop.f32.mrb[0].mxu0
        %v3184 = vadd.f32 0.0, %v3183
        %v3185 = vpop.f32.mrb[0].mxu0
        %3186 = vmatprep.mubr.bf16.mxu0 0
        %3187 = vmatmul.mubr.bf16.gmra.mrb[0].mxu0 %v3037
        %v3188 = vpop.f32.mrb[0].mxu0
        %v3189 = vadd.f32 0.0, %v3188
        %v3190 = vpop.f32.mrb[0].mxu0
        %v3191 = vpop.f32.mrb[0].mxu0
        %v3192 = vadd.f32 0.0, %v3191
        %v3193 = vpop.f32.mrb[0].mxu0
        %3194 = vmatprep.mubr.bf16.mxu0 0
        %3195 = vmatmul.mubr.bf16.gmra.mrb[0].mxu0 %v3040
        %v3196 = vpop.f32.mrb[0].mxu0
        %v3197 = vadd.f32 0.0, %v3196
        %v3198 = vpop.f32.mrb[0].mxu0
        %v3199 = vpop.f32.mrb[0].mxu0
        %v3200 = vadd.f32 0.0, %v3199
        %v3201 = vpop.f32.mrb[0].mxu0
        %3202 = vdwg.mxu0
        %v3203 = vadd.f32 %v2730, %v3077
        %v3204 = vadd.f32 %v2731, %v3080
        %v3205 = vadd.f32 %v2732, %v3085
        %v3206 = vadd.f32 %v2733, %v3088
        %v3207 = vadd.f32 %v2734, %v3093
        %v3208 = vadd.f32 %v2735, %v3096
        %v3209 = vadd.f32 %v2736, %v3101
        %v3210 = vadd.f32 %v2737, %v3104
        %v3211 = vadd.f32 %v2738, %v3109
        %v3212 = vadd.f32 %v2739, %v3112
        %v3213 = vadd.f32 %v2740, %v3117
        %v3214 = vadd.f32 %v2741, %v3120
        %v3215 = vadd.f32 %v2742, %v3125
        %v3216 = vadd.f32 %v2743, %v3128
        %v3217 = vadd.f32 %v2744, %v3133
        %v3218 = vadd.f32 %v2745, %v3136
        %v3219 = vadd.f32 %v2746, %v3141
        %v3220 = vadd.f32 %v2747, %v3144
        %v3221 = vadd.f32 %v2748, %v3149
        %v3222 = vadd.f32 %v2749, %v3152
        %v3223 = vadd.f32 %v2750, %v3157
        %v3224 = vadd.f32 %v2751, %v3160
        %v3225 = vadd.f32 %v2752, %v3165
        %v3226 = vadd.f32 %v2753, %v3168
        %v3227 = vadd.f32 %v2754, %v3173
        %v3228 = vadd.f32 %v2755, %v3176
        %v3229 = vadd.f32 %v2756, %v3181
        %v3230 = vadd.f32 %v2757, %v3184
        %v3231 = vadd.f32 %v2758, %v3189
        %v3232 = vadd.f32 %v2759, %v3192
        %v3233 = vadd.f32 %v2760, %v3197
        %v3234 = vadd.f32 %v2761, %v3200
        %s3235 = scalar_lea.vmem %s205, 24
        %v3236 = vld [vmem:[%s3235] sm:$0xf]
        %v3237 = vld [vmem:[%s3235 + $0x4] sm:$0xf]
        %v3238 = vld [vmem:[%s3235 + $0xc] sm:$0xf]
        %v3239 = vld [vmem:[%s3235 + $0x10] sm:$0xf]
        %v3240 = vld [vmem:[%s3235 + $0x18] sm:$0xf]
        %v3241 = vld [vmem:[%s3235 + $0x1c] sm:$0xf]
        %v3242 = vld [vmem:[%s3235 + $0x24] sm:$0xf]
        %v3243 = vld [vmem:[%s3235 + $0x28] sm:$0xf]
        %v3244 = vld [vmem:[%s3235 + $0x30] sm:$0xf]
        %v3245 = vld [vmem:[%s3235 + $0x34] sm:$0xf]
        %v3246 = vld [vmem:[%s3235 + $0x3c] sm:$0xf]
        %v3247 = vld [vmem:[%s3235 + $0x40] sm:$0xf]
        %v3248 = vld [vmem:[%s3235 + $0x48] sm:$0xf]
        %v3249 = vld [vmem:[%s3235 + $0x4c] sm:$0xf]
        %v3250 = vld [vmem:[%s3235 + $0x54] sm:$0xf]
        %v3251 = vld [vmem:[%s3235 + $0x58] sm:$0xf]
        %v3252 = vld [vmem:[%s3235 + $0x60] sm:$0xf]
        %v3253 = vld [vmem:[%s3235 + $0x64] sm:$0xf]
        %v3254 = vld [vmem:[%s3235 + $0x6c] sm:$0xf]
        %v3255 = vld [vmem:[%s3235 + $0x70] sm:$0xf]
        %v3256 = vld [vmem:[%s3235 + $0x78] sm:$0xf]
        %v3257 = vld [vmem:[%s3235 + $0x7c] sm:$0xf]
        %v3258 = vld [vmem:[%s3235 + $0x84] sm:$0xf]
        %v3259 = vld [vmem:[%s3235 + $0x88] sm:$0xf]
        %v3260 = vld [vmem:[%s3235 + $0x90] sm:$0xf]
        %v3261 = vld [vmem:[%s3235 + $0x94] sm:$0xf]
        %v3262 = vld [vmem:[%s3235 + $0x9c] sm:$0xf]
        %v3263 = vld [vmem:[%s3235 + $0xa0] sm:$0xf]
        %v3264 = vld [vmem:[%s3235 + $0xa8] sm:$0xf]
        %v3265 = vld [vmem:[%s3235 + $0xac] sm:$0xf]
        %v3266 = vld [vmem:[%s3235 + $0xb4] sm:$0xf]
        %v3267 = vld [vmem:[%s3235 + $0xb8] sm:$0xf]
        %v3268 = vld [vmem:[%s244 + $0x30] sm:$0xf]
        %v3269 = vld [vmem:[%s244 + $0x34] sm:$0xf]
        %v3302 = vunpack.c.l.b16 %v3236
        %v3303 = vunpack.c.l.b16 %v3237
        %v3304 = vunpack.c.l.b16 %v3238
        %v3305 = vunpack.c.l.b16 %v3239
        %v3306 = vunpack.c.l.b16 %v3240
        %v3307 = vunpack.c.l.b16 %v3241
        %v3308 = vunpack.c.l.b16 %v3242
        %v3309 = vunpack.c.l.b16 %v3243
        %v3310 = vunpack.c.l.b16 %v3244
        %v3311 = vunpack.c.l.b16 %v3245
        %v3312 = vunpack.c.l.b16 %v3246
        %v3313 = vunpack.c.l.b16 %v3247
        %v3314 = vunpack.c.l.b16 %v3248
        %v3315 = vunpack.c.l.b16 %v3249
        %v3316 = vunpack.c.l.b16 %v3250
        %v3317 = vunpack.c.l.b16 %v3251
        %v3318 = vunpack.c.l.b16 %v3252
        %v3319 = vunpack.c.l.b16 %v3253
        %v3320 = vunpack.c.l.b16 %v3254
        %v3321 = vunpack.c.l.b16 %v3255
        %v3322 = vunpack.c.l.b16 %v3256
        %v3323 = vunpack.c.l.b16 %v3257
        %v3324 = vunpack.c.l.b16 %v3258
        %v3325 = vunpack.c.l.b16 %v3259
        %v3326 = vunpack.c.l.b16 %v3260
        %v3327 = vunpack.c.l.b16 %v3261
        %v3328 = vunpack.c.l.b16 %v3262
        %v3329 = vunpack.c.l.b16 %v3263
        %v3330 = vunpack.c.l.b16 %v3264
        %v3331 = vunpack.c.l.b16 %v3265
        %v3332 = vunpack.c.l.b16 %v3266
        %v3333 = vunpack.c.l.b16 %v3267
        %v3334 = vpack.c.b16 %v3303, %v3302
        %v3335 = vpack.c.b16 %v3305, %v3304
        %v3336 = vpack.c.b16 %v3307, %v3306
        %v3337 = vpack.c.b16 %v3309, %v3308
        %v3338 = vpack.c.b16 %v3311, %v3310
        %v3339 = vpack.c.b16 %v3313, %v3312
        %v3340 = vpack.c.b16 %v3315, %v3314
        %v3341 = vpack.c.b16 %v3317, %v3316
        %v3342 = vpack.c.b16 %v3319, %v3318
        %v3343 = vpack.c.b16 %v3321, %v3320
        %v3344 = vpack.c.b16 %v3323, %v3322
        %v3345 = vpack.c.b16 %v3325, %v3324
        %v3346 = vpack.c.b16 %v3327, %v3326
        %v3347 = vpack.c.b16 %v3329, %v3328
        %v3348 = vpack.c.b16 %v3331, %v3330
        %v3349 = vpack.c.b16 %v3333, %v3332
        %v3352 = vunpack.c.l.b16 %v3268
        %v3353 = vunpack.c.l.b16 %v3269
        %v3354 = vpack.c.b16 %v3353, %v3352
        %v3357 = vsel %vm706, %v3334, 0
        %v3360 = vsel %vm706, %v3335, 0
        %v3363 = vsel %vm706, %v3336, 0
        %v3366 = vsel %vm706, %v3337, 0
        %v3369 = vsel %vm706, %v3338, 0
        %v3372 = vsel %vm706, %v3339, 0
        %v3375 = vsel %vm706, %v3340, 0
        %v3378 = vsel %vm706, %v3341, 0
        %v3381 = vsel %vm706, %v3342, 0
        %v3384 = vsel %vm706, %v3343, 0
        %v3387 = vsel %vm706, %v3344, 0
        %v3390 = vsel %vm706, %v3345, 0
        %v3393 = vsel %vm706, %v3346, 0
        %v3396 = vsel %vm706, %v3347, 0
        %v3399 = vsel %vm706, %v3348, 0
        %v3402 = vsel %vm706, %v3349, 0
        %3404 = vmatprep.subr.bf16.mxu0 0
        %3405 = vmatpush1.bf16.msra.mxu0 %v3354
        %3406 = vmatprep.subr.bf16.mxu0 0
        %3407 = vmatpush1.bf16.msra.mxu0 0
        %3408 = vmatprep.subr.bf16.mxu0 0
        %3409 = vmatpush1.bf16.msra.mxu0 0
        %3410 = vmatprep.subr.bf16.mxu0 0
        %3411 = vmatpush1.bf16.msra.mxu0 0
        %3412 = vmatprep.subr.bf16.mxu0 0
        %3413 = vmatpush1.bf16.msra.mxu0 0
        %3414 = vmatprep.subr.bf16.mxu0 0
        %3415 = vmatpush1.bf16.msra.mxu0 0
        %3416 = vmatprep.subr.bf16.mxu0 0
        %3417 = vmatpush1.bf16.msra.mxu0 0
        %3418 = vmatprep.subr.bf16.mxu0 0
        %3419 = vmatpush1.bf16.msra.mxu0 0
        %3420 = vmatprep.subr.bf16.mxu0 0
        %3421 = vmatpush1.bf16.msra.mxu0 0
        %3422 = vmatprep.subr.bf16.mxu0 0
        %3423 = vmatpush1.bf16.msra.mxu0 0
        %3424 = vmatprep.subr.bf16.mxu0 0
        %3425 = vmatpush1.bf16.msra.mxu0 0
        %3426 = vmatprep.subr.bf16.mxu0 0
        %3427 = vmatpush1.bf16.msra.mxu0 0
        %3428 = vmatprep.subr.bf16.mxu0 0
        %3429 = vmatpush1.bf16.msra.mxu0 0
        %3430 = vmatprep.subr.bf16.mxu0 0
        %3431 = vmatpush1.bf16.msra.mxu0 0
        %3432 = vmatprep.subr.bf16.mxu0 0
        %3433 = vmatpush1.bf16.msra.mxu0 0
        %3434 = vmatprep.subr.bf16.mxu0 0
        %3435 = vmatpush1.bf16.msra.mxu0 0
        %3436 = vmatprep.mubr.bf16.mxu0 0
        %3437 = vmatmul.mubr.bf16.gmra.mrb[0].mxu0 %v3357
        %v3438 = vpop.f32.mrb[0].mxu0
        %v3439 = vadd.f32 0.0, %v3438
        %v3440 = vpop.f32.mrb[0].mxu0
        %v3441 = vpop.f32.mrb[0].mxu0
        %v3442 = vadd.f32 0.0, %v3441
        %v3443 = vpop.f32.mrb[0].mxu0
        %3444 = vmatprep.mubr.bf16.mxu0 0
        %3445 = vmatmul.mubr.bf16.gmra.mrb[0].mxu0 %v3360
        %v3446 = vpop.f32.mrb[0].mxu0
        %v3447 = vadd.f32 0.0, %v3446
        %v3448 = vpop.f32.mrb[0].mxu0
        %v3449 = vpop.f32.mrb[0].mxu0
        %v3450 = vadd.f32 0.0, %v3449
        %v3451 = vpop.f32.mrb[0].mxu0
        %3452 = vmatprep.mubr.bf16.mxu0 0
        %3453 = vmatmul.mubr.bf16.gmra.mrb[0].mxu0 %v3363
        %v3454 = vpop.f32.mrb[0].mxu0
        %v3455 = vadd.f32 0.0, %v3454
        %v3456 = vpop.f32.mrb[0].mxu0
        %v3457 = vpop.f32.mrb[0].mxu0
        %v3458 = vadd.f32 0.0, %v3457
        %v3459 = vpop.f32.mrb[0].mxu0
        %3460 = vmatprep.mubr.bf16.mxu0 0
        %3461 = vmatmul.mubr.bf16.gmra.mrb[0].mxu0 %v3366
        %v3462 = vpop.f32.mrb[0].mxu0
        %v3463 = vadd.f32 0.0, %v3462
        %v3464 = vpop.f32.mrb[0].mxu0
        %v3465 = vpop.f32.mrb[0].mxu0
        %v3466 = vadd.f32 0.0, %v3465
        %v3467 = vpop.f32.mrb[0].mxu0
        %3468 = vmatprep.mubr.bf16.mxu0 0
        %3469 = vmatmul.mubr.bf16.gmra.mrb[0].mxu0 %v3369
        %v3470 = vpop.f32.mrb[0].mxu0
        %v3471 = vadd.f32 0.0, %v3470
        %v3472 = vpop.f32.mrb[0].mxu0
        %v3473 = vpop.f32.mrb[0].mxu0
        %v3474 = vadd.f32 0.0, %v3473
        %v3475 = vpop.f32.mrb[0].mxu0
        %3476 = vmatprep.mubr.bf16.mxu0 0
        %3477 = vmatmul.mubr.bf16.gmra.mrb[0].mxu0 %v3372
        %v3478 = vpop.f32.mrb[0].mxu0
        %v3479 = vadd.f32 0.0, %v3478
        %v3480 = vpop.f32.mrb[0].mxu0
        %v3481 = vpop.f32.mrb[0].mxu0
        %v3482 = vadd.f32 0.0, %v3481
        %v3483 = vpop.f32.mrb[0].mxu0
        %3484 = vmatprep.mubr.bf16.mxu0 0
        %3485 = vmatmul.mubr.bf16.gmra.mrb[0].mxu0 %v3375
        %v3486 = vpop.f32.mrb[0].mxu0
        %v3487 = vadd.f32 0.0, %v3486
        %v3488 = vpop.f32.mrb[0].mxu0
        %v3489 = vpop.f32.mrb[0].mxu0
        %v3490 = vadd.f32 0.0, %v3489
        %v3491 = vpop.f32.mrb[0].mxu0
        %3492 = vmatprep.mubr.bf16.mxu0 0
        %3493 = vmatmul.mubr.bf16.gmra.mrb[0].mxu0 %v3378
        %v3494 = vpop.f32.mrb[0].mxu0
        %v3495 = vadd.f32 0.0, %v3494
        %v3496 = vpop.f32.mrb[0].mxu0
        %v3497 = vpop.f32.mrb[0].mxu0
        %v3498 = vadd.f32 0.0, %v3497
        %v3499 = vpop.f32.mrb[0].mxu0
        %3500 = vmatprep.mubr.bf16.mxu0 0
        %3501 = vmatmul.mubr.bf16.gmra.mrb[0].mxu0 %v3381
        %v3502 = vpop.f32.mrb[0].mxu0
        %v3503 = vadd.f32 0.0, %v3502
        %v3504 = vpop.f32.mrb[0].mxu0
        %v3505 = vpop.f32.mrb[0].mxu0
        %v3506 = vadd.f32 0.0, %v3505
        %v3507 = vpop.f32.mrb[0].mxu0
        %3508 = vmatprep.mubr.bf16.mxu0 0
        %3509 = vmatmul.mubr.bf16.gmra.mrb[0].mxu0 %v3384
        %v3510 = vpop.f32.mrb[0].mxu0
        %v3511 = vadd.f32 0.0, %v3510
        %v3512 = vpop.f32.mrb[0].mxu0
        %v3513 = vpop.f32.mrb[0].mxu0
        %v3514 = vadd.f32 0.0, %v3513
        %v3515 = vpop.f32.mrb[0].mxu0
        %3516 = vmatprep.mubr.bf16.mxu0 0
        %3517 = vmatmul.mubr.bf16.gmra.mrb[0].mxu0 %v3387
        %v3518 = vpop.f32.mrb[0].mxu0
        %v3519 = vadd.f32 0.0, %v3518
        %v3520 = vpop.f32.mrb[0].mxu0
        %v3521 = vpop.f32.mrb[0].mxu0
        %v3522 = vadd.f32 0.0, %v3521
        %v3523 = vpop.f32.mrb[0].mxu0
        %3524 = vmatprep.mubr.bf16.mxu0 0
        %3525 = vmatmul.mubr.bf16.gmra.mrb[0].mxu0 %v3390
        %v3526 = vpop.f32.mrb[0].mxu0
        %v3527 = vadd.f32 0.0, %v3526
        %v3528 = vpop.f32.mrb[0].mxu0
        %v3529 = vpop.f32.mrb[0].mxu0
        %v3530 = vadd.f32 0.0, %v3529
        %v3531 = vpop.f32.mrb[0].mxu0
        %3532 = vmatprep.mubr.bf16.mxu0 0
        %3533 = vmatmul.mubr.bf16.gmra.mrb[0].mxu0 %v3393
        %v3534 = vpop.f32.mrb[0].mxu0
        %v3535 = vadd.f32 0.0, %v3534
        %v3536 = vpop.f32.mrb[0].mxu0
        %v3537 = vpop.f32.mrb[0].mxu0
        %v3538 = vadd.f32 0.0, %v3537
        %v3539 = vpop.f32.mrb[0].mxu0
        %3540 = vmatprep.mubr.bf16.mxu0 0
        %3541 = vmatmul.mubr.bf16.gmra.mrb[0].mxu0 %v3396
        %v3542 = vpop.f32.mrb[0].mxu0
        %v3543 = vadd.f32 0.0, %v3542
        %v3544 = vpop.f32.mrb[0].mxu0
        %v3545 = vpop.f32.mrb[0].mxu0
        %v3546 = vadd.f32 0.0, %v3545
        %v3547 = vpop.f32.mrb[0].mxu0
        %3548 = vmatprep.mubr.bf16.mxu0 0
        %3549 = vmatmul.mubr.bf16.gmra.mrb[0].mxu0 %v3399
        %v3550 = vpop.f32.mrb[0].mxu0
        %v3551 = vadd.f32 0.0, %v3550
        %v3552 = vpop.f32.mrb[0].mxu0
        %v3553 = vpop.f32.mrb[0].mxu0
        %v3554 = vadd.f32 0.0, %v3553
        %v3555 = vpop.f32.mrb[0].mxu0
        %3556 = vmatprep.mubr.bf16.mxu0 0
        %3557 = vmatmul.mubr.bf16.gmra.mrb[0].mxu0 %v3402
        %v3558 = vpop.f32.mrb[0].mxu0
        %v3559 = vadd.f32 0.0, %v3558
        %v3560 = vpop.f32.mrb[0].mxu0
        %v3561 = vpop.f32.mrb[0].mxu0
        %v3562 = vadd.f32 0.0, %v3561
        %v3563 = vpop.f32.mrb[0].mxu0
        %3564 = vdwg.mxu0
        %v3565 = vadd.f32 %v3203, %v3439
        %v3566 = vadd.f32 %v3204, %v3442
        %v3567 = vadd.f32 %v3205, %v3447
        %v3568 = vadd.f32 %v3206, %v3450
        %v3569 = vadd.f32 %v3207, %v3455
        %v3570 = vadd.f32 %v3208, %v3458
        %v3571 = vadd.f32 %v3209, %v3463
        %v3572 = vadd.f32 %v3210, %v3466
        %v3573 = vadd.f32 %v3211, %v3471
        %v3574 = vadd.f32 %v3212, %v3474
        %v3575 = vadd.f32 %v3213, %v3479
        %v3576 = vadd.f32 %v3214, %v3482
        %v3577 = vadd.f32 %v3215, %v3487
        %v3578 = vadd.f32 %v3216, %v3490
        %v3579 = vadd.f32 %v3217, %v3495
        %v3580 = vadd.f32 %v3218, %v3498
        %v3581 = vadd.f32 %v3219, %v3503
        %v3582 = vadd.f32 %v3220, %v3506
        %v3583 = vadd.f32 %v3221, %v3511
        %v3584 = vadd.f32 %v3222, %v3514
        %v3585 = vadd.f32 %v3223, %v3519
        %v3586 = vadd.f32 %v3224, %v3522
        %v3587 = vadd.f32 %v3225, %v3527
        %v3588 = vadd.f32 %v3226, %v3530
        %v3589 = vadd.f32 %v3227, %v3535
        %v3590 = vadd.f32 %v3228, %v3538
        %v3591 = vadd.f32 %v3229, %v3543
        %v3592 = vadd.f32 %v3230, %v3546
        %v3593 = vadd.f32 %v3231, %v3551
        %v3594 = vadd.f32 %v3232, %v3554
        %v3595 = vadd.f32 %v3233, %v3559
        %v3596 = vadd.f32 %v3234, %v3562
        %v3597 = vld [vmem:[%s3235] sm:$0xf]
        %v3598 = vld [vmem:[%s3235 + $0x4] sm:$0xf]
        %v3599 = vld [vmem:[%s3235 + $0x8] sm:$0x1]
        %v3600 = vld [vmem:[%s3235 + $0xc] sm:$0xf]
        %v3601 = vld [vmem:[%s3235 + $0x10] sm:$0xf]
        %v3602 = vld [vmem:[%s3235 + $0x14] sm:$0x1]
        %v3603 = vld [vmem:[%s3235 + $0x18] sm:$0xf]
        %v3604 = vld [vmem:[%s3235 + $0x1c] sm:$0xf]
        %v3605 = vld [vmem:[%s3235 + $0x20] sm:$0x1]
        %v3606 = vld [vmem:[%s3235 + $0x24] sm:$0xf]
        %v3607 = vld [vmem:[%s3235 + $0x28] sm:$0xf]
        %v3608 = vld [vmem:[%s3235 + $0x2c] sm:$0x1]
        %v3609 = vld [vmem:[%s3235 + $0x30] sm:$0xf]
        %v3610 = vld [vmem:[%s3235 + $0x34] sm:$0xf]
        %v3611 = vld [vmem:[%s3235 + $0x38] sm:$0x1]
        %v3612 = vld [vmem:[%s3235 + $0x3c] sm:$0xf]
        %v3613 = vld [vmem:[%s3235 + $0x40] sm:$0xf]
        %v3614 = vld [vmem:[%s3235 + $0x44] sm:$0x1]
        %v3615 = vld [vmem:[%s3235 + $0x48] sm:$0xf]
        %v3616 = vld [vmem:[%s3235 + $0x4c] sm:$0xf]
        %v3617 = vld [vmem:[%s3235 + $0x50] sm:$0x1]
        %v3618 = vld [vmem:[%s3235 + $0x54] sm:$0xf]
        %v3619 = vld [vmem:[%s3235 + $0x58] sm:$0xf]
        %v3620 = vld [vmem:[%s3235 + $0x5c] sm:$0x1]
        %v3621 = vld [vmem:[%s3235 + $0x60] sm:$0xf]
        %v3622 = vld [vmem:[%s3235 + $0x64] sm:$0xf]
        %v3623 = vld [vmem:[%s3235 + $0x68] sm:$0x1]
        %v3624 = vld [vmem:[%s3235 + $0x6c] sm:$0xf]
        %v3625 = vld [vmem:[%s3235 + $0x70] sm:$0xf]
        %v3626 = vld [vmem:[%s3235 + $0x74] sm:$0x1]
        %v3627 = vld [vmem:[%s3235 + $0x78] sm:$0xf]
        %v3628 = vld [vmem:[%s3235 + $0x7c] sm:$0xf]
        %v3629 = vld [vmem:[%s3235 + $0x80] sm:$0x1]
        %v3630 = vld [vmem:[%s3235 + $0x84] sm:$0xf]
        %v3631 = vld [vmem:[%s3235 + $0x88] sm:$0xf]
        %v3632 = vld [vmem:[%s3235 + $0x8c] sm:$0x1]
        %v3633 = vld [vmem:[%s3235 + $0x90] sm:$0xf]
        %v3634 = vld [vmem:[%s3235 + $0x94] sm:$0xf]
        %v3635 = vld [vmem:[%s3235 + $0x98] sm:$0x1]
        %v3636 = vld [vmem:[%s3235 + $0x9c] sm:$0xf]
        %v3637 = vld [vmem:[%s3235 + $0xa0] sm:$0xf]
        %v3638 = vld [vmem:[%s3235 + $0xa4] sm:$0x1]
        %v3639 = vld [vmem:[%s3235 + $0xa8] sm:$0xf]
        %v3640 = vld [vmem:[%s3235 + $0xac] sm:$0xf]
        %v3641 = vld [vmem:[%s3235 + $0xb0] sm:$0x1]
        %v3642 = vld [vmem:[%s3235 + $0xb4] sm:$0xf]
        %v3643 = vld [vmem:[%s3235 + $0xb8] sm:$0xf]
        %v3644 = vld [vmem:[%s3235 + $0xbc] sm:$0x1]
        %v3646 = vshrl.u32 %v3597, 16
        %v3648 = vrot.slane %v3646, 4
        %v3649 = vshll.u32 %v3597, 16
        %v3651 = vrot.slane %v3649, 5
        %v3652 = vor.u32 %v3648, %v3651
        %v3653 = vrot.slane %v3652, 4
        %v3655 = vshll.u32 %v3598, 16
        %v3657 = vrot.slane %v3655, 5
        %v3658 = vsel %vm265, %v3653, %v3657
        %v3659 = vshrl.u32 %v3598, 16
        %v3661 = vrot.slane %v3659, 4
        %v3662 = vor.u32 %v3661, %v3657
        %v3663 = vrot.slane %v3662, 4
        %v3665 = vshll.u32 %v3599, 16
        %v3667 = vrot.slane %v3665, 5
        %v3668 = vsel %vm265, %v3663, %v3667
        %v3670 = vshrl.u32 %v3600, 16
        %v3672 = vrot.slane %v3670, 4
        %v3673 = vshll.u32 %v3600, 16
        %v3675 = vrot.slane %v3673, 5
        %v3676 = vor.u32 %v3672, %v3675
        %v3677 = vrot.slane %v3676, 4
        %v3679 = vshll.u32 %v3601, 16
        %v3681 = vrot.slane %v3679, 5
        %v3682 = vsel %vm265, %v3677, %v3681
        %v3683 = vshrl.u32 %v3601, 16
        %v3685 = vrot.slane %v3683, 4
        %v3686 = vor.u32 %v3685, %v3681
        %v3687 = vrot.slane %v3686, 4
        %v3689 = vshll.u32 %v3602, 16
        %v3691 = vrot.slane %v3689, 5
        %v3692 = vsel %vm265, %v3687, %v3691
        %v3694 = vshrl.u32 %v3603, 16
        %v3696 = vrot.slane %v3694, 4
        %v3697 = vshll.u32 %v3603, 16
        %v3699 = vrot.slane %v3697, 5
        %v3700 = vor.u32 %v3696, %v3699
        %v3701 = vrot.slane %v3700, 4
        %v3703 = vshll.u32 %v3604, 16
        %v3705 = vrot.slane %v3703, 5
        %v3706 = vsel %vm265, %v3701, %v3705
        %v3707 = vshrl.u32 %v3604, 16
        %v3709 = vrot.slane %v3707, 4
        %v3710 = vor.u32 %v3709, %v3705
        %v3711 = vrot.slane %v3710, 4
        %v3713 = vshll.u32 %v3605, 16
        %v3715 = vrot.slane %v3713, 5
        %v3716 = vsel %vm265, %v3711, %v3715
        %v3718 = vshrl.u32 %v3606, 16
        %v3720 = vrot.slane %v3718, 4
        %v3721 = vshll.u32 %v3606, 16
        %v3723 = vrot.slane %v3721, 5
        %v3724 = vor.u32 %v3720, %v3723
        %v3725 = vrot.slane %v3724, 4
        %v3727 = vshll.u32 %v3607, 16
        %v3729 = vrot.slane %v3727, 5
        %v3730 = vsel %vm265, %v3725, %v3729
        %v3731 = vshrl.u32 %v3607, 16
        %v3733 = vrot.slane %v3731, 4
        %v3734 = vor.u32 %v3733, %v3729
        %v3735 = vrot.slane %v3734, 4
        %v3737 = vshll.u32 %v3608, 16
        %v3739 = vrot.slane %v3737, 5
        %v3740 = vsel %vm265, %v3735, %v3739
        %v3742 = vshrl.u32 %v3609, 16
        %v3744 = vrot.slane %v3742, 4
        %v3745 = vshll.u32 %v3609, 16
        %v3747 = vrot.slane %v3745, 5
        %v3748 = vor.u32 %v3744, %v3747
        %v3749 = vrot.slane %v3748, 4
        %v3751 = vshll.u32 %v3610, 16
        %v3753 = vrot.slane %v3751, 5
        %v3754 = vsel %vm265, %v3749, %v3753
        %v3755 = vshrl.u32 %v3610, 16
        %v3757 = vrot.slane %v3755, 4
        %v3758 = vor.u32 %v3757, %v3753
        %v3759 = vrot.slane %v3758, 4
        %v3761 = vshll.u32 %v3611, 16
        %v3763 = vrot.slane %v3761, 5
        %v3764 = vsel %vm265, %v3759, %v3763
        %v3766 = vshrl.u32 %v3612, 16
        %v3768 = vrot.slane %v3766, 4
        %v3769 = vshll.u32 %v3612, 16
        %v3771 = vrot.slane %v3769, 5
        %v3772 = vor.u32 %v3768, %v3771
        %v3773 = vrot.slane %v3772, 4
        %v3775 = vshll.u32 %v3613, 16
        %v3777 = vrot.slane %v3775, 5
        %v3778 = vsel %vm265, %v3773, %v3777
        %v3779 = vshrl.u32 %v3613, 16
        %v3781 = vrot.slane %v3779, 4
        %v3782 = vor.u32 %v3781, %v3777
        %v3783 = vrot.slane %v3782, 4
        %v3785 = vshll.u32 %v3614, 16
        %v3787 = vrot.slane %v3785, 5
        %v3788 = vsel %vm265, %v3783, %v3787
        %v3790 = vshrl.u32 %v3615, 16
        %v3792 = vrot.slane %v3790, 4
        %v3793 = vshll.u32 %v3615, 16
        %v3795 = vrot.slane %v3793, 5
        %v3796 = vor.u32 %v3792, %v3795
        %v3797 = vrot.slane %v3796, 4
        %v3799 = vshll.u32 %v3616, 16
        %v3801 = vrot.slane %v3799, 5
        %v3802 = vsel %vm265, %v3797, %v3801
        %v3803 = vshrl.u32 %v3616, 16
        %v3805 = vrot.slane %v3803, 4
        %v3806 = vor.u32 %v3805, %v3801
        %v3807 = vrot.slane %v3806, 4
        %v3809 = vshll.u32 %v3617, 16
        %v3811 = vrot.slane %v3809, 5
        %v3812 = vsel %vm265, %v3807, %v3811
        %v3814 = vshrl.u32 %v3618, 16
        %v3816 = vrot.slane %v3814, 4
        %v3817 = vshll.u32 %v3618, 16
        %v3819 = vrot.slane %v3817, 5
        %v3820 = vor.u32 %v3816, %v3819
        %v3821 = vrot.slane %v3820, 4
        %v3823 = vshll.u32 %v3619, 16
        %v3825 = vrot.slane %v3823, 5
        %v3826 = vsel %vm265, %v3821, %v3825
        %v3827 = vshrl.u32 %v3619, 16
        %v3829 = vrot.slane %v3827, 4
        %v3830 = vor.u32 %v3829, %v3825
        %v3831 = vrot.slane %v3830, 4
        %v3833 = vshll.u32 %v3620, 16
        %v3835 = vrot.slane %v3833, 5
        %v3836 = vsel %vm265, %v3831, %v3835
        %v3838 = vshrl.u32 %v3621, 16
        %v3840 = vrot.slane %v3838, 4
        %v3841 = vshll.u32 %v3621, 16
        %v3843 = vrot.slane %v3841, 5
        %v3844 = vor.u32 %v3840, %v3843
        %v3845 = vrot.slane %v3844, 4
        %v3847 = vshll.u32 %v3622, 16
        %v3849 = vrot.slane %v3847, 5
        %v3850 = vsel %vm265, %v3845, %v3849
        %v3851 = vshrl.u32 %v3622, 16
        %v3853 = vrot.slane %v3851, 4
        %v3854 = vor.u32 %v3853, %v3849
        %v3855 = vrot.slane %v3854, 4
        %v3857 = vshll.u32 %v3623, 16
        %v3859 = vrot.slane %v3857, 5
        %v3860 = vsel %vm265, %v3855, %v3859
        %v3862 = vshrl.u32 %v3624, 16
        %v3864 = vrot.slane %v3862, 4
        %v3865 = vshll.u32 %v3624, 16
        %v3867 = vrot.slane %v3865, 5
        %v3868 = vor.u32 %v3864, %v3867
        %v3869 = vrot.slane %v3868, 4
        %v3871 = vshll.u32 %v3625, 16
        %v3873 = vrot.slane %v3871, 5
        %v3874 = vsel %vm265, %v3869, %v3873
        %v3875 = vshrl.u32 %v3625, 16
        %v3877 = vrot.slane %v3875, 4
        %v3878 = vor.u32 %v3877, %v3873
        %v3879 = vrot.slane %v3878, 4
        %v3881 = vshll.u32 %v3626, 16
        %v3883 = vrot.slane %v3881, 5
        %v3884 = vsel %vm265, %v3879, %v3883
        %v3886 = vshrl.u32 %v3627, 16
        %v3888 = vrot.slane %v3886, 4
        %v3889 = vshll.u32 %v3627, 16
        %v3891 = vrot.slane %v3889, 5
        %v3892 = vor.u32 %v3888, %v3891
        %v3893 = vrot.slane %v3892, 4
        %v3895 = vshll.u32 %v3628, 16
        %v3897 = vrot.slane %v3895, 5
        %v3898 = vsel %vm265, %v3893, %v3897
        %v3899 = vshrl.u32 %v3628, 16
        %v3901 = vrot.slane %v3899, 4
        %v3902 = vor.u32 %v3901, %v3897
        %v3903 = vrot.slane %v3902, 4
        %v3905 = vshll.u32 %v3629, 16
        %v3907 = vrot.slane %v3905, 5
        %v3908 = vsel %vm265, %v3903, %v3907
        %v3910 = vshrl.u32 %v3630, 16
        %v3912 = vrot.slane %v3910, 4
        %v3913 = vshll.u32 %v3630, 16
        %v3915 = vrot.slane %v3913, 5
        %v3916 = vor.u32 %v3912, %v3915
        %v3917 = vrot.slane %v3916, 4
        %v3919 = vshll.u32 %v3631, 16
        %v3921 = vrot.slane %v3919, 5
        %v3922 = vsel %vm265, %v3917, %v3921
        %v3923 = vshrl.u32 %v3631, 16
        %v3925 = vrot.slane %v3923, 4
        %v3926 = vor.u32 %v3925, %v3921
        %v3927 = vrot.slane %v3926, 4
        %v3929 = vshll.u32 %v3632, 16
        %v3931 = vrot.slane %v3929, 5
        %v3932 = vsel %vm265, %v3927, %v3931
        %v3934 = vshrl.u32 %v3633, 16
        %v3936 = vrot.slane %v3934, 4
        %v3937 = vshll.u32 %v3633, 16
        %v3939 = vrot.slane %v3937, 5
        %v3940 = vor.u32 %v3936, %v3939
        %v3941 = vrot.slane %v3940, 4
        %v3943 = vshll.u32 %v3634, 16
        %v3945 = vrot.slane %v3943, 5
        %v3946 = vsel %vm265, %v3941, %v3945
        %v3947 = vshrl.u32 %v3634, 16
        %v3949 = vrot.slane %v3947, 4
        %v3950 = vor.u32 %v3949, %v3945
        %v3951 = vrot.slane %v3950, 4
        %v3953 = vshll.u32 %v3635, 16
        %v3955 = vrot.slane %v3953, 5
        %v3956 = vsel %vm265, %v3951, %v3955
        %v3958 = vshrl.u32 %v3636, 16
        %v3960 = vrot.slane %v3958, 4
        %v3961 = vshll.u32 %v3636, 16
        %v3963 = vrot.slane %v3961, 5
        %v3964 = vor.u32 %v3960, %v3963
        %v3965 = vrot.slane %v3964, 4
        %v3967 = vshll.u32 %v3637, 16
        %v3969 = vrot.slane %v3967, 5
        %v3970 = vsel %vm265, %v3965, %v3969
        %v3971 = vshrl.u32 %v3637, 16
        %v3973 = vrot.slane %v3971, 4
        %v3974 = vor.u32 %v3973, %v3969
        %v3975 = vrot.slane %v3974, 4
        %v3977 = vshll.u32 %v3638, 16
        %v3979 = vrot.slane %v3977, 5
        %v3980 = vsel %vm265, %v3975, %v3979
        %v3982 = vshrl.u32 %v3639, 16
        %v3984 = vrot.slane %v3982, 4
        %v3985 = vshll.u32 %v3639, 16
        %v3987 = vrot.slane %v3985, 5
        %v3988 = vor.u32 %v3984, %v3987
        %v3989 = vrot.slane %v3988, 4
        %v3991 = vshll.u32 %v3640, 16
        %v3993 = vrot.slane %v3991, 5
        %v3994 = vsel %vm265, %v3989, %v3993
        %v3995 = vshrl.u32 %v3640, 16
        %v3997 = vrot.slane %v3995, 4
        %v3998 = vor.u32 %v3997, %v3993
        %v3999 = vrot.slane %v3998, 4
        %v4001 = vshll.u32 %v3641, 16
        %v4003 = vrot.slane %v4001, 5
        %v4004 = vsel %vm265, %v3999, %v4003
        %v4006 = vshrl.u32 %v3642, 16
        %v4008 = vrot.slane %v4006, 4
        %v4009 = vshll.u32 %v3642, 16
        %v4011 = vrot.slane %v4009, 5
        %v4012 = vor.u32 %v4008, %v4011
        %v4013 = vrot.slane %v4012, 4
        %v4015 = vshll.u32 %v3643, 16
        %v4017 = vrot.slane %v4015, 5
        %v4018 = vsel %vm265, %v4013, %v4017
        %v4019 = vshrl.u32 %v3643, 16
        %v4021 = vrot.slane %v4019, 4
        %v4022 = vor.u32 %v4021, %v4017
        %v4023 = vrot.slane %v4022, 4
        %v4025 = vshll.u32 %v3644, 16
        %v4027 = vrot.slane %v4025, 5
        %v4028 = vsel %vm265, %v4023, %v4027
        %v4029 = vld [vmem:[%s244 + $0x38] sm:$0xf]
        %v4030 = vld [vmem:[%s244 + $0x3c] sm:$0xf]
        %v4031 = vunpack.c.l.b16 %v3658
        %v4032 = vunpack.c.l.b16 %v3668
        %v4033 = vunpack.c.l.b16 %v3682
        %v4034 = vunpack.c.l.b16 %v3692
        %v4035 = vunpack.c.l.b16 %v3706
        %v4036 = vunpack.c.l.b16 %v3716
        %v4037 = vunpack.c.l.b16 %v3730
        %v4038 = vunpack.c.l.b16 %v3740
        %v4039 = vunpack.c.l.b16 %v3754
        %v4040 = vunpack.c.l.b16 %v3764
        %v4041 = vunpack.c.l.b16 %v3778
        %v4042 = vunpack.c.l.b16 %v3788
        %v4043 = vunpack.c.l.b16 %v3802
        %v4044 = vunpack.c.l.b16 %v3812
        %v4045 = vunpack.c.l.b16 %v3826
        %v4046 = vunpack.c.l.b16 %v3836
        %v4047 = vunpack.c.l.b16 %v3850
        %v4048 = vunpack.c.l.b16 %v3860
        %v4049 = vunpack.c.l.b16 %v3874
        %v4050 = vunpack.c.l.b16 %v3884
        %v4051 = vunpack.c.l.b16 %v3898
        %v4052 = vunpack.c.l.b16 %v3908
        %v4053 = vunpack.c.l.b16 %v3922
        %v4054 = vunpack.c.l.b16 %v3932
        %v4055 = vunpack.c.l.b16 %v3946
        %v4056 = vunpack.c.l.b16 %v3956
        %v4057 = vunpack.c.l.b16 %v3970
        %v4058 = vunpack.c.l.b16 %v3980
        %v4059 = vunpack.c.l.b16 %v3994
        %v4060 = vunpack.c.l.b16 %v4004
        %v4061 = vunpack.c.l.b16 %v4018
        %v4062 = vunpack.c.l.b16 %v4028
        %v4063 = vpack.c.b16 %v4032, %v4031
        %v4064 = vpack.c.b16 %v4034, %v4033
        %v4065 = vpack.c.b16 %v4036, %v4035
        %v4066 = vpack.c.b16 %v4038, %v4037
        %v4067 = vpack.c.b16 %v4040, %v4039
        %v4068 = vpack.c.b16 %v4042, %v4041
        %v4069 = vpack.c.b16 %v4044, %v4043
        %v4070 = vpack.c.b16 %v4046, %v4045
        %v4071 = vpack.c.b16 %v4048, %v4047
        %v4072 = vpack.c.b16 %v4050, %v4049
        %v4073 = vpack.c.b16 %v4052, %v4051
        %v4074 = vpack.c.b16 %v4054, %v4053
        %v4075 = vpack.c.b16 %v4056, %v4055
        %v4076 = vpack.c.b16 %v4058, %v4057
        %v4077 = vpack.c.b16 %v4060, %v4059
        %v4078 = vpack.c.b16 %v4062, %v4061
        %v4081 = vunpack.c.l.b16 %v4029
        %v4082 = vunpack.c.l.b16 %v4030
        %v4083 = vpack.c.b16 %v4082, %v4081
        %v4086 = vsel %vm706, %v4063, 0
        %v4089 = vsel %vm706, %v4064, 0
        %v4092 = vsel %vm706, %v4065, 0
        %v4095 = vsel %vm706, %v4066, 0
        %v4098 = vsel %vm706, %v4067, 0
        %v4101 = vsel %vm706, %v4068, 0
        %v4104 = vsel %vm706, %v4069, 0
        %v4107 = vsel %vm706, %v4070, 0
        %v4110 = vsel %vm706, %v4071, 0
        %v4113 = vsel %vm706, %v4072, 0
        %v4116 = vsel %vm706, %v4073, 0
        %v4119 = vsel %vm706, %v4074, 0
        %v4122 = vsel %vm706, %v4075, 0
        %v4125 = vsel %vm706, %v4076, 0
        %v4128 = vsel %vm706, %v4077, 0
        %v4131 = vsel %vm706, %v4078, 0
        %4133 = vmatprep.subr.bf16.mxu0 0
        %4134 = vmatpush1.bf16.msra.mxu0 %v4083
        %4135 = vmatprep.subr.bf16.mxu0 0
        %4136 = vmatpush1.bf16.msra.mxu0 0
        %4137 = vmatprep.subr.bf16.mxu0 0
        %4138 = vmatpush1.bf16.msra.mxu0 0
        %4139 = vmatprep.subr.bf16.mxu0 0
        %4140 = vmatpush1.bf16.msra.mxu0 0
        %4141 = vmatprep.subr.bf16.mxu0 0
        %4142 = vmatpush1.bf16.msra.mxu0 0
        %4143 = vmatprep.subr.bf16.mxu0 0
        %4144 = vmatpush1.bf16.msra.mxu0 0
        %4145 = vmatprep.subr.bf16.mxu0 0
        %4146 = vmatpush1.bf16.msra.mxu0 0
        %4147 = vmatprep.subr.bf16.mxu0 0
        %4148 = vmatpush1.bf16.msra.mxu0 0
        %4149 = vmatprep.subr.bf16.mxu0 0
        %4150 = vmatpush1.bf16.msra.mxu0 0
        %4151 = vmatprep.subr.bf16.mxu0 0
        %4152 = vmatpush1.bf16.msra.mxu0 0
        %4153 = vmatprep.subr.bf16.mxu0 0
        %4154 = vmatpush1.bf16.msra.mxu0 0
        %4155 = vmatprep.subr.bf16.mxu0 0
        %4156 = vmatpush1.bf16.msra.mxu0 0
        %4157 = vmatprep.subr.bf16.mxu0 0
        %4158 = vmatpush1.bf16.msra.mxu0 0
        %4159 = vmatprep.subr.bf16.mxu0 0
        %4160 = vmatpush1.bf16.msra.mxu0 0
        %4161 = vmatprep.subr.bf16.mxu0 0
        %4162 = vmatpush1.bf16.msra.mxu0 0
        %4163 = vmatprep.subr.bf16.mxu0 0
        %4164 = vmatpush1.bf16.msra.mxu0 0
        %4165 = vmatprep.mubr.bf16.mxu0 0
        %4166 = vmatmul.mubr.bf16.gmra.mrb[0].mxu0 %v4086
        %v4167 = vpop.f32.mrb[0].mxu0
        %v4168 = vadd.f32 0.0, %v4167
        %v4169 = vpop.f32.mrb[0].mxu0
        %v4170 = vpop.f32.mrb[0].mxu0
        %v4171 = vadd.f32 0.0, %v4170
        %v4172 = vpop.f32.mrb[0].mxu0
        %4173 = vmatprep.mubr.bf16.mxu0 0
        %4174 = vmatmul.mubr.bf16.gmra.mrb[0].mxu0 %v4089
        %v4175 = vpop.f32.mrb[0].mxu0
        %v4176 = vadd.f32 0.0, %v4175
        %v4177 = vpop.f32.mrb[0].mxu0
        %v4178 = vpop.f32.mrb[0].mxu0
        %v4179 = vadd.f32 0.0, %v4178
        %v4180 = vpop.f32.mrb[0].mxu0
        %4181 = vmatprep.mubr.bf16.mxu0 0
        %4182 = vmatmul.mubr.bf16.gmra.mrb[0].mxu0 %v4092
        %v4183 = vpop.f32.mrb[0].mxu0
        %v4184 = vadd.f32 0.0, %v4183
        %v4185 = vpop.f32.mrb[0].mxu0
        %v4186 = vpop.f32.mrb[0].mxu0
        %v4187 = vadd.f32 0.0, %v4186
        %v4188 = vpop.f32.mrb[0].mxu0
        %4189 = vmatprep.mubr.bf16.mxu0 0
        %4190 = vmatmul.mubr.bf16.gmra.mrb[0].mxu0 %v4095
        %v4191 = vpop.f32.mrb[0].mxu0
        %v4192 = vadd.f32 0.0, %v4191
        %v4193 = vpop.f32.mrb[0].mxu0
        %v4194 = vpop.f32.mrb[0].mxu0
        %v4195 = vadd.f32 0.0, %v4194
        %v4196 = vpop.f32.mrb[0].mxu0
        %4197 = vmatprep.mubr.bf16.mxu0 0
        %4198 = vmatmul.mubr.bf16.gmra.mrb[0].mxu0 %v4098
        %v4199 = vpop.f32.mrb[0].mxu0
        %v4200 = vadd.f32 0.0, %v4199
        %v4201 = vpop.f32.mrb[0].mxu0
        %v4202 = vpop.f32.mrb[0].mxu0
        %v4203 = vadd.f32 0.0, %v4202
        %v4204 = vpop.f32.mrb[0].mxu0
        %4205 = vmatprep.mubr.bf16.mxu0 0
        %4206 = vmatmul.mubr.bf16.gmra.mrb[0].mxu0 %v4101
        %v4207 = vpop.f32.mrb[0].mxu0
        %v4208 = vadd.f32 0.0, %v4207
        %v4209 = vpop.f32.mrb[0].mxu0
        %v4210 = vpop.f32.mrb[0].mxu0
        %v4211 = vadd.f32 0.0, %v4210
        %v4212 = vpop.f32.mrb[0].mxu0
        %4213 = vmatprep.mubr.bf16.mxu0 0
        %4214 = vmatmul.mubr.bf16.gmra.mrb[0].mxu0 %v4104
        %v4215 = vpop.f32.mrb[0].mxu0
        %v4216 = vadd.f32 0.0, %v4215
        %v4217 = vpop.f32.mrb[0].mxu0
        %v4218 = vpop.f32.mrb[0].mxu0
        %v4219 = vadd.f32 0.0, %v4218
        %v4220 = vpop.f32.mrb[0].mxu0
        %4221 = vmatprep.mubr.bf16.mxu0 0
        %4222 = vmatmul.mubr.bf16.gmra.mrb[0].mxu0 %v4107
        %v4223 = vpop.f32.mrb[0].mxu0
        %v4224 = vadd.f32 0.0, %v4223
        %v4225 = vpop.f32.mrb[0].mxu0
        %v4226 = vpop.f32.mrb[0].mxu0
        %v4227 = vadd.f32 0.0, %v4226
        %v4228 = vpop.f32.mrb[0].mxu0
        %4229 = vmatprep.mubr.bf16.mxu0 0
        %4230 = vmatmul.mubr.bf16.gmra.mrb[0].mxu0 %v4110
        %v4231 = vpop.f32.mrb[0].mxu0
        %v4232 = vadd.f32 0.0, %v4231
        %v4233 = vpop.f32.mrb[0].mxu0
        %v4234 = vpop.f32.mrb[0].mxu0
        %v4235 = vadd.f32 0.0, %v4234
        %v4236 = vpop.f32.mrb[0].mxu0
        %4237 = vmatprep.mubr.bf16.mxu0 0
        %4238 = vmatmul.mubr.bf16.gmra.mrb[0].mxu0 %v4113
        %v4239 = vpop.f32.mrb[0].mxu0
        %v4240 = vadd.f32 0.0, %v4239
        %v4241 = vpop.f32.mrb[0].mxu0
        %v4242 = vpop.f32.mrb[0].mxu0
        %v4243 = vadd.f32 0.0, %v4242
        %v4244 = vpop.f32.mrb[0].mxu0
        %4245 = vmatprep.mubr.bf16.mxu0 0
        %4246 = vmatmul.mubr.bf16.gmra.mrb[0].mxu0 %v4116
        %v4247 = vpop.f32.mrb[0].mxu0
        %v4248 = vadd.f32 0.0, %v4247
        %v4249 = vpop.f32.mrb[0].mxu0
        %v4250 = vpop.f32.mrb[0].mxu0
        %v4251 = vadd.f32 0.0, %v4250
        %v4252 = vpop.f32.mrb[0].mxu0
        %4253 = vmatprep.mubr.bf16.mxu0 0
        %4254 = vmatmul.mubr.bf16.gmra.mrb[0].mxu0 %v4119
        %v4255 = vpop.f32.mrb[0].mxu0
        %v4256 = vadd.f32 0.0, %v4255
        %v4257 = vpop.f32.mrb[0].mxu0
        %v4258 = vpop.f32.mrb[0].mxu0
        %v4259 = vadd.f32 0.0, %v4258
        %v4260 = vpop.f32.mrb[0].mxu0
        %4261 = vmatprep.mubr.bf16.mxu0 0
        %4262 = vmatmul.mubr.bf16.gmra.mrb[0].mxu0 %v4122
        %v4263 = vpop.f32.mrb[0].mxu0
        %v4264 = vadd.f32 0.0, %v4263
        %v4265 = vpop.f32.mrb[0].mxu0
        %v4266 = vpop.f32.mrb[0].mxu0
        %v4267 = vadd.f32 0.0, %v4266
        %v4268 = vpop.f32.mrb[0].mxu0
        %4269 = vmatprep.mubr.bf16.mxu0 0
        %4270 = vmatmul.mubr.bf16.gmra.mrb[0].mxu0 %v4125
        %v4271 = vpop.f32.mrb[0].mxu0
        %v4272 = vadd.f32 0.0, %v4271
        %v4273 = vpop.f32.mrb[0].mxu0
        %v4274 = vpop.f32.mrb[0].mxu0
        %v4275 = vadd.f32 0.0, %v4274
        %v4276 = vpop.f32.mrb[0].mxu0
        %4277 = vmatprep.mubr.bf16.mxu0 0
        %4278 = vmatmul.mubr.bf16.gmra.mrb[0].mxu0 %v4128
        %v4279 = vpop.f32.mrb[0].mxu0
        %v4280 = vadd.f32 0.0, %v4279
        %v4281 = vpop.f32.mrb[0].mxu0
        %v4282 = vpop.f32.mrb[0].mxu0
        %v4283 = vadd.f32 0.0, %v4282
        %v4284 = vpop.f32.mrb[0].mxu0
        %4285 = vmatprep.mubr.bf16.mxu0 0
        %4286 = vmatmul.mubr.bf16.gmra.mrb[0].mxu0 %v4131
        %v4287 = vpop.f32.mrb[0].mxu0
        %v4288 = vadd.f32 0.0, %v4287
        %v4289 = vpop.f32.mrb[0].mxu0
        %v4290 = vpop.f32.mrb[0].mxu0
        %v4291 = vadd.f32 0.0, %v4290
        %v4292 = vpop.f32.mrb[0].mxu0
        %4293 = vdwg.mxu0
        %v4294 = vadd.f32 %v3565, %v4168
        %v4295 = vadd.f32 %v3566, %v4171
        %v4296 = vadd.f32 %v3567, %v4176
        %v4297 = vadd.f32 %v3568, %v4179
        %v4298 = vadd.f32 %v3569, %v4184
        %v4299 = vadd.f32 %v3570, %v4187
        %v4300 = vadd.f32 %v3571, %v4192
        %v4301 = vadd.f32 %v3572, %v4195
        %v4302 = vadd.f32 %v3573, %v4200
        %v4303 = vadd.f32 %v3574, %v4203
        %v4304 = vadd.f32 %v3575, %v4208
        %v4305 = vadd.f32 %v3576, %v4211
        %v4306 = vadd.f32 %v3577, %v4216
        %v4307 = vadd.f32 %v3578, %v4219
        %v4308 = vadd.f32 %v3579, %v4224
        %v4309 = vadd.f32 %v3580, %v4227
        %v4310 = vadd.f32 %v3581, %v4232
        %v4311 = vadd.f32 %v3582, %v4235
        %v4312 = vadd.f32 %v3583, %v4240
        %v4313 = vadd.f32 %v3584, %v4243
        %v4314 = vadd.f32 %v3585, %v4248
        %v4315 = vadd.f32 %v3586, %v4251
        %v4316 = vadd.f32 %v3587, %v4256
        %v4317 = vadd.f32 %v3588, %v4259
        %v4318 = vadd.f32 %v3589, %v4264
        %v4319 = vadd.f32 %v3590, %v4267
        %v4320 = vadd.f32 %v3591, %v4272
        %v4321 = vadd.f32 %v3592, %v4275
        %v4322 = vadd.f32 %v3593, %v4280
        %v4323 = vadd.f32 %v3594, %v4283
        %v4324 = vadd.f32 %v3595, %v4288
        %v4325 = vadd.f32 %v3596, %v4291
        %v4326 = vld [vmem:[%s3235] sm:$0xe]
        %v4327 = vld [vmem:[%s3235 + $0xc] sm:$0xe]
        %v4328 = vld [vmem:[%s3235 + $0x18] sm:$0xe]
        %v4329 = vld [vmem:[%s3235 + $0x24] sm:$0xe]
        %v4330 = vld [vmem:[%s3235 + $0x30] sm:$0xe]
        %v4331 = vld [vmem:[%s3235 + $0x3c] sm:$0xe]
        %v4332 = vld [vmem:[%s3235 + $0x48] sm:$0xe]
        %v4333 = vld [vmem:[%s3235 + $0x54] sm:$0xe]
        %v4334 = vld [vmem:[%s3235 + $0x60] sm:$0xe]
        %v4335 = vld [vmem:[%s3235 + $0x6c] sm:$0xe]
        %v4336 = vld [vmem:[%s3235 + $0x78] sm:$0xe]
        %v4337 = vld [vmem:[%s3235 + $0x84] sm:$0xe]
        %v4338 = vld [vmem:[%s3235 + $0x90] sm:$0xe]
        %v4339 = vld [vmem:[%s3235 + $0x9c] sm:$0xe]
        %v4340 = vld [vmem:[%s3235 + $0xa8] sm:$0xe]
        %v4341 = vld [vmem:[%s3235 + $0xb4] sm:$0xe]
        %v4390 = vrot.slane %v4326, 5
        %v4391 = vrot.slane %v4390, 4
        %v4392 = vrot.slane %v3598, 5
        %v4393 = vsel %vm1261, %v4391, %v4392
        %v4394 = vrot.slane %v4392, 4
        %v4395 = vrot.slane %v3599, 5
        %v4396 = vsel %vm1261, %v4394, %v4395
        %v4397 = vrot.slane %v4327, 5
        %v4398 = vrot.slane %v4397, 4
        %v4399 = vrot.slane %v3601, 5
        %v4400 = vsel %vm1261, %v4398, %v4399
        %v4401 = vrot.slane %v4399, 4
        %v4402 = vrot.slane %v3602, 5
        %v4403 = vsel %vm1261, %v4401, %v4402
        %v4404 = vrot.slane %v4328, 5
        %v4405 = vrot.slane %v4404, 4
        %v4406 = vrot.slane %v3604, 5
        %v4407 = vsel %vm1261, %v4405, %v4406
        %v4408 = vrot.slane %v4406, 4
        %v4409 = vrot.slane %v3605, 5
        %v4410 = vsel %vm1261, %v4408, %v4409
        %v4411 = vrot.slane %v4329, 5
        %v4412 = vrot.slane %v4411, 4
        %v4413 = vrot.slane %v3607, 5
        %v4414 = vsel %vm1261, %v4412, %v4413
        %v4415 = vrot.slane %v4413, 4
        %v4416 = vrot.slane %v3608, 5
        %v4417 = vsel %vm1261, %v4415, %v4416
        %v4418 = vrot.slane %v4330, 5
        %v4419 = vrot.slane %v4418, 4
        %v4420 = vrot.slane %v3610, 5
        %v4421 = vsel %vm1261, %v4419, %v4420
        %v4422 = vrot.slane %v4420, 4
        %v4423 = vrot.slane %v3611, 5
        %v4424 = vsel %vm1261, %v4422, %v4423
        %v4425 = vrot.slane %v4331, 5
        %v4426 = vrot.slane %v4425, 4
        %v4427 = vrot.slane %v3613, 5
        %v4428 = vsel %vm1261, %v4426, %v4427
        %v4429 = vrot.slane %v4427, 4
        %v4430 = vrot.slane %v3614, 5
        %v4431 = vsel %vm1261, %v4429, %v4430
        %v4432 = vrot.slane %v4332, 5
        %v4433 = vrot.slane %v4432, 4
        %v4434 = vrot.slane %v3616, 5
        %v4435 = vsel %vm1261, %v4433, %v4434
        %v4436 = vrot.slane %v4434, 4
        %v4437 = vrot.slane %v3617, 5
        %v4438 = vsel %vm1261, %v4436, %v4437
        %v4439 = vrot.slane %v4333, 5
        %v4440 = vrot.slane %v4439, 4
        %v4441 = vrot.slane %v3619, 5
        %v4442 = vsel %vm1261, %v4440, %v4441
        %v4443 = vrot.slane %v4441, 4
        %v4444 = vrot.slane %v3620, 5
        %v4445 = vsel %vm1261, %v4443, %v4444
        %v4446 = vrot.slane %v4334, 5
        %v4447 = vrot.slane %v4446, 4
        %v4448 = vrot.slane %v3622, 5
        %v4449 = vsel %vm1261, %v4447, %v4448
        %v4450 = vrot.slane %v4448, 4
        %v4451 = vrot.slane %v3623, 5
        %v4452 = vsel %vm1261, %v4450, %v4451
        %v4453 = vrot.slane %v4335, 5
        %v4454 = vrot.slane %v4453, 4
        %v4455 = vrot.slane %v3625, 5
        %v4456 = vsel %vm1261, %v4454, %v4455
        %v4457 = vrot.slane %v4455, 4
        %v4458 = vrot.slane %v3626, 5
        %v4459 = vsel %vm1261, %v4457, %v4458
        %v4460 = vrot.slane %v4336, 5
        %v4461 = vrot.slane %v4460, 4
        %v4462 = vrot.slane %v3628, 5
        %v4463 = vsel %vm1261, %v4461, %v4462
        %v4464 = vrot.slane %v4462, 4
        %v4465 = vrot.slane %v3629, 5
        %v4466 = vsel %vm1261, %v4464, %v4465
        %v4467 = vrot.slane %v4337, 5
        %v4468 = vrot.slane %v4467, 4
        %v4469 = vrot.slane %v3631, 5
        %v4470 = vsel %vm1261, %v4468, %v4469
        %v4471 = vrot.slane %v4469, 4
        %v4472 = vrot.slane %v3632, 5
        %v4473 = vsel %vm1261, %v4471, %v4472
        %v4474 = vrot.slane %v4338, 5
        %v4475 = vrot.slane %v4474, 4
        %v4476 = vrot.slane %v3634, 5
        %v4477 = vsel %vm1261, %v4475, %v4476
        %v4478 = vrot.slane %v4476, 4
        %v4479 = vrot.slane %v3635, 5
        %v4480 = vsel %vm1261, %v4478, %v4479
        %v4481 = vrot.slane %v4339, 5
        %v4482 = vrot.slane %v4481, 4
        %v4483 = vrot.slane %v3637, 5
        %v4484 = vsel %vm1261, %v4482, %v4483
        %v4485 = vrot.slane %v4483, 4
        %v4486 = vrot.slane %v3638, 5
        %v4487 = vsel %vm1261, %v4485, %v4486
        %v4488 = vrot.slane %v4340, 5
        %v4489 = vrot.slane %v4488, 4
        %v4490 = vrot.slane %v3640, 5
        %v4491 = vsel %vm1261, %v4489, %v4490
        %v4492 = vrot.slane %v4490, 4
        %v4493 = vrot.slane %v3641, 5
        %v4494 = vsel %vm1261, %v4492, %v4493
        %v4495 = vrot.slane %v4341, 5
        %v4496 = vrot.slane %v4495, 4
        %v4497 = vrot.slane %v3643, 5
        %v4498 = vsel %vm1261, %v4496, %v4497
        %v4499 = vrot.slane %v4497, 4
        %v4500 = vrot.slane %v3644, 5
        %v4501 = vsel %vm1261, %v4499, %v4500
        %v4502 = vld [vmem:[%s244 + $0x40] sm:$0xf]
        %v4503 = vld [vmem:[%s244 + $0x44] sm:$0xf]
        %v4504 = vunpack.c.l.b16 %v4393
        %v4505 = vunpack.c.l.b16 %v4396
        %v4506 = vunpack.c.l.b16 %v4400
        %v4507 = vunpack.c.l.b16 %v4403
        %v4508 = vunpack.c.l.b16 %v4407
        %v4509 = vunpack.c.l.b16 %v4410
        %v4510 = vunpack.c.l.b16 %v4414
        %v4511 = vunpack.c.l.b16 %v4417
        %v4512 = vunpack.c.l.b16 %v4421
        %v4513 = vunpack.c.l.b16 %v4424
        %v4514 = vunpack.c.l.b16 %v4428
        %v4515 = vunpack.c.l.b16 %v4431
        %v4516 = vunpack.c.l.b16 %v4435
        %v4517 = vunpack.c.l.b16 %v4438
        %v4518 = vunpack.c.l.b16 %v4442
        %v4519 = vunpack.c.l.b16 %v4445
        %v4520 = vunpack.c.l.b16 %v4449
        %v4521 = vunpack.c.l.b16 %v4452
        %v4522 = vunpack.c.l.b16 %v4456
        %v4523 = vunpack.c.l.b16 %v4459
        %v4524 = vunpack.c.l.b16 %v4463
        %v4525 = vunpack.c.l.b16 %v4466
        %v4526 = vunpack.c.l.b16 %v4470
        %v4527 = vunpack.c.l.b16 %v4473
        %v4528 = vunpack.c.l.b16 %v4477
        %v4529 = vunpack.c.l.b16 %v4480
        %v4530 = vunpack.c.l.b16 %v4484
        %v4531 = vunpack.c.l.b16 %v4487
        %v4532 = vunpack.c.l.b16 %v4491
        %v4533 = vunpack.c.l.b16 %v4494
        %v4534 = vunpack.c.l.b16 %v4498
        %v4535 = vunpack.c.l.b16 %v4501
        %v4536 = vpack.c.b16 %v4505, %v4504
        %v4537 = vpack.c.b16 %v4507, %v4506
        %v4538 = vpack.c.b16 %v4509, %v4508
        %v4539 = vpack.c.b16 %v4511, %v4510
        %v4540 = vpack.c.b16 %v4513, %v4512
        %v4541 = vpack.c.b16 %v4515, %v4514
        %v4542 = vpack.c.b16 %v4517, %v4516
        %v4543 = vpack.c.b16 %v4519, %v4518
        %v4544 = vpack.c.b16 %v4521, %v4520
        %v4545 = vpack.c.b16 %v4523, %v4522
        %v4546 = vpack.c.b16 %v4525, %v4524
        %v4547 = vpack.c.b16 %v4527, %v4526
        %v4548 = vpack.c.b16 %v4529, %v4528
        %v4549 = vpack.c.b16 %v4531, %v4530
        %v4550 = vpack.c.b16 %v4533, %v4532
        %v4551 = vpack.c.b16 %v4535, %v4534
        %v4554 = vunpack.c.l.b16 %v4502
        %v4555 = vunpack.c.l.b16 %v4503
        %v4556 = vpack.c.b16 %v4555, %v4554
        %v4559 = vsel %vm706, %v4536, 0
        %v4562 = vsel %vm706, %v4537, 0
        %v4565 = vsel %vm706, %v4538, 0
        %v4568 = vsel %vm706, %v4539, 0
        %v4571 = vsel %vm706, %v4540, 0
        %v4574 = vsel %vm706, %v4541, 0
        %v4577 = vsel %vm706, %v4542, 0
        %v4580 = vsel %vm706, %v4543, 0
        %v4583 = vsel %vm706, %v4544, 0
        %v4586 = vsel %vm706, %v4545, 0
        %v4589 = vsel %vm706, %v4546, 0
        %v4592 = vsel %vm706, %v4547, 0
        %v4595 = vsel %vm706, %v4548, 0
        %v4598 = vsel %vm706, %v4549, 0
        %v4601 = vsel %vm706, %v4550, 0
        %v4604 = vsel %vm706, %v4551, 0
        %4606 = vmatprep.subr.bf16.mxu0 0
        %4607 = vmatpush1.bf16.msra.mxu0 %v4556
        %4608 = vmatprep.subr.bf16.mxu0 0
        %4609 = vmatpush1.bf16.msra.mxu0 0
        %4610 = vmatprep.subr.bf16.mxu0 0
        %4611 = vmatpush1.bf16.msra.mxu0 0
        %4612 = vmatprep.subr.bf16.mxu0 0
        %4613 = vmatpush1.bf16.msra.mxu0 0
        %4614 = vmatprep.subr.bf16.mxu0 0
        %4615 = vmatpush1.bf16.msra.mxu0 0
        %4616 = vmatprep.subr.bf16.mxu0 0
        %4617 = vmatpush1.bf16.msra.mxu0 0
        %4618 = vmatprep.subr.bf16.mxu0 0
        %4619 = vmatpush1.bf16.msra.mxu0 0
        %4620 = vmatprep.subr.bf16.mxu0 0
        %4621 = vmatpush1.bf16.msra.mxu0 0
        %4622 = vmatprep.subr.bf16.mxu0 0
        %4623 = vmatpush1.bf16.msra.mxu0 0
        %4624 = vmatprep.subr.bf16.mxu0 0
        %4625 = vmatpush1.bf16.msra.mxu0 0
        %4626 = vmatprep.subr.bf16.mxu0 0
        %4627 = vmatpush1.bf16.msra.mxu0 0
        %4628 = vmatprep.subr.bf16.mxu0 0
        %4629 = vmatpush1.bf16.msra.mxu0 0
        %4630 = vmatprep.subr.bf16.mxu0 0
        %4631 = vmatpush1.bf16.msra.mxu0 0
        %4632 = vmatprep.subr.bf16.mxu0 0
        %4633 = vmatpush1.bf16.msra.mxu0 0
        %4634 = vmatprep.subr.bf16.mxu0 0
        %4635 = vmatpush1.bf16.msra.mxu0 0
        %4636 = vmatprep.subr.bf16.mxu0 0
        %4637 = vmatpush1.bf16.msra.mxu0 0
        %4638 = vmatprep.mubr.bf16.mxu0 0
        %4639 = vmatmul.mubr.bf16.gmra.mrb[0].mxu0 %v4559
        %v4640 = vpop.f32.mrb[0].mxu0
        %v4641 = vadd.f32 0.0, %v4640
        %v4642 = vpop.f32.mrb[0].mxu0
        %v4643 = vpop.f32.mrb[0].mxu0
        %v4644 = vadd.f32 0.0, %v4643
        %v4645 = vpop.f32.mrb[0].mxu0
        %4646 = vmatprep.mubr.bf16.mxu0 0
        %4647 = vmatmul.mubr.bf16.gmra.mrb[0].mxu0 %v4562
        %v4648 = vpop.f32.mrb[0].mxu0
        %v4649 = vadd.f32 0.0, %v4648
        %v4650 = vpop.f32.mrb[0].mxu0
        %v4651 = vpop.f32.mrb[0].mxu0
        %v4652 = vadd.f32 0.0, %v4651
        %v4653 = vpop.f32.mrb[0].mxu0
        %4654 = vmatprep.mubr.bf16.mxu0 0
        %4655 = vmatmul.mubr.bf16.gmra.mrb[0].mxu0 %v4565
        %v4656 = vpop.f32.mrb[0].mxu0
        %v4657 = vadd.f32 0.0, %v4656
        %v4658 = vpop.f32.mrb[0].mxu0
        %v4659 = vpop.f32.mrb[0].mxu0
        %v4660 = vadd.f32 0.0, %v4659
        %v4661 = vpop.f32.mrb[0].mxu0
        %4662 = vmatprep.mubr.bf16.mxu0 0
        %4663 = vmatmul.mubr.bf16.gmra.mrb[0].mxu0 %v4568
        %v4664 = vpop.f32.mrb[0].mxu0
        %v4665 = vadd.f32 0.0, %v4664
        %v4666 = vpop.f32.mrb[0].mxu0
        %v4667 = vpop.f32.mrb[0].mxu0
        %v4668 = vadd.f32 0.0, %v4667
        %v4669 = vpop.f32.mrb[0].mxu0
        %4670 = vmatprep.mubr.bf16.mxu0 0
        %4671 = vmatmul.mubr.bf16.gmra.mrb[0].mxu0 %v4571
        %v4672 = vpop.f32.mrb[0].mxu0
        %v4673 = vadd.f32 0.0, %v4672
        %v4674 = vpop.f32.mrb[0].mxu0
        %v4675 = vpop.f32.mrb[0].mxu0
        %v4676 = vadd.f32 0.0, %v4675
        %v4677 = vpop.f32.mrb[0].mxu0
        %4678 = vmatprep.mubr.bf16.mxu0 0
        %4679 = vmatmul.mubr.bf16.gmra.mrb[0].mxu0 %v4574
        %v4680 = vpop.f32.mrb[0].mxu0
        %v4681 = vadd.f32 0.0, %v4680
        %v4682 = vpop.f32.mrb[0].mxu0
        %v4683 = vpop.f32.mrb[0].mxu0
        %v4684 = vadd.f32 0.0, %v4683
        %v4685 = vpop.f32.mrb[0].mxu0
        %4686 = vmatprep.mubr.bf16.mxu0 0
        %4687 = vmatmul.mubr.bf16.gmra.mrb[0].mxu0 %v4577
        %v4688 = vpop.f32.mrb[0].mxu0
        %v4689 = vadd.f32 0.0, %v4688
        %v4690 = vpop.f32.mrb[0].mxu0
        %v4691 = vpop.f32.mrb[0].mxu0
        %v4692 = vadd.f32 0.0, %v4691
        %v4693 = vpop.f32.mrb[0].mxu0
        %4694 = vmatprep.mubr.bf16.mxu0 0
        %4695 = vmatmul.mubr.bf16.gmra.mrb[0].mxu0 %v4580
        %v4696 = vpop.f32.mrb[0].mxu0
        %v4697 = vadd.f32 0.0, %v4696
        %v4698 = vpop.f32.mrb[0].mxu0
        %v4699 = vpop.f32.mrb[0].mxu0
        %v4700 = vadd.f32 0.0, %v4699
        %v4701 = vpop.f32.mrb[0].mxu0
        %4702 = vmatprep.mubr.bf16.mxu0 0
        %4703 = vmatmul.mubr.bf16.gmra.mrb[0].mxu0 %v4583
        %v4704 = vpop.f32.mrb[0].mxu0
        %v4705 = vadd.f32 0.0, %v4704
        %v4706 = vpop.f32.mrb[0].mxu0
        %v4707 = vpop.f32.mrb[0].mxu0
        %v4708 = vadd.f32 0.0, %v4707
        %v4709 = vpop.f32.mrb[0].mxu0
        %4710 = vmatprep.mubr.bf16.mxu0 0
        %4711 = vmatmul.mubr.bf16.gmra.mrb[0].mxu0 %v4586
        %v4712 = vpop.f32.mrb[0].mxu0
        %v4713 = vadd.f32 0.0, %v4712
        %v4714 = vpop.f32.mrb[0].mxu0
        %v4715 = vpop.f32.mrb[0].mxu0
        %v4716 = vadd.f32 0.0, %v4715
        %v4717 = vpop.f32.mrb[0].mxu0
        %4718 = vmatprep.mubr.bf16.mxu0 0
        %4719 = vmatmul.mubr.bf16.gmra.mrb[0].mxu0 %v4589
        %v4720 = vpop.f32.mrb[0].mxu0
        %v4721 = vadd.f32 0.0, %v4720
        %v4722 = vpop.f32.mrb[0].mxu0
        %v4723 = vpop.f32.mrb[0].mxu0
        %v4724 = vadd.f32 0.0, %v4723
        %v4725 = vpop.f32.mrb[0].mxu0
        %4726 = vmatprep.mubr.bf16.mxu0 0
        %4727 = vmatmul.mubr.bf16.gmra.mrb[0].mxu0 %v4592
        %v4728 = vpop.f32.mrb[0].mxu0
        %v4729 = vadd.f32 0.0, %v4728
        %v4730 = vpop.f32.mrb[0].mxu0
        %v4731 = vpop.f32.mrb[0].mxu0
        %v4732 = vadd.f32 0.0, %v4731
        %v4733 = vpop.f32.mrb[0].mxu0
        %4734 = vmatprep.mubr.bf16.mxu0 0
        %4735 = vmatmul.mubr.bf16.gmra.mrb[0].mxu0 %v4595
        %v4736 = vpop.f32.mrb[0].mxu0
        %v4737 = vadd.f32 0.0, %v4736
        %v4738 = vpop.f32.mrb[0].mxu0
        %v4739 = vpop.f32.mrb[0].mxu0
        %v4740 = vadd.f32 0.0, %v4739
        %v4741 = vpop.f32.mrb[0].mxu0
        %4742 = vmatprep.mubr.bf16.mxu0 0
        %4743 = vmatmul.mubr.bf16.gmra.mrb[0].mxu0 %v4598
        %v4744 = vpop.f32.mrb[0].mxu0
        %v4745 = vadd.f32 0.0, %v4744
        %v4746 = vpop.f32.mrb[0].mxu0
        %v4747 = vpop.f32.mrb[0].mxu0
        %v4748 = vadd.f32 0.0, %v4747
        %v4749 = vpop.f32.mrb[0].mxu0
        %4750 = vmatprep.mubr.bf16.mxu0 0
        %4751 = vmatmul.mubr.bf16.gmra.mrb[0].mxu0 %v4601
        %v4752 = vpop.f32.mrb[0].mxu0
        %v4753 = vadd.f32 0.0, %v4752
        %v4754 = vpop.f32.mrb[0].mxu0
        %v4755 = vpop.f32.mrb[0].mxu0
        %v4756 = vadd.f32 0.0, %v4755
        %v4757 = vpop.f32.mrb[0].mxu0
        %4758 = vmatprep.mubr.bf16.mxu0 0
        %4759 = vmatmul.mubr.bf16.gmra.mrb[0].mxu0 %v4604
        %v4760 = vpop.f32.mrb[0].mxu0
        %v4761 = vadd.f32 0.0, %v4760
        %v4762 = vpop.f32.mrb[0].mxu0
        %v4763 = vpop.f32.mrb[0].mxu0
        %v4764 = vadd.f32 0.0, %v4763
        %v4765 = vpop.f32.mrb[0].mxu0
        %4766 = vdwg.mxu0
        %v4767 = vadd.f32 %v4294, %v4641
        %v4768 = vadd.f32 %v4295, %v4644
        %v4769 = vadd.f32 %v4296, %v4649
        %v4770 = vadd.f32 %v4297, %v4652
        %v4771 = vadd.f32 %v4298, %v4657
        %v4772 = vadd.f32 %v4299, %v4660
        %v4773 = vadd.f32 %v4300, %v4665
        %v4774 = vadd.f32 %v4301, %v4668
        %v4775 = vadd.f32 %v4302, %v4673
        %v4776 = vadd.f32 %v4303, %v4676
        %v4777 = vadd.f32 %v4304, %v4681
        %v4778 = vadd.f32 %v4305, %v4684
        %v4779 = vadd.f32 %v4306, %v4689
        %v4780 = vadd.f32 %v4307, %v4692
        %v4781 = vadd.f32 %v4308, %v4697
        %v4782 = vadd.f32 %v4309, %v4700
        %v4783 = vadd.f32 %v4310, %v4705
        %v4784 = vadd.f32 %v4311, %v4708
        %v4785 = vadd.f32 %v4312, %v4713
        %v4786 = vadd.f32 %v4313, %v4716
        %v4787 = vadd.f32 %v4314, %v4721
        %v4788 = vadd.f32 %v4315, %v4724
        %v4789 = vadd.f32 %v4316, %v4729
        %v4790 = vadd.f32 %v4317, %v4732
        %v4791 = vadd.f32 %v4318, %v4737
        %v4792 = vadd.f32 %v4319, %v4740
        %v4793 = vadd.f32 %v4320, %v4745
        %v4794 = vadd.f32 %v4321, %v4748
        %v4795 = vadd.f32 %v4322, %v4753
        %v4796 = vadd.f32 %v4323, %v4756
        %v4797 = vadd.f32 %v4324, %v4761
        %v4798 = vadd.f32 %v4325, %v4764
        %s4799 = scalar_lea.vmem %s2, %s241
        %v4800 = vld [vmem:[%s4799] sm:$0x1]
        %v4802 = vlaneseq
        %v4803 = vshrl.u32 %v4802, 7
        %v4804 = vsub.s32 0, %v4803
        %v4805 = vrot.slane %v4800, %v4804
        %v4807 = vadd.f32 %v4767, %v4805
        %v4808 = vadd.f32 %v4768, %v4805
        %v4809 = vadd.f32 %v4769, %v4805
        %v4810 = vadd.f32 %v4770, %v4805
        %v4811 = vadd.f32 %v4771, %v4805
        %v4812 = vadd.f32 %v4772, %v4805
        %v4813 = vadd.f32 %v4773, %v4805
        %v4814 = vadd.f32 %v4774, %v4805
        %v4815 = vadd.f32 %v4775, %v4805
        %v4816 = vadd.f32 %v4776, %v4805
        %v4817 = vadd.f32 %v4777, %v4805
        %v4818 = vadd.f32 %v4778, %v4805
        %v4819 = vadd.f32 %v4779, %v4805
        %v4820 = vadd.f32 %v4780, %v4805
        %v4821 = vadd.f32 %v4781, %v4805
        %v4822 = vadd.f32 %v4782, %v4805
        %v4823 = vadd.f32 %v4783, %v4805
        %v4824 = vadd.f32 %v4784, %v4805
        %v4825 = vadd.f32 %v4785, %v4805
        %v4826 = vadd.f32 %v4786, %v4805
        %v4827 = vadd.f32 %v4787, %v4805
        %v4828 = vadd.f32 %v4788, %v4805
        %v4829 = vadd.f32 %v4789, %v4805
        %v4830 = vadd.f32 %v4790, %v4805
        %v4831 = vadd.f32 %v4791, %v4805
        %v4832 = vadd.f32 %v4792, %v4805
        %v4833 = vadd.f32 %v4793, %v4805
        %v4834 = vadd.f32 %v4794, %v4805
        %v4835 = vadd.f32 %v4795, %v4805
        %v4836 = vadd.f32 %v4796, %v4805
        %v4837 = vadd.f32 %v4797, %v4805
        %v4838 = vadd.f32 %v4798, %v4805
        %v4839 = vsub.f32 0.0, %v4807
        %v4840 = vsub.f32 0.0, %v4808
        %v4841 = vsub.f32 0.0, %v4809
        %v4842 = vsub.f32 0.0, %v4810
        %v4843 = vsub.f32 0.0, %v4811
        %v4844 = vsub.f32 0.0, %v4812
        %v4845 = vsub.f32 0.0, %v4813
        %v4846 = vsub.f32 0.0, %v4814
        %v4847 = vsub.f32 0.0, %v4815
        %v4848 = vsub.f32 0.0, %v4816
        %v4849 = vsub.f32 0.0, %v4817
        %v4850 = vsub.f32 0.0, %v4818
        %v4851 = vsub.f32 0.0, %v4819
        %v4852 = vsub.f32 0.0, %v4820
        %v4853 = vsub.f32 0.0, %v4821
        %v4854 = vsub.f32 0.0, %v4822
        %v4855 = vsub.f32 0.0, %v4823
        %v4856 = vsub.f32 0.0, %v4824
        %v4857 = vsub.f32 0.0, %v4825
        %v4858 = vsub.f32 0.0, %v4826
        %v4859 = vsub.f32 0.0, %v4827
        %v4860 = vsub.f32 0.0, %v4828
        %v4861 = vsub.f32 0.0, %v4829
        %v4862 = vsub.f32 0.0, %v4830
        %v4863 = vsub.f32 0.0, %v4831
        %v4864 = vsub.f32 0.0, %v4832
        %v4865 = vsub.f32 0.0, %v4833
        %v4866 = vsub.f32 0.0, %v4834
        %v4867 = vsub.f32 0.0, %v4835
        %v4868 = vsub.f32 0.0, %v4836
        %v4869 = vsub.f32 0.0, %v4837
        %v4870 = vsub.f32 0.0, %v4838
        %v4871 = vmul.f32 %v4839, 1.442695
        %v4872 = vpow.pop %v4871
        %v4873 = vmul.f32 %v4840, 1.442695
        %v4874 = vpow.pop %v4873
        %v4875 = vmul.f32 %v4841, 1.442695
        %v4876 = vpow.pop %v4875
        %v4877 = vmul.f32 %v4842, 1.442695
        %v4878 = vpow.pop %v4877
        %v4879 = vmul.f32 %v4843, 1.442695
        %v4880 = vpow.pop %v4879
        %v4881 = vmul.f32 %v4844, 1.442695
        %v4882 = vpow.pop %v4881
        %v4883 = vmul.f32 %v4845, 1.442695
        %v4884 = vpow.pop %v4883
        %v4885 = vmul.f32 %v4846, 1.442695
        %v4886 = vpow.pop %v4885
        %v4887 = vmul.f32 %v4847, 1.442695
        %v4888 = vpow.pop %v4887
        %v4889 = vmul.f32 %v4848, 1.442695
        %v4890 = vpow.pop %v4889
        %v4891 = vmul.f32 %v4849, 1.442695
        %v4892 = vpow.pop %v4891
        %v4893 = vmul.f32 %v4850, 1.442695
        %v4894 = vpow.pop %v4893
        %v4895 = vmul.f32 %v4851, 1.442695
        %v4896 = vpow.pop %v4895
        %v4897 = vmul.f32 %v4852, 1.442695
        %v4898 = vpow.pop %v4897
        %v4899 = vmul.f32 %v4853, 1.442695
        %v4900 = vpow.pop %v4899
        %v4901 = vmul.f32 %v4854, 1.442695
        %v4902 = vpow.pop %v4901
        %v4903 = vmul.f32 %v4855, 1.442695
        %v4904 = vpow.pop %v4903
        %v4905 = vmul.f32 %v4856, 1.442695
        %v4906 = vpow.pop %v4905
        %v4907 = vmul.f32 %v4857, 1.442695
        %v4908 = vpow.pop %v4907
        %v4909 = vmul.f32 %v4858, 1.442695
        %v4910 = vpow.pop %v4909
        %v4911 = vmul.f32 %v4859, 1.442695
        %v4912 = vpow.pop %v4911
        %v4913 = vmul.f32 %v4860, 1.442695
        %v4914 = vpow.pop %v4913
        %v4915 = vmul.f32 %v4861, 1.442695
        %v4916 = vpow.pop %v4915
        %v4917 = vmul.f32 %v4862, 1.442695
        %v4918 = vpow.pop %v4917
        %v4919 = vmul.f32 %v4863, 1.442695
        %v4920 = vpow.pop %v4919
        %v4921 = vmul.f32 %v4864, 1.442695
        %v4922 = vpow.pop %v4921
        %v4923 = vmul.f32 %v4865, 1.442695
        %v4924 = vpow.pop %v4923
        %v4925 = vmul.f32 %v4866, 1.442695
        %v4926 = vpow.pop %v4925
        %v4927 = vmul.f32 %v4867, 1.442695
        %v4928 = vpow.pop %v4927
        %v4929 = vmul.f32 %v4868, 1.442695
        %v4930 = vpow.pop %v4929
        %v4931 = vmul.f32 %v4869, 1.442695
        %v4932 = vpow.pop %v4931
        %v4933 = vmul.f32 %v4870, 1.442695
        %v4934 = vpow.pop %v4933
        %v4935 = vadd.f32 %v4872, 1.0
        %v4936 = vadd.f32 %v4874, 1.0
        %v4937 = vadd.f32 %v4876, 1.0
        %v4938 = vadd.f32 %v4878, 1.0
        %v4939 = vadd.f32 %v4880, 1.0
        %v4940 = vadd.f32 %v4882, 1.0
        %v4941 = vadd.f32 %v4884, 1.0
        %v4942 = vadd.f32 %v4886, 1.0
        %v4943 = vadd.f32 %v4888, 1.0
        %v4944 = vadd.f32 %v4890, 1.0
        %v4945 = vadd.f32 %v4892, 1.0
        %v4946 = vadd.f32 %v4894, 1.0
        %v4947 = vadd.f32 %v4896, 1.0
        %v4948 = vadd.f32 %v4898, 1.0
        %v4949 = vadd.f32 %v4900, 1.0
        %v4950 = vadd.f32 %v4902, 1.0
        %v4951 = vadd.f32 %v4904, 1.0
        %v4952 = vadd.f32 %v4906, 1.0
        %v4953 = vadd.f32 %v4908, 1.0
        %v4954 = vadd.f32 %v4910, 1.0
        %v4955 = vadd.f32 %v4912, 1.0
        %v4956 = vadd.f32 %v4914, 1.0
        %v4957 = vadd.f32 %v4916, 1.0
        %v4958 = vadd.f32 %v4918, 1.0
        %v4959 = vadd.f32 %v4920, 1.0
        %v4960 = vadd.f32 %v4922, 1.0
        %v4961 = vadd.f32 %v4924, 1.0
        %v4962 = vadd.f32 %v4926, 1.0
        %v4963 = vadd.f32 %v4928, 1.0
        %v4964 = vadd.f32 %v4930, 1.0
        %v4965 = vadd.f32 %v4932, 1.0
        %v4966 = vadd.f32 %v4934, 1.0
        %v4967 = vrcp.pop %v4935
        %v4968 = vrcp.pop %v4936
        %v4969 = vrcp.pop %v4937
        %v4970 = vrcp.pop %v4938
        %v4971 = vrcp.pop %v4939
        %v4972 = vrcp.pop %v4940
        %v4973 = vrcp.pop %v4941
        %v4974 = vrcp.pop %v4942
        %v4975 = vrcp.pop %v4943
        %v4976 = vrcp.pop %v4944
        %v4977 = vrcp.pop %v4945
        %v4978 = vrcp.pop %v4946
        %v4979 = vrcp.pop %v4947
        %v4980 = vrcp.pop %v4948
        %v4981 = vrcp.pop %v4949
        %v4982 = vrcp.pop %v4950
        %v4983 = vrcp.pop %v4951
        %v4984 = vrcp.pop %v4952
        %v4985 = vrcp.pop %v4953
        %v4986 = vrcp.pop %v4954
        %v4987 = vrcp.pop %v4955
        %v4988 = vrcp.pop %v4956
        %v4989 = vrcp.pop %v4957
        %v4990 = vrcp.pop %v4958
        %v4991 = vrcp.pop %v4959
        %v4992 = vrcp.pop %v4960
        %v4993 = vrcp.pop %v4961
        %v4994 = vrcp.pop %v4962
        %v4995 = vrcp.pop %v4963
        %v4996 = vrcp.pop %v4964
        %v4997 = vrcp.pop %v4965
        %v4998 = vrcp.pop %v4966
        %v4999 = vmul.f32 %v4807, %v4967
        %v5000 = vmul.f32 %v4808, %v4968
        %v5001 = vmul.f32 %v4809, %v4969
        %v5002 = vmul.f32 %v4810, %v4970
        %v5003 = vmul.f32 %v4811, %v4971
        %v5004 = vmul.f32 %v4812, %v4972
        %v5005 = vmul.f32 %v4813, %v4973
        %v5006 = vmul.f32 %v4814, %v4974
        %v5007 = vmul.f32 %v4815, %v4975
        %v5008 = vmul.f32 %v4816, %v4976
        %v5009 = vmul.f32 %v4817, %v4977
        %v5010 = vmul.f32 %v4818, %v4978
        %v5011 = vmul.f32 %v4819, %v4979
        %v5012 = vmul.f32 %v4820, %v4980
        %v5013 = vmul.f32 %v4821, %v4981
        %v5014 = vmul.f32 %v4822, %v4982
        %v5015 = vmul.f32 %v4823, %v4983
        %v5016 = vmul.f32 %v4824, %v4984
        %v5017 = vmul.f32 %v4825, %v4985
        %v5018 = vmul.f32 %v4826, %v4986
        %v5019 = vmul.f32 %v4827, %v4987
        %v5020 = vmul.f32 %v4828, %v4988
        %v5021 = vmul.f32 %v4829, %v4989
        %v5022 = vmul.f32 %v4830, %v4990
        %v5023 = vmul.f32 %v4831, %v4991
        %v5024 = vmul.f32 %v4832, %v4992
        %v5025 = vmul.f32 %v4833, %v4993
        %v5026 = vmul.f32 %v4834, %v4994
        %v5027 = vmul.f32 %v4835, %v4995
        %v5028 = vmul.f32 %v4836, %v4996
        %v5029 = vmul.f32 %v4837, %v4997
        %v5030 = vmul.f32 %v4838, %v4998
        %5031 = vst [vmem:[%s196] sm:$0xff] %v4999
        %5032 = vst [vmem:[%s196 + $0x8] sm:$0xff] %v5000
        %5033 = vst [vmem:[%s196 + $0x10] sm:$0xff] %v5001
        %5034 = vst [vmem:[%s196 + $0x18] sm:$0xff] %v5002
        %5035 = vst [vmem:[%s196 + $0x20] sm:$0xff] %v5003
        %5036 = vst [vmem:[%s196 + $0x28] sm:$0xff] %v5004
        %5037 = vst [vmem:[%s196 + $0x30] sm:$0xff] %v5005
        %5038 = vst [vmem:[%s196 + $0x38] sm:$0xff] %v5006
        %5039 = vst [vmem:[%s196 + $0x40] sm:$0xff] %v5007
        %5040 = vst [vmem:[%s196 + $0x48] sm:$0xff] %v5008
        %5041 = vst [vmem:[%s196 + $0x50] sm:$0xff] %v5009
        %5042 = vst [vmem:[%s196 + $0x58] sm:$0xff] %v5010
        %5043 = vst [vmem:[%s196 + $0x60] sm:$0xff] %v5011
        %5044 = vst [vmem:[%s196 + $0x68] sm:$0xff] %v5012
        %5045 = vst [vmem:[%s196 + $0x70] sm:$0xff] %v5013
        %5046 = vst [vmem:[%s196 + $0x78] sm:$0xff] %v5014
        %5047 = vst [vmem:[%s196 + $0x80] sm:$0xff] %v5015
        %5048 = vst [vmem:[%s196 + $0x88] sm:$0xff] %v5016
        %5049 = vst [vmem:[%s196 + $0x90] sm:$0xff] %v5017
        %5050 = vst [vmem:[%s196 + $0x98] sm:$0xff] %v5018
        %5051 = vst [vmem:[%s196 + $0xa0] sm:$0xff] %v5019
        %5052 = vst [vmem:[%s196 + $0xa8] sm:$0xff] %v5020
        %5053 = vst [vmem:[%s196 + $0xb0] sm:$0xff] %v5021
        %5054 = vst [vmem:[%s196 + $0xb8] sm:$0xff] %v5022
        %5055 = vst [vmem:[%s196 + $0xc0] sm:$0xff] %v5023
        %5056 = vst [vmem:[%s196 + $0xc8] sm:$0xff] %v5024
        %5057 = vst [vmem:[%s196 + $0xd0] sm:$0xff] %v5025
        %5058 = vst [vmem:[%s196 + $0xd8] sm:$0xff] %v5026
        %5059 = vst [vmem:[%s196 + $0xe0] sm:$0xff] %v5027
        %5060 = vst [vmem:[%s196 + $0xe8] sm:$0xff] %v5028
        %5061 = vst [vmem:[%s196 + $0xf0] sm:$0xff] %v5029
        %5062 = vst [vmem:[%s196 + $0xf8] sm:$0xff] %v5030
        %s5063 = sand.u32 %s118, 1
        %s5064 = scalar_lea.sflag [#allocation3], %s5063
        %s5065 = sand.u32 %s118, 1
        %s5066 = smul.addr %s5065, 256
        %s5067 = scalar_lea.vmem [#allocation2], %s5066
        // Predicated region
        $region33: #{tpu_custom_call.1} parent=31 // pred_check
          %p5068 = pneg %p128
        $region34: #{tpu_custom_call.1} parent=31 // pred_check_branch
          %5070 = sbr.rel (%p5068) target = $region36
        $region35: #{tpu_custom_call.1} parent=31 // pred_region
          %s5071 = smul.u32 16, %s23
          %s5073 = ssub.s32 4096, 4096
          %5074 = vsyncadd %s5064, %s5073
          %s5075 = smul.addr %s5071, 2
          %s5076 = sadd.s32 %s24, %s5075
          %s5077 = smul.addr %s22, 32
          %s5078 = sadd.s32 %s5076, %s5077
          %s5079 = smul.addr %s5078, 128
          %s5080 = scalar_lea.hbm %s3, %s5079
          %s5081 = sshll.u32 %s5067, 4
          %s5082 = int_to_ptr.vmem [resolvable:$true] %s5081
          %5087 = dma.vmem_to_hbm [thread:$0]  %s5082, 4096, %s5080, %s5064, 128, 128, 8
        $region36: #{tpu_custom_call.1} parent=31 // pred_fallthru
          _
      $region32: #{tpu_custom_call.1} parent=5 // pred_fallthru
        _
      %p5088 = scmp.le.s32.totalorder 2, %s12
      // Predicated region
      $region37: #{tpu_custom_call.1} parent=5 // pred_check
        %p5089 = pneg %p5088
      $region38: #{tpu_custom_call.1} parent=5 // pred_check_branch
        %5091 = sbr.rel (%p5089) target = $region40
      $region39: #{tpu_custom_call.1} parent=5 // pred_region
        %s5092 = ssub.s32 %s12, 2
        // Predicated region
        $region41: #{tpu_custom_call.1} parent=39 // pred_check
          %p5093 = pneg %p134
        $region42: #{tpu_custom_call.1} parent=39 // pred_check_branch
          %5095 = sbr.rel (%p5093) target = $region44
        $region43: #{tpu_custom_call.1} parent=39 // pred_region
          %s5096 = sand.u32 %s119, 1
          %s5097 = scalar_lea.sflag [#allocation3], %s5096
          %s5098 = sand.u32 %s119, 1
          %s5099 = smul.addr %s5098, 256
          %s5100 = scalar_lea.vmem [#allocation2], %s5099
          %5101 = dma.done %s5097, 4096
        $region44: #{tpu_custom_call.1} parent=39 // pred_fallthru
          _
      $region40: #{tpu_custom_call.1} parent=5 // pred_fallthru
        _
    $region6: #{tpu_custom_call.1} parent=1 // loop_footer
      %s16 = sadd.s32 1, %s12
    $region7: #{tpu_custom_call.1} parent=1 // loop_footer_branch
      %11 = sbr.rel target = $region3
    $region8: #{tpu_custom_call.1} parent=1 // loop_exit
      _
    %5102 = vsyncpa [#allocation3], 1
    %s5103 = scalar_lea.sflag [#allocation3], 1
    %5104 = vsyncpa %s5103, 1

</llo_original>
